<compile_context>
chip_gen: v6e
topology: v6e:2x2x1
jax: 0.10.0
libtpu: 0.0.40
codegen_flags: <defaults>
</compile_context>

<pallas_src>
import math
from functools import partial

import numpy as np

import jax
import jax.numpy as jnp
from jax.experimental import pallas as pl
from jax.experimental.pallas import tpu as pltpu

DECODER_N_LAYERS = 1
EOS_TOKEN = 1
BEAM_PAD = 8          # beams padded to a sublane multiple so all decoder-kernel stores are dense


def _on_v7x():
    try:
        kind = jax.devices()[0].device_kind.lower()
        return ("v7" in kind) or ("7x" in kind)
    except Exception:
        return False


_USE_DIRECTION_GRID = _on_v7x()   # v7x: shard the 2 directions across its 2 TensorCores


# --------------------------------------------------------------------------- #
# Shared GRU cell (gate math in f32; v5e has no bf16 VPU).                      #
# --------------------------------------------------------------------------- #
def _gru_cell(gi, gh, h, H):
    r = jax.nn.sigmoid(gi[:, :H] + gh[:, :H])
    z = jax.nn.sigmoid(gi[:, H:2 * H] + gh[:, H:2 * H])
    n = jnp.tanh(gi[:, 2 * H:] + r * gh[:, 2 * H:])
    return (1.0 - z) * n + z * h


# --------------------------------------------------------------------------- #
# Encoder kernel A (v5e/v6e): both directions fused in one program.            #
# --------------------------------------------------------------------------- #
def _bigru_fused_kernel(x_ref, wih_ref, whhf_ref, whhb_ref, bih_ref, bhh_ref,
                        enc_ref, hfin_ref, gi_scr, bwd_scr):
    T, _E = x_ref.shape
    H = whhf_ref.shape[0]

    # Hoisted input projection for BOTH directions in one MXU pass: [T, 6H].
    gi_scr[...] = (jnp.dot(x_ref[...].astype(jnp.bfloat16), wih_ref[...],
                           preferred_element_type=jnp.float32) + bih_ref[...])

    whhf = whhf_ref[...]
    whhb = whhb_ref[...]
    bhhf = bhh_ref[0:1, :]
    bhhb = bhh_ref[1:2, :]

    def step(t, carry):
        hf, hb = carry
        tb = T - 1 - t                             # backward direction walks reversed time
        gi_f = gi_scr[pl.ds(t, 1), :][:, :3 * H]   # lane-tile-aligned value slices
        gi_b = gi_scr[pl.ds(tb, 1), :][:, 3 * H:]
        gh_f = jnp.dot(hf.astype(jnp.bfloat16), whhf,
                       preferred_element_type=jnp.float32) + bhhf
        gh_b = jnp.dot(hb.astype(jnp.bfloat16), whhb,
                       preferred_element_type=jnp.float32) + bhhb
        hf_new = _gru_cell(gi_f, gh_f, hf, H)
        hb_new = _gru_cell(gi_b, gh_b, hb, H)
        enc_ref[pl.ds(t, 1), :] = hf_new
        bwd_scr[pl.ds(tb, 1), :] = hb_new
        return hf_new, hb_new

    h0 = jnp.zeros((1, H), jnp.float32)
    hf_fin, hb_fin = jax.lax.fori_loop(0, T, step, (h0, h0), unroll=True)

    # Emit the summed bidirectional output directly (reference Encoder sums fwd + bwd).
    enc_ref[...] = enc_ref[...] + bwd_scr[...]
    hfin_ref[0:1, :] = hf_fin
    hfin_ref[1:2, :] = hb_fin


def _bigru_fused(x, wih, whh, bih, bhh):
    T, E = x.shape
    H = whh.shape[1]
    wih_cat = jnp.concatenate([wih[0], wih[1]], axis=1)        # [E, 6H]  (fwd | bwd)
    bih_cat = jnp.concatenate([bih[0], bih[1]], axis=1)        # [1, 6H]
    bhh2 = bhh[:, 0, :]                                        # [2, 3H]
    return pl.pallas_call(
        _bigru_fused_kernel,
        out_shape=(jax.ShapeDtypeStruct((T, H), jnp.float32),      # summed bidirectional output
                   jax.ShapeDtypeStruct((2, H), jnp.float32)),     # final hidden (fwd, bwd)
        scratch_shapes=[pltpu.VMEM((T, 6 * H), jnp.float32),       # hoisted gi for both dirs
                        pltpu.VMEM((T, H), jnp.float32)],          # backward-direction outputs
    )(x, wih_cat, whh[0], whh[1], bih_cat, bhh2)


# --------------------------------------------------------------------------- #
# Encoder kernel B (v7x): grid=(2,) over directions, "parallel" -> 2 TCs.      #
# --------------------------------------------------------------------------- #
def _bigru_dir_kernel(x_ref, wih_ref, whh_ref, bih_ref, bhh_ref,
                      out_ref, hfin_ref, gi_scr):
    d = pl.program_id(0)                           # 0 = forward, 1 = backward
    T, _E = x_ref.shape
    H = whh_ref.shape[0]

    # Hoisted input projection (per direction): [T, 3H].
    gi_scr[...] = (jnp.dot(x_ref[...].astype(jnp.bfloat16), wih_ref[...],
                           preferred_element_type=jnp.float32) + bih_ref[...])
    whh = whh_ref[...]
    bhh = bhh_ref[...]

    def step(t, h):
        tt = jnp.where(d == 0, t, T - 1 - t)
        gi = gi_scr[pl.ds(tt, 1), :]
        gh = jnp.dot(h.astype(jnp.bfloat16), whh,
                     preferred_element_type=jnp.float32) + bhh
        h_new = _gru_cell(gi, gh, h, H)
        out_ref[pl.ds(tt, 1), :] = h_new
        return h_new

    hfin_ref[...] = jax.lax.fori_loop(0, T, step, jnp.zeros((1, H), jnp.float32),
                                      unroll=True)


def _bigru_dir_grid(x, wih, whh, bih, bhh):
    T, E = x.shape
    H = whh.shape[1]
    out, hfin = pl.pallas_call(
        _bigru_dir_kernel,
        out_shape=(jax.ShapeDtypeStruct((2, T, H), jnp.float32),
                   jax.ShapeDtypeStruct((2, H), jnp.float32)),
        grid_spec=pltpu.PrefetchScalarGridSpec(
            num_scalar_prefetch=0,
            grid=(2,),
            in_specs=[
                pl.BlockSpec((T, E), lambda d: (0, 0)),               # whole sequence in VMEM
                pl.BlockSpec((None, E, 3 * H), lambda d: (d, 0, 0)),  # per-direction weights
                pl.BlockSpec((None, H, 3 * H), lambda d: (d, 0, 0)),
                pl.BlockSpec((None, 1, 3 * H), lambda d: (d, 0, 0)),
                pl.BlockSpec((None, 1, 3 * H), lambda d: (d, 0, 0)),
            ],
            out_specs=[
                pl.BlockSpec((None, T, H), lambda d: (d, 0, 0)),
                pl.BlockSpec((1, H), lambda d: (d, 0)),
            ],
            scratch_shapes=[pltpu.VMEM((T, 3 * H), jnp.float32)],
        ),
        compiler_params=pltpu.CompilerParams(dimension_semantics=("parallel",)),
    )(x, wih, whh, bih, bhh)
    return out[0] + out[1], hfin


# --------------------------------------------------------------------------- #
# Fused decoder step (batched over padded beams): attention + GRU cell +       #
# output projection + log_softmax.                                             #
# --------------------------------------------------------------------------- #
def _decoder_step_kernel(emb_ref, h_ref, enc_ref, epart_ref,
                         wa_h_ref, v_ref, dec_w_ref, dec_b_ref,
                         out_w_ref, out_b_ref,
                         logp_ref, hnew_ref):
    emb = emb_ref[...]                           # [Bb, E] f32
    h = h_ref[...]                               # [Bb, H] f32
    Bb, E = emb.shape
    H = h.shape[-1]
    h_b = h.astype(jnp.bfloat16)
    enc_b = enc_ref[...].astype(jnp.bfloat16)    # [T, H]

    # Bahdanau attention; encoder projection + bias precomputed per sentence (epart).
    h_part = jnp.dot(h_b, wa_h_ref[...], preferred_element_type=jnp.float32)      # [Bb, H]
    energy = jax.nn.relu(h_part[:, None, :] + epart_ref[...][None, :, :])          # [Bb, T, H]
    # VPU multiply + XLU lane reduction instead of an N=1 MXU matmul.
    scores = jnp.sum(energy * v_ref[...], axis=-1)                                 # [Bb, T]
    m = jnp.max(scores, axis=-1, keepdims=True)
    ex = jnp.exp(scores - m)
    attn = ex * pl.reciprocal(jnp.sum(ex, axis=-1, keepdims=True), approx=True)    # EUP recip
    context = jnp.dot(attn.astype(jnp.bfloat16), enc_b,
                      preferred_element_type=jnp.float32)                          # [Bb, H]
    context_b = context.astype(jnp.bfloat16)

    # GRU cell on concat([embedded, context]); packed weight slab sliced statically (free).
    xin = jnp.concatenate([emb.astype(jnp.bfloat16), context_b], axis=-1)          # [Bb, E+H]
    gi = jnp.dot(xin, dec_w_ref[0:E + H, :],
                 preferred_element_type=jnp.float32) + dec_b_ref[0:1, :]
    gh = jnp.dot(h_b, dec_w_ref[E + H:E + 2 * H, :],
                 preferred_element_type=jnp.float32) + dec_b_ref[1:2, :]
    h_new = _gru_cell(gi, gh, h, H)

    # Output projection over concat([gru_out, context]) + log_softmax over vocab.
    oin = jnp.concatenate([h_new.astype(jnp.bfloat16), context_b], axis=-1)        # [Bb, 2H]
    logits = (jnp.dot(oin, out_w_ref[...], preferred_element_type=jnp.float32)
              + out_b_ref[...])                                                    # [Bb, V]
    lm = jnp.max(logits, axis=-1, keepdims=True)
    lz = logits - lm
    lse = jnp.log(jnp.sum(jnp.exp(lz), axis=-1, keepdims=True))
    logp_ref[...] = lz - lse
    hnew_ref[...] = h_new


def decoder_step(emb, h, enc, e_part, p):
    Bb = emb.shape[0]
    H = h.shape[-1]
    V = p['out_b'].shape[-1]
    return pl.pallas_call(
        _decoder_step_kernel,
        out_shape=(jax.ShapeDtypeStruct((Bb, V), jnp.float32),
                   jax.ShapeDtypeStruct((Bb, H), jnp.float32)),
    )(emb, h, enc, e_part,
      p['attn_w_hT'], p['attn_v'], p['dec_w'], p['dec_b'], p['out_w'], p['out_b'])


# --------------------------------------------------------------------------- #
# Module-level forward functions (glue)                                        #
# --------------------------------------------------------------------------- #
@jax.jit
def encoder_forward(src, p):
    """src: [T, B=1] int32.  Returns (enc_sum [T,H], final hidden [2,H], e_part [T,H])."""
    emb = p['embed_src'][src[:, 0]]                              # [T, E]  (batch == 1)
    if _USE_DIRECTION_GRID:
        enc_sum, hfin = _bigru_dir_grid(emb, p['enc_wih'], p['enc_whh'],
                                        p['enc_bih'], p['enc_bhh'])
    else:
        enc_sum, hfin = _bigru_fused(emb, p['enc_wih'], p['enc_whh'],
                                     p['enc_bih'], p['enc_bhh'])
    # Pre-project encoder outputs for attention ONCE per sentence (attention bias folded in).
    e_part = jnp.dot(enc_sum, p['attn_w_eT'].astype(jnp.float32)) + p['attn_b']
    return enc_sum, hfin, e_part


@partial(jax.jit, static_argnums=(6,))
def decode_topk(tokens, parents, hidden_beams, enc, e_part, p, beam_size):
    """tokens/parents: [BEAM_PAD] int32; hidden_beams: [BEAM_PAD, H] device-resident.
    Returns (top-k log-probs [BEAM_PAD,k], top-k indices [BEAM_PAD,k], new hidden [BEAM_PAD,H])."""
    # TODO(synk): nn.Dropout on the decoder embedding is treated as eval-mode identity.
    emb = p['embed_trg'][tokens]             # [BEAM_PAD, E]
    h = hidden_beams[parents]                # on-device parent gather (no host round-trip)
    logp, h_new = decoder_step(emb, h, enc, e_part, p)
    vals, idxs = jax.lax.top_k(logp, beam_size)
    return vals, idxs, h_new


def seq2seq_forward(src, p, trg=None, teacher_forcing_ratio=0.5, beam_size=5):
    # TODO(synk): trg / teacher_forcing_ratio are accepted but never read on this beam-search
    # path, matching the reference; the reference's unused `outputs` buffer is not allocated.
    T, batch_size = src.shape
    assert batch_size == 1, "beam-search path of the reference assumes batch == 1"
    max_len = trg.shape[0] if trg is not None else T

    enc_sum, hfin, e_part = encoder_forward(src, p)
    H = enc_sum.shape[-1]
    # TODO(synk): only the forward-direction final state initializes the decoder hidden
    # (hidden[:n_layers]), as in the reference.
    hidden0 = jnp.broadcast_to(hfin[0:DECODER_N_LAYERS], (BEAM_PAD, H))

    zeros_i = jnp.zeros((BEAM_PAD,), jnp.int32)                  # start tokens (id 0)
    vals, idxs, hidden_beams = decode_topk(zeros_i, zeros_i, hidden0,
                                           enc_sum, e_part, p, beam_size)
    vals_np, idxs_np = jax.device_get((vals, idxs))              # single host sync

    # live sample: [sequence, pre_scores, fin_scores, ave_scores, hidden_slot]
    samples = []
    final_samples = []
    dead_k = 0
    for index in range(beam_size):
        samples.append([[int(idxs_np[0, index])], float(vals_np[0, index]), 0, 0, 0])

    for _ in range(max_len):
        n_live = len(samples)
        tokens_np = np.zeros((BEAM_PAD,), np.int32)
        parents_np = np.zeros((BEAM_PAD,), np.int32)
        for i, s_ in enumerate(samples):
            tokens_np[i] = s_[0][-1]
            parents_np[i] = s_[4]

        # ONE batched decoder step for all live beams; hidden state stays on device.
        vals, idxs, hidden_new = decode_topk(jnp.asarray(tokens_np), jnp.asarray(parents_np),
                                             hidden_beams, enc_sum, e_part, p, beam_size)
        vals_np, idxs_np = jax.device_get((vals, idxs))          # single host sync per step

        # Candidate expansion, faithful to the reference beamSearchInfer semantics
        # (pre_scores accumulates across k within a parent beam, as written in the reference).
        tmp = []
        for i in range(n_live):
            seq_i, pre = samples[i][0], samples[i][1]
            for k in range(beam_size):
                pre = pre + float(vals_np[i, k])
                fin = pre - (k - 1) * 0.5
                tmp.append([seq_i + [int(idxs_np[i, k])], pre, fin, i])

        # TODO(synk): reference uses a pandas DataFrame for beam bookkeeping; re-implemented
        # host-side with lists (same ave-score recompute / sort / truncate / EOS-drop semantics).
        rows = [[seq_c, pre, fin, fin / len(seq_c), parent] for seq_c, pre, fin, parent in tmp]
        rows.sort(key=lambda r: r[3], reverse=True)
        rows = rows[:beam_size - dead_k]

        hidden_beams = hidden_new
        samples = []
        for seq_c, pre, fin, ave, parent in rows:
            if seq_c[-1] == EOS_TOKEN:
                final_samples.append([seq_c, pre, fin, ave,
                                      hidden_new[parent][None, None, :], enc_sum])
                dead_k += 1
            else:
                samples.append([seq_c, pre, fin, ave, parent])
        if len(samples) == 0:
            break

    if len(final_samples) < beam_size:
        for seq_c, pre, fin, ave, slot in samples[:beam_size - dead_k]:
            final_samples.append([seq_c, pre, fin, ave,
                                  hidden_beams[slot][None, None, :], enc_sum])
    return final_samples


# --------------------------------------------------------------------------- #
# Deterministic synthetic parameters                                           #
# --------------------------------------------------------------------------- #
def make_params(key, src_vocab, trg_vocab, E, H):
    keys = iter(jax.random.split(key, 24))

    def u(shape, scale, dtype=jnp.float32):
        return jax.random.uniform(next(keys), shape, jnp.float32, -scale, scale).astype(dtype)

    s = 1.0 / math.sqrt(H)
    bf = jnp.bfloat16
    p = {}
    p['embed_src'] = u((src_vocab, E), 1.0)
    p['embed_trg'] = u((trg_vocab, E), 1.0)
    # Bidirectional encoder GRU (n_layers = 1); per-direction weights, transposed (x @ W), bf16.
    # Note: keep 3H a multiple of 256 if H is ever scaled (full 256-wide MXU passes on v6e/v7x).
    p['enc_wih'] = u((2, E, 3 * H), s, bf)
    p['enc_whh'] = u((2, H, 3 * H), s, bf)
    p['enc_bih'] = u((2, 1, 3 * H), s)
    p['enc_bhh'] = u((2, 1, 3 * H), s)
    # attention: Linear(2H -> H) split into hidden / encoder halves (+ bias, v vector).
    p['attn_w_hT'] = u((H, H), s, bf)
    p['attn_w_eT'] = u((H, H), s, bf)
    p['attn_b'] = u((1, H), s)
    p['attn_v'] = u((1, H), s)
    # decoder GRU(E+H -> H): input(emb|context) and hidden weights packed into ONE slab.
    p['dec_w'] = jnp.concatenate([u((E, 3 * H), s, bf),        # rows [0, E)       : embedded
                                  u((H, 3 * H), s, bf),        # rows [E, E+H)     : context
                                  u((H, 3 * H), s, bf)],       # rows [E+H, E+2H)  : hidden
                                 axis=0)
    p['dec_b'] = jnp.concatenate([u((1, 3 * H), s), u((1, 3 * H), s)], axis=0)   # [bih; bhh]
    # out: Linear(2H -> V) packed as [gru_out rows | context rows].
    p['out_w'] = jnp.concatenate([u((H, trg_vocab), s, bf), u((H, trg_vocab), s, bf)], axis=0)
    p['out_b'] = u((1, trg_vocab), s)
    return p


if __name__ == "__main__":
    # Small but lane-aligned sizes: embed/hidden = 128 lanes, target vocab = 256 (2 x 128 lanes).
    SRC_V, TRG_V, E, H = 32, 256, 128, 128
    T, B = 8, 1   # beam-search path of the reference module requires batch == 1

    key = jax.random.PRNGKey(0)
    kp, kd = jax.random.split(key)
    params = make_params(kp, SRC_V, TRG_V, E, H)
    src = jax.random.randint(kd, (T, B), 0, SRC_V, dtype=jnp.int32)

    final_samples = seq2seq_forward(src, params, trg=None,
                                    teacher_forcing_ratio=0.5, beam_size=5)

    # Block on the device arrays carried inside the beam results.
    for s_ in final_samples:
        jax.block_until_ready(s_[4])
        jax.block_until_ready(s_[5])

    print("KERNEL_OK")
</pallas_src>

<mosaic_0001>
module attributes {stable_mosaic.version = 11 : i64} {
  func.func @_bigru_fused_kernel(%arg0: memref<8x128xf32, #tpu.memory_space<vmem>>, %arg1: memref<128x768xbf16, #tpu.memory_space<vmem>>, %arg2: memref<128x384xbf16, #tpu.memory_space<vmem>>, %arg3: memref<128x384xbf16, #tpu.memory_space<vmem>>, %arg4: memref<1x768xf32, #tpu.memory_space<vmem>>, %arg5: memref<2x384xf32, #tpu.memory_space<vmem>>, %arg6: memref<8x128xf32, #tpu.memory_space<vmem>>, %arg7: memref<2x128xf32, #tpu.memory_space<vmem>>, %arg8: memref<8x768xf32, #tpu.memory_space<vmem>>, %arg9: memref<8x128xf32, #tpu.memory_space<vmem>>) attributes {dimension_semantics = [], scalar_prefetch = 0 : i64, scratch_operands = 2 : i64, tpu.core_type = #tpu.core_type<tc>} {
    %c0 = arith.constant 0 : index
    %c0_0 = arith.constant 0 : index
    %0 = vector.load %arg0[%c0, %c0_0] : memref<8x128xf32, #tpu.memory_space<vmem>>, vector<8x128xf32>
    %1 = arith.truncf %0 : vector<8x128xf32> to vector<8x128xbf16>
    %c0_1 = arith.constant 0 : index
    %c0_2 = arith.constant 0 : index
    %2 = vector.load %arg1[%c0_1, %c0_2] : memref<128x768xbf16, #tpu.memory_space<vmem>>, vector<128x768xbf16>
    %cst = arith.constant dense<0.000000e+00> : vector<8x768xf32>
    %3 = tpu.matmul %1, %2, %cst {dimension_numbers = #tpu.dot_dimension_numbers<[1], [0], [0], [1], [0, 0, 1, 1], [], []>} : vector<8x128xbf16>, vector<128x768xbf16>, vector<8x768xf32> -> vector<8x768xf32>
    %c0_3 = arith.constant 0 : index
    %c0_4 = arith.constant 0 : index
    %4 = vector.load %arg4[%c0_3, %c0_4] : memref<1x768xf32, #tpu.memory_space<vmem>>, vector<1x768xf32>
    %5 = vector.broadcast %4 : vector<1x768xf32> to vector<8x768xf32>
    %6 = arith.addf %3, %5 : vector<8x768xf32>
    %c0_5 = arith.constant 0 : index
    %c0_6 = arith.constant 0 : index
    %7 = vector.load %arg8[%c0_5, %c0_6] : memref<8x768xf32, #tpu.memory_space<vmem>>, vector<8x768xf32>
    tpu.vector_store %arg8[%c0_5, %c0_6], %6 {strides = array<i32>} : memref<8x768xf32, #tpu.memory_space<vmem>>, vector<8x768xf32>,
    %c0_7 = arith.constant 0 : index
    %c0_8 = arith.constant 0 : index
    %8 = vector.load %arg2[%c0_7, %c0_8] : memref<128x384xbf16, #tpu.memory_space<vmem>>, vector<128x384xbf16>
    %c0_9 = arith.constant 0 : index
    %c0_10 = arith.constant 0 : index
    %9 = vector.load %arg3[%c0_9, %c0_10] : memref<128x384xbf16, #tpu.memory_space<vmem>>, vector<128x384xbf16>
    %c0_11 = arith.constant 0 : index
    %c0_12 = arith.constant 0 : index
    %10 = vector.load %arg5[%c0_11, %c0_12] : memref<2x384xf32, #tpu.memory_space<vmem>>, vector<1x384xf32>
    %c1 = arith.constant 1 : index
    %c0_13 = arith.constant 0 : index
    %11 = vector.load %arg5[%c1, %c0_13] : memref<2x384xf32, #tpu.memory_space<vmem>>, vector<1x384xf32>
    %cst_14 = arith.constant 0.000000e+00 : f32
    %12 = vector.broadcast %cst_14 : f32 to vector<1x128xf32>
    %c0_i32 = arith.constant 0 : i32
    %c7_i32 = arith.constant 7 : i32
    %13 = arith.subi %c7_i32, %c0_i32 : i32
    %14 = arith.index_cast %c0_i32 : i32 to index
    %c0_15 = arith.constant 0 : index
    %15 = vector.load %arg8[%14, %c0_15] : memref<8x768xf32, #tpu.memory_space<vmem>>, vector<1x768xf32>
    %16 = vector.extract_strided_slice %15 {offsets = [0, 0], sizes = [1, 384], strides = [1, 1]} : vector<1x768xf32> to vector<1x384xf32>
    %17 = arith.index_cast %13 : i32 to index
    %c0_16 = arith.constant 0 : index
    %18 = vector.load %arg8[%17, %c0_16] : memref<8x768xf32, #tpu.memory_space<vmem>>, vector<1x768xf32>
    %19 = vector.extract_strided_slice %18 {offsets = [0, 384], sizes = [1, 384], strides = [1, 1]} : vector<1x768xf32> to vector<1x384xf32>
    %20 = arith.truncf %12 : vector<1x128xf32> to vector<1x128xbf16>
    %cst_17 = arith.constant dense<0.000000e+00> : vector<1x384xf32>
    %21 = tpu.matmul %20, %8, %cst_17 {dimension_numbers = #tpu.dot_dimension_numbers<[1], [0], [0], [1], [0, 0, 1, 1], [], []>} : vector<1x128xbf16>, vector<128x384xbf16>, vector<1x384xf32> -> vector<1x384xf32>
    %22 = arith.addf %21, %10 : vector<1x384xf32>
    %23 = arith.truncf %12 : vector<1x128xf32> to vector<1x128xbf16>
    %cst_18 = arith.constant dense<0.000000e+00> : vector<1x384xf32>
    %24 = tpu.matmul %23, %9, %cst_18 {dimension_numbers = #tpu.dot_dimension_numbers<[1], [0], [0], [1], [0, 0, 1, 1], [], []>} : vector<1x128xbf16>, vector<128x384xbf16>, vector<1x384xf32> -> vector<1x384xf32>
    %25 = arith.addf %24, %11 : vector<1x384xf32>
    %26 = vector.extract_strided_slice %16 {offsets = [0, 0], sizes = [1, 128], strides = [1, 1]} : vector<1x384xf32> to vector<1x128xf32>
    %27 = vector.extract_strided_slice %22 {offsets = [0, 0], sizes = [1, 128], strides = [1, 1]} : vector<1x384xf32> to vector<1x128xf32>
    %28 = arith.addf %26, %27 : vector<1x128xf32>
    %29 = arith.negf %28 : vector<1x128xf32>
    %30 = math.exp %29 : vector<1x128xf32>
    %cst_19 = arith.constant 1.000000e+00 : f32
    %31 = vector.broadcast %cst_19 : f32 to vector<1x128xf32>
    %32 = arith.addf %31, %30 : vector<1x128xf32>
    %33 = arith.divf %31, %32 : vector<1x128xf32>
    %34 = vector.extract_strided_slice %16 {offsets = [0, 128], sizes = [1, 128], strides = [1, 1]} : vector<1x384xf32> to vector<1x128xf32>
    %35 = vector.extract_strided_slice %22 {offsets = [0, 128], sizes = [1, 128], strides = [1, 1]} : vector<1x384xf32> to vector<1x128xf32>
    %36 = arith.addf %34, %35 : vector<1x128xf32>
    %37 = arith.negf %36 : vector<1x128xf32>
    %38 = math.exp %37 : vector<1x128xf32>
    %cst_20 = arith.constant 1.000000e+00 : f32
    %39 = vector.broadcast %cst_20 : f32 to vector<1x128xf32>
    %40 = arith.addf %39, %38 : vector<1x128xf32>
    %41 = arith.divf %39, %40 : vector<1x128xf32>
    %42 = vector.extract_strided_slice %16 {offsets = [0, 256], sizes = [1, 128], strides = [1, 1]} : vector<1x384xf32> to vector<1x128xf32>
    %43 = vector.extract_strided_slice %22 {offsets = [0, 256], sizes = [1, 128], strides = [1, 1]} : vector<1x384xf32> to vector<1x128xf32>
    %44 = arith.mulf %33, %43 : vector<1x128xf32>
    %45 = arith.addf %42, %44 : vector<1x128xf32>
    %46 = math.tanh %45 : vector<1x128xf32>
    %cst_21 = arith.constant 1.000000e+00 : f32
    %47 = vector.broadcast %cst_21 : f32 to vector<1x128xf32>
    %48 = arith.subf %47, %41 : vector<1x128xf32>
    %49 = arith.mulf %48, %46 : vector<1x128xf32>
    %50 = arith.mulf %41, %12 : vector<1x128xf32>
    %51 = arith.addf %49, %50 : vector<1x128xf32>
    %52 = vector.extract_strided_slice %19 {offsets = [0, 0], sizes = [1, 128], strides = [1, 1]} : vector<1x384xf32> to vector<1x128xf32>
    %53 = vector.extract_strided_slice %25 {offsets = [0, 0], sizes = [1, 128], strides = [1, 1]} : vector<1x384xf32> to vector<1x128xf32>
    %54 = arith.addf %52, %53 : vector<1x128xf32>
    %55 = arith.negf %54 : vector<1x128xf32>
    %56 = math.exp %55 : vector<1x128xf32>
    %cst_22 = arith.constant 1.000000e+00 : f32
    %57 = vector.broadcast %cst_22 : f32 to vector<1x128xf32>
    %58 = arith.addf %57, %56 : vector<1x128xf32>
    %59 = arith.divf %57, %58 : vector<1x128xf32>
    %60 = vector.extract_strided_slice %19 {offsets = [0, 128], sizes = [1, 128], strides = [1, 1]} : vector<1x384xf32> to vector<1x128xf32>
    %61 = vector.extract_strided_slice %25 {offsets = [0, 128], sizes = [1, 128], strides = [1, 1]} : vector<1x384xf32> to vector<1x128xf32>
    %62 = arith.addf %60, %61 : vector<1x128xf32>
    %63 = arith.negf %62 : vector<1x128xf32>
    %64 = math.exp %63 : vector<1x128xf32>
    %cst_23 = arith.constant 1.000000e+00 : f32
    %65 = vector.broadcast %cst_23 : f32 to vector<1x128xf32>
    %66 = arith.addf %65, %64 : vector<1x128xf32>
    %67 = arith.divf %65, %66 : vector<1x128xf32>
    %68 = vector.extract_strided_slice %19 {offsets = [0, 256], sizes = [1, 128], strides = [1, 1]} : vector<1x384xf32> to vector<1x128xf32>
    %69 = vector.extract_strided_slice %25 {offsets = [0, 256], sizes = [1, 128], strides = [1, 1]} : vector<1x384xf32> to vector<1x128xf32>
    %70 = arith.mulf %59, %69 : vector<1x128xf32>
    %71 = arith.addf %68, %70 : vector<1x128xf32>
    %72 = math.tanh %71 : vector<1x128xf32>
    %cst_24 = arith.constant 1.000000e+00 : f32
    %73 = vector.broadcast %cst_24 : f32 to vector<1x128xf32>
    %74 = arith.subf %73, %67 : vector<1x128xf32>
    %75 = arith.mulf %74, %72 : vector<1x128xf32>
    %76 = arith.mulf %67, %12 : vector<1x128xf32>
    %77 = arith.addf %75, %76 : vector<1x128xf32>
    %78 = arith.index_cast %c0_i32 : i32 to index
    %c0_25 = arith.constant 0 : index
    %79 = vector.load %arg6[%78, %c0_25] : memref<8x128xf32, #tpu.memory_space<vmem>>, vector<1x128xf32>
    tpu.vector_store %arg6[%78, %c0_25], %51 {strides = array<i32>} : memref<8x128xf32, #tpu.memory_space<vmem>>, vector<1x128xf32>,
    %80 = arith.index_cast %13 : i32 to index
    %c0_26 = arith.constant 0 : index
    %81 = vector.load %arg9[%80, %c0_26] : memref<8x128xf32, #tpu.memory_space<vmem>>, vector<1x128xf32>
    tpu.vector_store %arg9[%80, %c0_26], %77 {strides = array<i32>} : memref<8x128xf32, #tpu.memory_space<vmem>>, vector<1x128xf32>,
    %c1_i32 = arith.constant 1 : i32
    %c7_i32_27 = arith.constant 7 : i32
    %82 = arith.subi %c7_i32_27, %c1_i32 : i32
    %83 = arith.index_cast %c1_i32 : i32 to index
    %c0_28 = arith.constant 0 : index
    %84 = vector.load %arg8[%83, %c0_28] : memref<8x768xf32, #tpu.memory_space<vmem>>, vector<1x768xf32>
    %85 = vector.extract_strided_slice %84 {offsets = [0, 0], sizes = [1, 384], strides = [1, 1]} : vector<1x768xf32> to vector<1x384xf32>
    %86 = arith.index_cast %82 : i32 to index
    %c0_29 = arith.constant 0 : index
    %87 = vector.load %arg8[%86, %c0_29] : memref<8x768xf32, #tpu.memory_space<vmem>>, vector<1x768xf32>
    %88 = vector.extract_strided_slice %87 {offsets = [0, 384], sizes = [1, 384], strides = [1, 1]} : vector<1x768xf32> to vector<1x384xf32>
    %89 = arith.truncf %51 : vector<1x128xf32> to vector<1x128xbf16>
    %cst_30 = arith.constant dense<0.000000e+00> : vector<1x384xf32>
    %90 = tpu.matmul %89, %8, %cst_30 {dimension_numbers = #tpu.dot_dimension_numbers<[1], [0], [0], [1], [0, 0, 1, 1], [], []>} : vector<1x128xbf16>, vector<128x384xbf16>, vector<1x384xf32> -> vector<1x384xf32>
    %91 = arith.addf %90, %10 : vector<1x384xf32>
    %92 = arith.truncf %77 : vector<1x128xf32> to vector<1x128xbf16>
    %cst_31 = arith.constant dense<0.000000e+00> : vector<1x384xf32>
    %93 = tpu.matmul %92, %9, %cst_31 {dimension_numbers = #tpu.dot_dimension_numbers<[1], [0], [0], [1], [0, 0, 1, 1], [], []>} : vector<1x128xbf16>, vector<128x384xbf16>, vector<1x384xf32> -> vector<1x384xf32>
    %94 = arith.addf %93, %11 : vector<1x384xf32>
    %95 = vector.extract_strided_slice %85 {offsets = [0, 0], sizes = [1, 128], strides = [1, 1]} : vector<1x384xf32> to vector<1x128xf32>
    %96 = vector.extract_strided_slice %91 {offsets = [0, 0], sizes = [1, 128], strides = [1, 1]} : vector<1x384xf32> to vector<1x128xf32>
    %97 = arith.addf %95, %96 : vector<1x128xf32>
    %98 = arith.negf %97 : vector<1x128xf32>
    %99 = math.exp %98 : vector<1x128xf32>
    %cst_32 = arith.constant 1.000000e+00 : f32
    %100 = vector.broadcast %cst_32 : f32 to vector<1x128xf32>
    %101 = arith.addf %100, %99 : vector<1x128xf32>
    %102 = arith.divf %100, %101 : vector<1x128xf32>
    %103 = vector.extract_strided_slice %85 {offsets = [0, 128], sizes = [1, 128], strides = [1, 1]} : vector<1x384xf32> to vector<1x128xf32>
    %104 = vector.extract_strided_slice %91 {offsets = [0, 128], sizes = [1, 128], strides = [1, 1]} : vector<1x384xf32> to vector<1x128xf32>
    %105 = arith.addf %103, %104 : vector<1x128xf32>
    %106 = arith.negf %105 : vector<1x128xf32>
    %107 = math.exp %106 : vector<1x128xf32>
    %cst_33 = arith.constant 1.000000e+00 : f32
    %108 = vector.broadcast %cst_33 : f32 to vector<1x128xf32>
    %109 = arith.addf %108, %107 : vector<1x128xf32>
    %110 = arith.divf %108, %109 : vector<1x128xf32>
    %111 = vector.extract_strided_slice %85 {offsets = [0, 256], sizes = [1, 128], strides = [1, 1]} : vector<1x384xf32> to vector<1x128xf32>
    %112 = vector.extract_strided_slice %91 {offsets = [0, 256], sizes = [1, 128], strides = [1, 1]} : vector<1x384xf32> to vector<1x128xf32>
    %113 = arith.mulf %102, %112 : vector<1x128xf32>
    %114 = arith.addf %111, %113 : vector<1x128xf32>
    %115 = math.tanh %114 : vector<1x128xf32>
    %cst_34 = arith.constant 1.000000e+00 : f32
    %116 = vector.broadcast %cst_34 : f32 to vector<1x128xf32>
    %117 = arith.subf %116, %110 : vector<1x128xf32>
    %118 = arith.mulf %117, %115 : vector<1x128xf32>
    %119 = arith.mulf %110, %51 : vector<1x128xf32>
    %120 = arith.addf %118, %119 : vector<1x128xf32>
    %121 = vector.extract_strided_slice %88 {offsets = [0, 0], sizes = [1, 128], strides = [1, 1]} : vector<1x384xf32> to vector<1x128xf32>
    %122 = vector.extract_strided_slice %94 {offsets = [0, 0], sizes = [1, 128], strides = [1, 1]} : vector<1x384xf32> to vector<1x128xf32>
    %123 = arith.addf %121, %122 : vector<1x128xf32>
    %124 = arith.negf %123 : vector<1x128xf32>
    %125 = math.exp %124 : vector<1x128xf32>
    %cst_35 = arith.constant 1.000000e+00 : f32
    %126 = vector.broadcast %cst_35 : f32 to vector<1x128xf32>
    %127 = arith.addf %126, %125 : vector<1x128xf32>
    %128 = arith.divf %126, %127 : vector<1x128xf32>
    %129 = vector.extract_strided_slice %88 {offsets = [0, 128], sizes = [1, 128], strides = [1, 1]} : vector<1x384xf32> to vector<1x128xf32>
    %130 = vector.extract_strided_slice %94 {offsets = [0, 128], sizes = [1, 128], strides = [1, 1]} : vector<1x384xf32> to vector<1x128xf32>
    %131 = arith.addf %129, %130 : vector<1x128xf32>
    %132 = arith.negf %131 : vector<1x128xf32>
    %133 = math.exp %132 : vector<1x128xf32>
    %cst_36 = arith.constant 1.000000e+00 : f32
    %134 = vector.broadcast %cst_36 : f32 to vector<1x128xf32>
    %135 = arith.addf %134, %133 : vector<1x128xf32>
    %136 = arith.divf %134, %135 : vector<1x128xf32>
    %137 = vector.extract_strided_slice %88 {offsets = [0, 256], sizes = [1, 128], strides = [1, 1]} : vector<1x384xf32> to vector<1x128xf32>
    %138 = vector.extract_strided_slice %94 {offsets = [0, 256], sizes = [1, 128], strides = [1, 1]} : vector<1x384xf32> to vector<1x128xf32>
    %139 = arith.mulf %128, %138 : vector<1x128xf32>
    %140 = arith.addf %137, %139 : vector<1x128xf32>
    %141 = math.tanh %140 : vector<1x128xf32>
    %cst_37 = arith.constant 1.000000e+00 : f32
    %142 = vector.broadcast %cst_37 : f32 to vector<1x128xf32>
    %143 = arith.subf %142, %136 : vector<1x128xf32>
    %144 = arith.mulf %143, %141 : vector<1x128xf32>
    %145 = arith.mulf %136, %77 : vector<1x128xf32>
    %146 = arith.addf %144, %145 : vector<1x128xf32>
    %147 = arith.index_cast %c1_i32 : i32 to index
    %c0_38 = arith.constant 0 : index
    %148 = vector.load %arg6[%147, %c0_38] : memref<8x128xf32, #tpu.memory_space<vmem>>, vector<1x128xf32>
    tpu.vector_store %arg6[%147, %c0_38], %120 {strides = array<i32>} : memref<8x128xf32, #tpu.memory_space<vmem>>, vector<1x128xf32>,
    %149 = arith.index_cast %82 : i32 to index
    %c0_39 = arith.constant 0 : index
    %150 = vector.load %arg9[%149, %c0_39] : memref<8x128xf32, #tpu.memory_space<vmem>>, vector<1x128xf32>
    tpu.vector_store %arg9[%149, %c0_39], %146 {strides = array<i32>} : memref<8x128xf32, #tpu.memory_space<vmem>>, vector<1x128xf32>,
    %c2_i32 = arith.constant 2 : i32
    %c7_i32_40 = arith.constant 7 : i32
    %151 = arith.subi %c7_i32_40, %c2_i32 : i32
    %152 = arith.index_cast %c2_i32 : i32 to index
    %c0_41 = arith.constant 0 : index
    %153 = vector.load %arg8[%152, %c0_41] : memref<8x768xf32, #tpu.memory_space<vmem>>, vector<1x768xf32>
    %154 = vector.extract_strided_slice %153 {offsets = [0, 0], sizes = [1, 384], strides = [1, 1]} : vector<1x768xf32> to vector<1x384xf32>
    %155 = arith.index_cast %151 : i32 to index
    %c0_42 = arith.constant 0 : index
    %156 = vector.load %arg8[%155, %c0_42] : memref<8x768xf32, #tpu.memory_space<vmem>>, vector<1x768xf32>
    %157 = vector.extract_strided_slice %156 {offsets = [0, 384], sizes = [1, 384], strides = [1, 1]} : vector<1x768xf32> to vector<1x384xf32>
    %158 = arith.truncf %120 : vector<1x128xf32> to vector<1x128xbf16>
    %cst_43 = arith.constant dense<0.000000e+00> : vector<1x384xf32>
    %159 = tpu.matmul %158, %8, %cst_43 {dimension_numbers = #tpu.dot_dimension_numbers<[1], [0], [0], [1], [0, 0, 1, 1], [], []>} : vector<1x128xbf16>, vector<128x384xbf16>, vector<1x384xf32> -> vector<1x384xf32>
    %160 = arith.addf %159, %10 : vector<1x384xf32>
    %161 = arith.truncf %146 : vector<1x128xf32> to vector<1x128xbf16>
    %cst_44 = arith.constant dense<0.000000e+00> : vector<1x384xf32>
    %162 = tpu.matmul %161, %9, %cst_44 {dimension_numbers = #tpu.dot_dimension_numbers<[1], [0], [0], [1], [0, 0, 1, 1], [], []>} : vector<1x128xbf16>, vector<128x384xbf16>, vector<1x384xf32> -> vector<1x384xf32>
    %163 = arith.addf %162, %11 : vector<1x384xf32>
    %164 = vector.extract_strided_slice %154 {offsets = [0, 0], sizes = [1, 128], strides = [1, 1]} : vector<1x384xf32> to vector<1x128xf32>
    %165 = vector.extract_strided_slice %160 {offsets = [0, 0], sizes = [1, 128], strides = [1, 1]} : vector<1x384xf32> to vector<1x128xf32>
    %166 = arith.addf %164, %165 : vector<1x128xf32>
    %167 = arith.negf %166 : vector<1x128xf32>
    %168 = math.exp %167 : vector<1x128xf32>
    %cst_45 = arith.constant 1.000000e+00 : f32
    %169 = vector.broadcast %cst_45 : f32 to vector<1x128xf32>
    %170 = arith.addf %169, %168 : vector<1x128xf32>
    %171 = arith.divf %169, %170 : vector<1x128xf32>
    %172 = vector.extract_strided_slice %154 {offsets = [0, 128], sizes = [1, 128], strides = [1, 1]} : vector<1x384xf32> to vector<1x128xf32>
    %173 = vector.extract_strided_slice %160 {offsets = [0, 128], sizes = [1, 128], strides = [1, 1]} : vector<1x384xf32> to vector<1x128xf32>
    %174 = arith.addf %172, %173 : vector<1x128xf32>
    %175 = arith.negf %174 : vector<1x128xf32>
    %176 = math.exp %175 : vector<1x128xf32>
    %cst_46 = arith.constant 1.000000e+00 : f32
    %177 = vector.broadcast %cst_46 : f32 to vector<1x128xf32>
    %178 = arith.addf %177, %176 : vector<1x128xf32>
    %179 = arith.divf %177, %178 : vector<1x128xf32>
    %180 = vector.extract_strided_slice %154 {offsets = [0, 256], sizes = [1, 128], strides = [1, 1]} : vector<1x384xf32> to vector<1x128xf32>
    %181 = vector.extract_strided_slice %160 {offsets = [0, 256], sizes = [1, 128], strides = [1, 1]} : vector<1x384xf32> to vector<1x128xf32>
    %182 = arith.mulf %171, %181 : vector<1x128xf32>
    %183 = arith.addf %180, %182 : vector<1x128xf32>
    %184 = math.tanh %183 : vector<1x128xf32>
    %cst_47 = arith.constant 1.000000e+00 : f32
    %185 = vector.broadcast %cst_47 : f32 to vector<1x128xf32>
    %186 = arith.subf %185, %179 : vector<1x128xf32>
    %187 = arith.mulf %186, %184 : vector<1x128xf32>
    %188 = arith.mulf %179, %120 : vector<1x128xf32>
    %189 = arith.addf %187, %188 : vector<1x128xf32>
    %190 = vector.extract_strided_slice %157 {offsets = [0, 0], sizes = [1, 128], strides = [1, 1]} : vector<1x384xf32> to vector<1x128xf32>
    %191 = vector.extract_strided_slice %163 {offsets = [0, 0], sizes = [1, 128], strides = [1, 1]} : vector<1x384xf32> to vector<1x128xf32>
    %192 = arith.addf %190, %191 : vector<1x128xf32>
    %193 = arith.negf %192 : vector<1x128xf32>
    %194 = math.exp %193 : vector<1x128xf32>
    %cst_48 = arith.constant 1.000000e+00 : f32
    %195 = vector.broadcast %cst_48 : f32 to vector<1x128xf32>
    %196 = arith.addf %195, %194 : vector<1x128xf32>
    %197 = arith.divf %195, %196 : vector<1x128xf32>
    %198 = vector.extract_strided_slice %157 {offsets = [0, 128], sizes = [1, 128], strides = [1, 1]} : vector<1x384xf32> to vector<1x128xf32>
    %199 = vector.extract_strided_slice %163 {offsets = [0, 128], sizes = [1, 128], strides = [1, 1]} : vector<1x384xf32> to vector<1x128xf32>
    %200 = arith.addf %198, %199 : vector<1x128xf32>
    %201 = arith.negf %200 : vector<1x128xf32>
    %202 = math.exp %201 : vector<1x128xf32>
    %cst_49 = arith.constant 1.000000e+00 : f32
    %203 = vector.broadcast %cst_49 : f32 to vector<1x128xf32>
    %204 = arith.addf %203, %202 : vector<1x128xf32>
    %205 = arith.divf %203, %204 : vector<1x128xf32>
    %206 = vector.extract_strided_slice %157 {offsets = [0, 256], sizes = [1, 128], strides = [1, 1]} : vector<1x384xf32> to vector<1x128xf32>
    %207 = vector.extract_strided_slice %163 {offsets = [0, 256], sizes = [1, 128], strides = [1, 1]} : vector<1x384xf32> to vector<1x128xf32>
    %208 = arith.mulf %197, %207 : vector<1x128xf32>
    %209 = arith.addf %206, %208 : vector<1x128xf32>
    %210 = math.tanh %209 : vector<1x128xf32>
    %cst_50 = arith.constant 1.000000e+00 : f32
    %211 = vector.broadcast %cst_50 : f32 to vector<1x128xf32>
    %212 = arith.subf %211, %205 : vector<1x128xf32>
    %213 = arith.mulf %212, %210 : vector<1x128xf32>
    %214 = arith.mulf %205, %146 : vector<1x128xf32>
    %215 = arith.addf %213, %214 : vector<1x128xf32>
    %216 = arith.index_cast %c2_i32 : i32 to index
    %c0_51 = arith.constant 0 : index
    %217 = vector.load %arg6[%216, %c0_51] : memref<8x128xf32, #tpu.memory_space<vmem>>, vector<1x128xf32>
    tpu.vector_store %arg6[%216, %c0_51], %189 {strides = array<i32>} : memref<8x128xf32, #tpu.memory_space<vmem>>, vector<1x128xf32>,
    %218 = arith.index_cast %151 : i32 to index
    %c0_52 = arith.constant 0 : index
    %219 = vector.load %arg9[%218, %c0_52] : memref<8x128xf32, #tpu.memory_space<vmem>>, vector<1x128xf32>
    tpu.vector_store %arg9[%218, %c0_52], %215 {strides = array<i32>} : memref<8x128xf32, #tpu.memory_space<vmem>>, vector<1x128xf32>,
    %c3_i32 = arith.constant 3 : i32
    %c7_i32_53 = arith.constant 7 : i32
    %220 = arith.subi %c7_i32_53, %c3_i32 : i32
    %221 = arith.index_cast %c3_i32 : i32 to index
    %c0_54 = arith.constant 0 : index
    %222 = vector.load %arg8[%221, %c0_54] : memref<8x768xf32, #tpu.memory_space<vmem>>, vector<1x768xf32>
    %223 = vector.extract_strided_slice %222 {offsets = [0, 0], sizes = [1, 384], strides = [1, 1]} : vector<1x768xf32> to vector<1x384xf32>
    %224 = arith.index_cast %220 : i32 to index
    %c0_55 = arith.constant 0 : index
    %225 = vector.load %arg8[%224, %c0_55] : memref<8x768xf32, #tpu.memory_space<vmem>>, vector<1x768xf32>
    %226 = vector.extract_strided_slice %225 {offsets = [0, 384], sizes = [1, 384], strides = [1, 1]} : vector<1x768xf32> to vector<1x384xf32>
    %227 = arith.truncf %189 : vector<1x128xf32> to vector<1x128xbf16>
    %cst_56 = arith.constant dense<0.000000e+00> : vector<1x384xf32>
    %228 = tpu.matmul %227, %8, %cst_56 {dimension_numbers = #tpu.dot_dimension_numbers<[1], [0], [0], [1], [0, 0, 1, 1], [], []>} : vector<1x128xbf16>, vector<128x384xbf16>, vector<1x384xf32> -> vector<1x384xf32>
    %229 = arith.addf %228, %10 : vector<1x384xf32>
    %230 = arith.truncf %215 : vector<1x128xf32> to vector<1x128xbf16>
    %cst_57 = arith.constant dense<0.000000e+00> : vector<1x384xf32>
    %231 = tpu.matmul %230, %9, %cst_57 {dimension_numbers = #tpu.dot_dimension_numbers<[1], [0], [0], [1], [0, 0, 1, 1], [], []>} : vector<1x128xbf16>, vector<128x384xbf16>, vector<1x384xf32> -> vector<1x384xf32>
    %232 = arith.addf %231, %11 : vector<1x384xf32>
    %233 = vector.extract_strided_slice %223 {offsets = [0, 0], sizes = [1, 128], strides = [1, 1]} : vector<1x384xf32> to vector<1x128xf32>
    %234 = vector.extract_strided_slice %229 {offsets = [0, 0], sizes = [1, 128], strides = [1, 1]} : vector<1x384xf32> to vector<1x128xf32>
    %235 = arith.addf %233, %234 : vector<1x128xf32>
    %236 = arith.negf %235 : vector<1x128xf32>
    %237 = math.exp %236 : vector<1x128xf32>
    %cst_58 = arith.constant 1.000000e+00 : f32
    %238 = vector.broadcast %cst_58 : f32 to vector<1x128xf32>
    %239 = arith.addf %238, %237 : vector<1x128xf32>
    %240 = arith.divf %238, %239 : vector<1x128xf32>
    %241 = vector.extract_strided_slice %223 {offsets = [0, 128], sizes = [1, 128], strides = [1, 1]} : vector<1x384xf32> to vector<1x128xf32>
    %242 = vector.extract_strided_slice %229 {offsets = [0, 128], sizes = [1, 128], strides = [1, 1]} : vector<1x384xf32> to vector<1x128xf32>
    %243 = arith.addf %241, %242 : vector<1x128xf32>
    %244 = arith.negf %243 : vector<1x128xf32>
    %245 = math.exp %244 : vector<1x128xf32>
    %cst_59 = arith.constant 1.000000e+00 : f32
    %246 = vector.broadcast %cst_59 : f32 to vector<1x128xf32>
    %247 = arith.addf %246, %245 : vector<1x128xf32>
    %248 = arith.divf %246, %247 : vector<1x128xf32>
    %249 = vector.extract_strided_slice %223 {offsets = [0, 256], sizes = [1, 128], strides = [1, 1]} : vector<1x384xf32> to vector<1x128xf32>
    %250 = vector.extract_strided_slice %229 {offsets = [0, 256], sizes = [1, 128], strides = [1, 1]} : vector<1x384xf32> to vector<1x128xf32>
    %251 = arith.mulf %240, %250 : vector<1x128xf32>
    %252 = arith.addf %249, %251 : vector<1x128xf32>
    %253 = math.tanh %252 : vector<1x128xf32>
    %cst_60 = arith.constant 1.000000e+00 : f32
    %254 = vector.broadcast %cst_60 : f32 to vector<1x128xf32>
    %255 = arith.subf %254, %248 : vector<1x128xf32>
    %256 = arith.mulf %255, %253 : vector<1x128xf32>
    %257 = arith.mulf %248, %189 : vector<1x128xf32>
    %258 = arith.addf %256, %257 : vector<1x128xf32>
    %259 = vector.extract_strided_slice %226 {offsets = [0, 0], sizes = [1, 128], strides = [1, 1]} : vector<1x384xf32> to vector<1x128xf32>
    %260 = vector.extract_strided_slice %232 {offsets = [0, 0], sizes = [1, 128], strides = [1, 1]} : vector<1x384xf32> to vector<1x128xf32>
    %261 = arith.addf %259, %260 : vector<1x128xf32>
    %262 = arith.negf %261 : vector<1x128xf32>
    %263 = math.exp %262 : vector<1x128xf32>
    %cst_61 = arith.constant 1.000000e+00 : f32
    %264 = vector.broadcast %cst_61 : f32 to vector<1x128xf32>
    %265 = arith.addf %264, %263 : vector<1x128xf32>
    %266 = arith.divf %264, %265 : vector<1x128xf32>
    %267 = vector.extract_strided_slice %226 {offsets = [0, 128], sizes = [1, 128], strides = [1, 1]} : vector<1x384xf32> to vector<1x128xf32>
    %268 = vector.extract_strided_slice %232 {offsets = [0, 128], sizes = [1, 128], strides = [1, 1]} : vector<1x384xf32> to vector<1x128xf32>
    %269 = arith.addf %267, %268 : vector<1x128xf32>
    %270 = arith.negf %269 : vector<1x128xf32>
    %271 = math.exp %270 : vector<1x128xf32>
    %cst_62 = arith.constant 1.000000e+00 : f32
    %272 = vector.broadcast %cst_62 : f32 to vector<1x128xf32>
    %273 = arith.addf %272, %271 : vector<1x128xf32>
    %274 = arith.divf %272, %273 : vector<1x128xf32>
    %275 = vector.extract_strided_slice %226 {offsets = [0, 256], sizes = [1, 128], strides = [1, 1]} : vector<1x384xf32> to vector<1x128xf32>
    %276 = vector.extract_strided_slice %232 {offsets = [0, 256], sizes = [1, 128], strides = [1, 1]} : vector<1x384xf32> to vector<1x128xf32>
    %277 = arith.mulf %266, %276 : vector<1x128xf32>
    %278 = arith.addf %275, %277 : vector<1x128xf32>
    %279 = math.tanh %278 : vector<1x128xf32>
    %cst_63 = arith.constant 1.000000e+00 : f32
    %280 = vector.broadcast %cst_63 : f32 to vector<1x128xf32>
    %281 = arith.subf %280, %274 : vector<1x128xf32>
    %282 = arith.mulf %281, %279 : vector<1x128xf32>
    %283 = arith.mulf %274, %215 : vector<1x128xf32>
    %284 = arith.addf %282, %283 : vector<1x128xf32>
    %285 = arith.index_cast %c3_i32 : i32 to index
    %c0_64 = arith.constant 0 : index
    %286 = vector.load %arg6[%285, %c0_64] : memref<8x128xf32, #tpu.memory_space<vmem>>, vector<1x128xf32>
    tpu.vector_store %arg6[%285, %c0_64], %258 {strides = array<i32>} : memref<8x128xf32, #tpu.memory_space<vmem>>, vector<1x128xf32>,
    %287 = arith.index_cast %220 : i32 to index
    %c0_65 = arith.constant 0 : index
    %288 = vector.load %arg9[%287, %c0_65] : memref<8x128xf32, #tpu.memory_space<vmem>>, vector<1x128xf32>
    tpu.vector_store %arg9[%287, %c0_65], %284 {strides = array<i32>} : memref<8x128xf32, #tpu.memory_space<vmem>>, vector<1x128xf32>,
    %c4_i32 = arith.constant 4 : i32
    %c7_i32_66 = arith.constant 7 : i32
    %289 = arith.subi %c7_i32_66, %c4_i32 : i32
    %290 = arith.index_cast %c4_i32 : i32 to index
    %c0_67 = arith.constant 0 : index
    %291 = vector.load %arg8[%290, %c0_67] : memref<8x768xf32, #tpu.memory_space<vmem>>, vector<1x768xf32>
    %292 = vector.extract_strided_slice %291 {offsets = [0, 0], sizes = [1, 384], strides = [1, 1]} : vector<1x768xf32> to vector<1x384xf32>
    %293 = arith.index_cast %289 : i32 to index
    %c0_68 = arith.constant 0 : index
    %294 = vector.load %arg8[%293, %c0_68] : memref<8x768xf32, #tpu.memory_space<vmem>>, vector<1x768xf32>
    %295 = vector.extract_strided_slice %294 {offsets = [0, 384], sizes = [1, 384], strides = [1, 1]} : vector<1x768xf32> to vector<1x384xf32>
    %296 = arith.truncf %258 : vector<1x128xf32> to vector<1x128xbf16>
    %cst_69 = arith.constant dense<0.000000e+00> : vector<1x384xf32>
    %297 = tpu.matmul %296, %8, %cst_69 {dimension_numbers = #tpu.dot_dimension_numbers<[1], [0], [0], [1], [0, 0, 1, 1], [], []>} : vector<1x128xbf16>, vector<128x384xbf16>, vector<1x384xf32> -> vector<1x384xf32>
    %298 = arith.addf %297, %10 : vector<1x384xf32>
    %299 = arith.truncf %284 : vector<1x128xf32> to vector<1x128xbf16>
    %cst_70 = arith.constant dense<0.000000e+00> : vector<1x384xf32>
    %300 = tpu.matmul %299, %9, %cst_70 {dimension_numbers = #tpu.dot_dimension_numbers<[1], [0], [0], [1], [0, 0, 1, 1], [], []>} : vector<1x128xbf16>, vector<128x384xbf16>, vector<1x384xf32> -> vector<1x384xf32>
    %301 = arith.addf %300, %11 : vector<1x384xf32>
    %302 = vector.extract_strided_slice %292 {offsets = [0, 0], sizes = [1, 128], strides = [1, 1]} : vector<1x384xf32> to vector<1x128xf32>
    %303 = vector.extract_strided_slice %298 {offsets = [0, 0], sizes = [1, 128], strides = [1, 1]} : vector<1x384xf32> to vector<1x128xf32>
    %304 = arith.addf %302, %303 : vector<1x128xf32>
    %305 = arith.negf %304 : vector<1x128xf32>
    %306 = math.exp %305 : vector<1x128xf32>
    %cst_71 = arith.constant 1.000000e+00 : f32
    %307 = vector.broadcast %cst_71 : f32 to vector<1x128xf32>
    %308 = arith.addf %307, %306 : vector<1x128xf32>
    %309 = arith.divf %307, %308 : vector<1x128xf32>
    %310 = vector.extract_strided_slice %292 {offsets = [0, 128], sizes = [1, 128], strides = [1, 1]} : vector<1x384xf32> to vector<1x128xf32>
    %311 = vector.extract_strided_slice %298 {offsets = [0, 128], sizes = [1, 128], strides = [1, 1]} : vector<1x384xf32> to vector<1x128xf32>
    %312 = arith.addf %310, %311 : vector<1x128xf32>
    %313 = arith.negf %312 : vector<1x128xf32>
    %314 = math.exp %313 : vector<1x128xf32>
    %cst_72 = arith.constant 1.000000e+00 : f32
    %315 = vector.broadcast %cst_72 : f32 to vector<1x128xf32>
    %316 = arith.addf %315, %314 : vector<1x128xf32>
    %317 = arith.divf %315, %316 : vector<1x128xf32>
    %318 = vector.extract_strided_slice %292 {offsets = [0, 256], sizes = [1, 128], strides = [1, 1]} : vector<1x384xf32> to vector<1x128xf32>
    %319 = vector.extract_strided_slice %298 {offsets = [0, 256], sizes = [1, 128], strides = [1, 1]} : vector<1x384xf32> to vector<1x128xf32>
    %320 = arith.mulf %309, %319 : vector<1x128xf32>
    %321 = arith.addf %318, %320 : vector<1x128xf32>
    %322 = math.tanh %321 : vector<1x128xf32>
    %cst_73 = arith.constant 1.000000e+00 : f32
    %323 = vector.broadcast %cst_73 : f32 to vector<1x128xf32>
    %324 = arith.subf %323, %317 : vector<1x128xf32>
    %325 = arith.mulf %324, %322 : vector<1x128xf32>
    %326 = arith.mulf %317, %258 : vector<1x128xf32>
    %327 = arith.addf %325, %326 : vector<1x128xf32>
    %328 = vector.extract_strided_slice %295 {offsets = [0, 0], sizes = [1, 128], strides = [1, 1]} : vector<1x384xf32> to vector<1x128xf32>
    %329 = vector.extract_strided_slice %301 {offsets = [0, 0], sizes = [1, 128], strides = [1, 1]} : vector<1x384xf32> to vector<1x128xf32>
    %330 = arith.addf %328, %329 : vector<1x128xf32>
    %331 = arith.negf %330 : vector<1x128xf32>
    %332 = math.exp %331 : vector<1x128xf32>
    %cst_74 = arith.constant 1.000000e+00 : f32
    %333 = vector.broadcast %cst_74 : f32 to vector<1x128xf32>
    %334 = arith.addf %333, %332 : vector<1x128xf32>
    %335 = arith.divf %333, %334 : vector<1x128xf32>
    %336 = vector.extract_strided_slice %295 {offsets = [0, 128], sizes = [1, 128], strides = [1, 1]} : vector<1x384xf32> to vector<1x128xf32>
    %337 = vector.extract_strided_slice %301 {offsets = [0, 128], sizes = [1, 128], strides = [1, 1]} : vector<1x384xf32> to vector<1x128xf32>
    %338 = arith.addf %336, %337 : vector<1x128xf32>
    %339 = arith.negf %338 : vector<1x128xf32>
    %340 = math.exp %339 : vector<1x128xf32>
    %cst_75 = arith.constant 1.000000e+00 : f32
    %341 = vector.broadcast %cst_75 : f32 to vector<1x128xf32>
    %342 = arith.addf %341, %340 : vector<1x128xf32>
    %343 = arith.divf %341, %342 : vector<1x128xf32>
    %344 = vector.extract_strided_slice %295 {offsets = [0, 256], sizes = [1, 128], strides = [1, 1]} : vector<1x384xf32> to vector<1x128xf32>
    %345 = vector.extract_strided_slice %301 {offsets = [0, 256], sizes = [1, 128], strides = [1, 1]} : vector<1x384xf32> to vector<1x128xf32>
    %346 = arith.mulf %335, %345 : vector<1x128xf32>
    %347 = arith.addf %344, %346 : vector<1x128xf32>
    %348 = math.tanh %347 : vector<1x128xf32>
    %cst_76 = arith.constant 1.000000e+00 : f32
    %349 = vector.broadcast %cst_76 : f32 to vector<1x128xf32>
    %350 = arith.subf %349, %343 : vector<1x128xf32>
    %351 = arith.mulf %350, %348 : vector<1x128xf32>
    %352 = arith.mulf %343, %284 : vector<1x128xf32>
    %353 = arith.addf %351, %352 : vector<1x128xf32>
    %354 = arith.index_cast %c4_i32 : i32 to index
    %c0_77 = arith.constant 0 : index
    %355 = vector.load %arg6[%354, %c0_77] : memref<8x128xf32, #tpu.memory_space<vmem>>, vector<1x128xf32>
    tpu.vector_store %arg6[%354, %c0_77], %327 {strides = array<i32>} : memref<8x128xf32, #tpu.memory_space<vmem>>, vector<1x128xf32>,
    %356 = arith.index_cast %289 : i32 to index
    %c0_78 = arith.constant 0 : index
    %357 = vector.load %arg9[%356, %c0_78] : memref<8x128xf32, #tpu.memory_space<vmem>>, vector<1x128xf32>
    tpu.vector_store %arg9[%356, %c0_78], %353 {strides = array<i32>} : memref<8x128xf32, #tpu.memory_space<vmem>>, vector<1x128xf32>,
    %c5_i32 = arith.constant 5 : i32
    %c7_i32_79 = arith.constant 7 : i32
    %358 = arith.subi %c7_i32_79, %c5_i32 : i32
    %359 = arith.index_cast %c5_i32 : i32 to index
    %c0_80 = arith.constant 0 : index
    %360 = vector.load %arg8[%359, %c0_80] : memref<8x768xf32, #tpu.memory_space<vmem>>, vector<1x768xf32>
    %361 = vector.extract_strided_slice %360 {offsets = [0, 0], sizes = [1, 384], strides = [1, 1]} : vector<1x768xf32> to vector<1x384xf32>
    %362 = arith.index_cast %358 : i32 to index
    %c0_81 = arith.constant 0 : index
    %363 = vector.load %arg8[%362, %c0_81] : memref<8x768xf32, #tpu.memory_space<vmem>>, vector<1x768xf32>
    %364 = vector.extract_strided_slice %363 {offsets = [0, 384], sizes = [1, 384], strides = [1, 1]} : vector<1x768xf32> to vector<1x384xf32>
    %365 = arith.truncf %327 : vector<1x128xf32> to vector<1x128xbf16>
    %cst_82 = arith.constant dense<0.000000e+00> : vector<1x384xf32>
    %366 = tpu.matmul %365, %8, %cst_82 {dimension_numbers = #tpu.dot_dimension_numbers<[1], [0], [0], [1], [0, 0, 1, 1], [], []>} : vector<1x128xbf16>, vector<128x384xbf16>, vector<1x384xf32> -> vector<1x384xf32>
    %367 = arith.addf %366, %10 : vector<1x384xf32>
    %368 = arith.truncf %353 : vector<1x128xf32> to vector<1x128xbf16>
    %cst_83 = arith.constant dense<0.000000e+00> : vector<1x384xf32>
    %369 = tpu.matmul %368, %9, %cst_83 {dimension_numbers = #tpu.dot_dimension_numbers<[1], [0], [0], [1], [0, 0, 1, 1], [], []>} : vector<1x128xbf16>, vector<128x384xbf16>, vector<1x384xf32> -> vector<1x384xf32>
    %370 = arith.addf %369, %11 : vector<1x384xf32>
    %371 = vector.extract_strided_slice %361 {offsets = [0, 0], sizes = [1, 128], strides = [1, 1]} : vector<1x384xf32> to vector<1x128xf32>
    %372 = vector.extract_strided_slice %367 {offsets = [0, 0], sizes = [1, 128], strides = [1, 1]} : vector<1x384xf32> to vector<1x128xf32>
    %373 = arith.addf %371, %372 : vector<1x128xf32>
    %374 = arith.negf %373 : vector<1x128xf32>
    %375 = math.exp %374 : vector<1x128xf32>
    %cst_84 = arith.constant 1.000000e+00 : f32
    %376 = vector.broadcast %cst_84 : f32 to vector<1x128xf32>
    %377 = arith.addf %376, %375 : vector<1x128xf32>
    %378 = arith.divf %376, %377 : vector<1x128xf32>
    %379 = vector.extract_strided_slice %361 {offsets = [0, 128], sizes = [1, 128], strides = [1, 1]} : vector<1x384xf32> to vector<1x128xf32>
    %380 = vector.extract_strided_slice %367 {offsets = [0, 128], sizes = [1, 128], strides = [1, 1]} : vector<1x384xf32> to vector<1x128xf32>
    %381 = arith.addf %379, %380 : vector<1x128xf32>
    %382 = arith.negf %381 : vector<1x128xf32>
    %383 = math.exp %382 : vector<1x128xf32>
    %cst_85 = arith.constant 1.000000e+00 : f32
    %384 = vector.broadcast %cst_85 : f32 to vector<1x128xf32>
    %385 = arith.addf %384, %383 : vector<1x128xf32>
    %386 = arith.divf %384, %385 : vector<1x128xf32>
    %387 = vector.extract_strided_slice %361 {offsets = [0, 256], sizes = [1, 128], strides = [1, 1]} : vector<1x384xf32> to vector<1x128xf32>
    %388 = vector.extract_strided_slice %367 {offsets = [0, 256], sizes = [1, 128], strides = [1, 1]} : vector<1x384xf32> to vector<1x128xf32>
    %389 = arith.mulf %378, %388 : vector<1x128xf32>
    %390 = arith.addf %387, %389 : vector<1x128xf32>
    %391 = math.tanh %390 : vector<1x128xf32>
    %cst_86 = arith.constant 1.000000e+00 : f32
    %392 = vector.broadcast %cst_86 : f32 to vector<1x128xf32>
    %393 = arith.subf %392, %386 : vector<1x128xf32>
    %394 = arith.mulf %393, %391 : vector<1x128xf32>
    %395 = arith.mulf %386, %327 : vector<1x128xf32>
    %396 = arith.addf %394, %395 : vector<1x128xf32>
    %397 = vector.extract_strided_slice %364 {offsets = [0, 0], sizes = [1, 128], strides = [1, 1]} : vector<1x384xf32> to vector<1x128xf32>
    %398 = vector.extract_strided_slice %370 {offsets = [0, 0], sizes = [1, 128], strides = [1, 1]} : vector<1x384xf32> to vector<1x128xf32>
    %399 = arith.addf %397, %398 : vector<1x128xf32>
    %400 = arith.negf %399 : vector<1x128xf32>
    %401 = math.exp %400 : vector<1x128xf32>
    %cst_87 = arith.constant 1.000000e+00 : f32
    %402 = vector.broadcast %cst_87 : f32 to vector<1x128xf32>
    %403 = arith.addf %402, %401 : vector<1x128xf32>
    %404 = arith.divf %402, %403 : vector<1x128xf32>
    %405 = vector.extract_strided_slice %364 {offsets = [0, 128], sizes = [1, 128], strides = [1, 1]} : vector<1x384xf32> to vector<1x128xf32>
    %406 = vector.extract_strided_slice %370 {offsets = [0, 128], sizes = [1, 128], strides = [1, 1]} : vector<1x384xf32> to vector<1x128xf32>
    %407 = arith.addf %405, %406 : vector<1x128xf32>
    %408 = arith.negf %407 : vector<1x128xf32>
    %409 = math.exp %408 : vector<1x128xf32>
    %cst_88 = arith.constant 1.000000e+00 : f32
    %410 = vector.broadcast %cst_88 : f32 to vector<1x128xf32>
    %411 = arith.addf %410, %409 : vector<1x128xf32>
    %412 = arith.divf %410, %411 : vector<1x128xf32>
    %413 = vector.extract_strided_slice %364 {offsets = [0, 256], sizes = [1, 128], strides = [1, 1]} : vector<1x384xf32> to vector<1x128xf32>
    %414 = vector.extract_strided_slice %370 {offsets = [0, 256], sizes = [1, 128], strides = [1, 1]} : vector<1x384xf32> to vector<1x128xf32>
    %415 = arith.mulf %404, %414 : vector<1x128xf32>
    %416 = arith.addf %413, %415 : vector<1x128xf32>
    %417 = math.tanh %416 : vector<1x128xf32>
    %cst_89 = arith.constant 1.000000e+00 : f32
    %418 = vector.broadcast %cst_89 : f32 to vector<1x128xf32>
    %419 = arith.subf %418, %412 : vector<1x128xf32>
    %420 = arith.mulf %419, %417 : vector<1x128xf32>
    %421 = arith.mulf %412, %353 : vector<1x128xf32>
    %422 = arith.addf %420, %421 : vector<1x128xf32>
    %423 = arith.index_cast %c5_i32 : i32 to index
    %c0_90 = arith.constant 0 : index
    %424 = vector.load %arg6[%423, %c0_90] : memref<8x128xf32, #tpu.memory_space<vmem>>, vector<1x128xf32>
    tpu.vector_store %arg6[%423, %c0_90], %396 {strides = array<i32>} : memref<8x128xf32, #tpu.memory_space<vmem>>, vector<1x128xf32>,
    %425 = arith.index_cast %358 : i32 to index
    %c0_91 = arith.constant 0 : index
    %426 = vector.load %arg9[%425, %c0_91] : memref<8x128xf32, #tpu.memory_space<vmem>>, vector<1x128xf32>
    tpu.vector_store %arg9[%425, %c0_91], %422 {strides = array<i32>} : memref<8x128xf32, #tpu.memory_space<vmem>>, vector<1x128xf32>,
    %c6_i32 = arith.constant 6 : i32
    %c7_i32_92 = arith.constant 7 : i32
    %427 = arith.subi %c7_i32_92, %c6_i32 : i32
    %428 = arith.index_cast %c6_i32 : i32 to index
    %c0_93 = arith.constant 0 : index
    %429 = vector.load %arg8[%428, %c0_93] : memref<8x768xf32, #tpu.memory_space<vmem>>, vector<1x768xf32>
    %430 = vector.extract_strided_slice %429 {offsets = [0, 0], sizes = [1, 384], strides = [1, 1]} : vector<1x768xf32> to vector<1x384xf32>
    %431 = arith.index_cast %427 : i32 to index
    %c0_94 = arith.constant 0 : index
    %432 = vector.load %arg8[%431, %c0_94] : memref<8x768xf32, #tpu.memory_space<vmem>>, vector<1x768xf32>
    %433 = vector.extract_strided_slice %432 {offsets = [0, 384], sizes = [1, 384], strides = [1, 1]} : vector<1x768xf32> to vector<1x384xf32>
    %434 = arith.truncf %396 : vector<1x128xf32> to vector<1x128xbf16>
    %cst_95 = arith.constant dense<0.000000e+00> : vector<1x384xf32>
    %435 = tpu.matmul %434, %8, %cst_95 {dimension_numbers = #tpu.dot_dimension_numbers<[1], [0], [0], [1], [0, 0, 1, 1], [], []>} : vector<1x128xbf16>, vector<128x384xbf16>, vector<1x384xf32> -> vector<1x384xf32>
    %436 = arith.addf %435, %10 : vector<1x384xf32>
    %437 = arith.truncf %422 : vector<1x128xf32> to vector<1x128xbf16>
    %cst_96 = arith.constant dense<0.000000e+00> : vector<1x384xf32>
    %438 = tpu.matmul %437, %9, %cst_96 {dimension_numbers = #tpu.dot_dimension_numbers<[1], [0], [0], [1], [0, 0, 1, 1], [], []>} : vector<1x128xbf16>, vector<128x384xbf16>, vector<1x384xf32> -> vector<1x384xf32>
    %439 = arith.addf %438, %11 : vector<1x384xf32>
    %440 = vector.extract_strided_slice %430 {offsets = [0, 0], sizes = [1, 128], strides = [1, 1]} : vector<1x384xf32> to vector<1x128xf32>
    %441 = vector.extract_strided_slice %436 {offsets = [0, 0], sizes = [1, 128], strides = [1, 1]} : vector<1x384xf32> to vector<1x128xf32>
    %442 = arith.addf %440, %441 : vector<1x128xf32>
    %443 = arith.negf %442 : vector<1x128xf32>
    %444 = math.exp %443 : vector<1x128xf32>
    %cst_97 = arith.constant 1.000000e+00 : f32
    %445 = vector.broadcast %cst_97 : f32 to vector<1x128xf32>
    %446 = arith.addf %445, %444 : vector<1x128xf32>
    %447 = arith.divf %445, %446 : vector<1x128xf32>
    %448 = vector.extract_strided_slice %430 {offsets = [0, 128], sizes = [1, 128], strides = [1, 1]} : vector<1x384xf32> to vector<1x128xf32>
    %449 = vector.extract_strided_slice %436 {offsets = [0, 128], sizes = [1, 128], strides = [1, 1]} : vector<1x384xf32> to vector<1x128xf32>
    %450 = arith.addf %448, %449 : vector<1x128xf32>
    %451 = arith.negf %450 : vector<1x128xf32>
    %452 = math.exp %451 : vector<1x128xf32>
    %cst_98 = arith.constant 1.000000e+00 : f32
    %453 = vector.broadcast %cst_98 : f32 to vector<1x128xf32>
    %454 = arith.addf %453, %452 : vector<1x128xf32>
    %455 = arith.divf %453, %454 : vector<1x128xf32>
    %456 = vector.extract_strided_slice %430 {offsets = [0, 256], sizes = [1, 128], strides = [1, 1]} : vector<1x384xf32> to vector<1x128xf32>
    %457 = vector.extract_strided_slice %436 {offsets = [0, 256], sizes = [1, 128], strides = [1, 1]} : vector<1x384xf32> to vector<1x128xf32>
    %458 = arith.mulf %447, %457 : vector<1x128xf32>
    %459 = arith.addf %456, %458 : vector<1x128xf32>
    %460 = math.tanh %459 : vector<1x128xf32>
    %cst_99 = arith.constant 1.000000e+00 : f32
    %461 = vector.broadcast %cst_99 : f32 to vector<1x128xf32>
    %462 = arith.subf %461, %455 : vector<1x128xf32>
    %463 = arith.mulf %462, %460 : vector<1x128xf32>
    %464 = arith.mulf %455, %396 : vector<1x128xf32>
    %465 = arith.addf %463, %464 : vector<1x128xf32>
    %466 = vector.extract_strided_slice %433 {offsets = [0, 0], sizes = [1, 128], strides = [1, 1]} : vector<1x384xf32> to vector<1x128xf32>
    %467 = vector.extract_strided_slice %439 {offsets = [0, 0], sizes = [1, 128], strides = [1, 1]} : vector<1x384xf32> to vector<1x128xf32>
    %468 = arith.addf %466, %467 : vector<1x128xf32>
    %469 = arith.negf %468 : vector<1x128xf32>
    %470 = math.exp %469 : vector<1x128xf32>
    %cst_100 = arith.constant 1.000000e+00 : f32
    %471 = vector.broadcast %cst_100 : f32 to vector<1x128xf32>
    %472 = arith.addf %471, %470 : vector<1x128xf32>
    %473 = arith.divf %471, %472 : vector<1x128xf32>
    %474 = vector.extract_strided_slice %433 {offsets = [0, 128], sizes = [1, 128], strides = [1, 1]} : vector<1x384xf32> to vector<1x128xf32>
    %475 = vector.extract_strided_slice %439 {offsets = [0, 128], sizes = [1, 128], strides = [1, 1]} : vector<1x384xf32> to vector<1x128xf32>
    %476 = arith.addf %474, %475 : vector<1x128xf32>
    %477 = arith.negf %476 : vector<1x128xf32>
    %478 = math.exp %477 : vector<1x128xf32>
    %cst_101 = arith.constant 1.000000e+00 : f32
    %479 = vector.broadcast %cst_101 : f32 to vector<1x128xf32>
    %480 = arith.addf %479, %478 : vector<1x128xf32>
    %481 = arith.divf %479, %480 : vector<1x128xf32>
    %482 = vector.extract_strided_slice %433 {offsets = [0, 256], sizes = [1, 128], strides = [1, 1]} : vector<1x384xf32> to vector<1x128xf32>
    %483 = vector.extract_strided_slice %439 {offsets = [0, 256], sizes = [1, 128], strides = [1, 1]} : vector<1x384xf32> to vector<1x128xf32>
    %484 = arith.mulf %473, %483 : vector<1x128xf32>
    %485 = arith.addf %482, %484 : vector<1x128xf32>
    %486 = math.tanh %485 : vector<1x128xf32>
    %cst_102 = arith.constant 1.000000e+00 : f32
    %487 = vector.broadcast %cst_102 : f32 to vector<1x128xf32>
    %488 = arith.subf %487, %481 : vector<1x128xf32>
    %489 = arith.mulf %488, %486 : vector<1x128xf32>
    %490 = arith.mulf %481, %422 : vector<1x128xf32>
    %491 = arith.addf %489, %490 : vector<1x128xf32>
    %492 = arith.index_cast %c6_i32 : i32 to index
    %c0_103 = arith.constant 0 : index
    %493 = vector.load %arg6[%492, %c0_103] : memref<8x128xf32, #tpu.memory_space<vmem>>, vector<1x128xf32>
    tpu.vector_store %arg6[%492, %c0_103], %465 {strides = array<i32>} : memref<8x128xf32, #tpu.memory_space<vmem>>, vector<1x128xf32>,
    %494 = arith.index_cast %427 : i32 to index
    %c0_104 = arith.constant 0 : index
    %495 = vector.load %arg9[%494, %c0_104] : memref<8x128xf32, #tpu.memory_space<vmem>>, vector<1x128xf32>
    tpu.vector_store %arg9[%494, %c0_104], %491 {strides = array<i32>} : memref<8x128xf32, #tpu.memory_space<vmem>>, vector<1x128xf32>,
    %c7_i32_105 = arith.constant 7 : i32
    %c7_i32_106 = arith.constant 7 : i32
    %496 = arith.subi %c7_i32_106, %c7_i32_105 : i32
    %497 = arith.index_cast %c7_i32_105 : i32 to index
    %c0_107 = arith.constant 0 : index
    %498 = vector.load %arg8[%497, %c0_107] : memref<8x768xf32, #tpu.memory_space<vmem>>, vector<1x768xf32>
    %499 = vector.extract_strided_slice %498 {offsets = [0, 0], sizes = [1, 384], strides = [1, 1]} : vector<1x768xf32> to vector<1x384xf32>
    %500 = arith.index_cast %496 : i32 to index
    %c0_108 = arith.constant 0 : index
    %501 = vector.load %arg8[%500, %c0_108] : memref<8x768xf32, #tpu.memory_space<vmem>>, vector<1x768xf32>
    %502 = vector.extract_strided_slice %501 {offsets = [0, 384], sizes = [1, 384], strides = [1, 1]} : vector<1x768xf32> to vector<1x384xf32>
    %503 = arith.truncf %465 : vector<1x128xf32> to vector<1x128xbf16>
    %cst_109 = arith.constant dense<0.000000e+00> : vector<1x384xf32>
    %504 = tpu.matmul %503, %8, %cst_109 {dimension_numbers = #tpu.dot_dimension_numbers<[1], [0], [0], [1], [0, 0, 1, 1], [], []>} : vector<1x128xbf16>, vector<128x384xbf16>, vector<1x384xf32> -> vector<1x384xf32>
    %505 = arith.addf %504, %10 : vector<1x384xf32>
    %506 = arith.truncf %491 : vector<1x128xf32> to vector<1x128xbf16>
    %cst_110 = arith.constant dense<0.000000e+00> : vector<1x384xf32>
    %507 = tpu.matmul %506, %9, %cst_110 {dimension_numbers = #tpu.dot_dimension_numbers<[1], [0], [0], [1], [0, 0, 1, 1], [], []>} : vector<1x128xbf16>, vector<128x384xbf16>, vector<1x384xf32> -> vector<1x384xf32>
    %508 = arith.addf %507, %11 : vector<1x384xf32>
    %509 = vector.extract_strided_slice %499 {offsets = [0, 0], sizes = [1, 128], strides = [1, 1]} : vector<1x384xf32> to vector<1x128xf32>
    %510 = vector.extract_strided_slice %505 {offsets = [0, 0], sizes = [1, 128], strides = [1, 1]} : vector<1x384xf32> to vector<1x128xf32>
    %511 = arith.addf %509, %510 : vector<1x128xf32>
    %512 = arith.negf %511 : vector<1x128xf32>
    %513 = math.exp %512 : vector<1x128xf32>
    %cst_111 = arith.constant 1.000000e+00 : f32
    %514 = vector.broadcast %cst_111 : f32 to vector<1x128xf32>
    %515 = arith.addf %514, %513 : vector<1x128xf32>
    %516 = arith.divf %514, %515 : vector<1x128xf32>
    %517 = vector.extract_strided_slice %499 {offsets = [0, 128], sizes = [1, 128], strides = [1, 1]} : vector<1x384xf32> to vector<1x128xf32>
    %518 = vector.extract_strided_slice %505 {offsets = [0, 128], sizes = [1, 128], strides = [1, 1]} : vector<1x384xf32> to vector<1x128xf32>
    %519 = arith.addf %517, %518 : vector<1x128xf32>
    %520 = arith.negf %519 : vector<1x128xf32>
    %521 = math.exp %520 : vector<1x128xf32>
    %cst_112 = arith.constant 1.000000e+00 : f32
    %522 = vector.broadcast %cst_112 : f32 to vector<1x128xf32>
    %523 = arith.addf %522, %521 : vector<1x128xf32>
    %524 = arith.divf %522, %523 : vector<1x128xf32>
    %525 = vector.extract_strided_slice %499 {offsets = [0, 256], sizes = [1, 128], strides = [1, 1]} : vector<1x384xf32> to vector<1x128xf32>
    %526 = vector.extract_strided_slice %505 {offsets = [0, 256], sizes = [1, 128], strides = [1, 1]} : vector<1x384xf32> to vector<1x128xf32>
    %527 = arith.mulf %516, %526 : vector<1x128xf32>
    %528 = arith.addf %525, %527 : vector<1x128xf32>
    %529 = math.tanh %528 : vector<1x128xf32>
    %cst_113 = arith.constant 1.000000e+00 : f32
    %530 = vector.broadcast %cst_113 : f32 to vector<1x128xf32>
    %531 = arith.subf %530, %524 : vector<1x128xf32>
    %532 = arith.mulf %531, %529 : vector<1x128xf32>
    %533 = arith.mulf %524, %465 : vector<1x128xf32>
    %534 = arith.addf %532, %533 : vector<1x128xf32>
    %535 = vector.extract_strided_slice %502 {offsets = [0, 0], sizes = [1, 128], strides = [1, 1]} : vector<1x384xf32> to vector<1x128xf32>
    %536 = vector.extract_strided_slice %508 {offsets = [0, 0], sizes = [1, 128], strides = [1, 1]} : vector<1x384xf32> to vector<1x128xf32>
    %537 = arith.addf %535, %536 : vector<1x128xf32>
    %538 = arith.negf %537 : vector<1x128xf32>
    %539 = math.exp %538 : vector<1x128xf32>
    %cst_114 = arith.constant 1.000000e+00 : f32
    %540 = vector.broadcast %cst_114 : f32 to vector<1x128xf32>
    %541 = arith.addf %540, %539 : vector<1x128xf32>
    %542 = arith.divf %540, %541 : vector<1x128xf32>
    %543 = vector.extract_strided_slice %502 {offsets = [0, 128], sizes = [1, 128], strides = [1, 1]} : vector<1x384xf32> to vector<1x128xf32>
    %544 = vector.extract_strided_slice %508 {offsets = [0, 128], sizes = [1, 128], strides = [1, 1]} : vector<1x384xf32> to vector<1x128xf32>
    %545 = arith.addf %543, %544 : vector<1x128xf32>
    %546 = arith.negf %545 : vector<1x128xf32>
    %547 = math.exp %546 : vector<1x128xf32>
    %cst_115 = arith.constant 1.000000e+00 : f32
    %548 = vector.broadcast %cst_115 : f32 to vector<1x128xf32>
    %549 = arith.addf %548, %547 : vector<1x128xf32>
    %550 = arith.divf %548, %549 : vector<1x128xf32>
    %551 = vector.extract_strided_slice %502 {offsets = [0, 256], sizes = [1, 128], strides = [1, 1]} : vector<1x384xf32> to vector<1x128xf32>
    %552 = vector.extract_strided_slice %508 {offsets = [0, 256], sizes = [1, 128], strides = [1, 1]} : vector<1x384xf32> to vector<1x128xf32>
    %553 = arith.mulf %542, %552 : vector<1x128xf32>
    %554 = arith.addf %551, %553 : vector<1x128xf32>
    %555 = math.tanh %554 : vector<1x128xf32>
    %cst_116 = arith.constant 1.000000e+00 : f32
    %556 = vector.broadcast %cst_116 : f32 to vector<1x128xf32>
    %557 = arith.subf %556, %550 : vector<1x128xf32>
    %558 = arith.mulf %557, %555 : vector<1x128xf32>
    %559 = arith.mulf %550, %491 : vector<1x128xf32>
    %560 = arith.addf %558, %559 : vector<1x128xf32>
    %561 = arith.index_cast %c7_i32_105 : i32 to index
    %c0_117 = arith.constant 0 : index
    %562 = vector.load %arg6[%561, %c0_117] : memref<8x128xf32, #tpu.memory_space<vmem>>, vector<1x128xf32>
    tpu.vector_store %arg6[%561, %c0_117], %534 {strides = array<i32>} : memref<8x128xf32, #tpu.memory_space<vmem>>, vector<1x128xf32>,
    %563 = arith.index_cast %496 : i32 to index
    %c0_118 = arith.constant 0 : index
    %564 = vector.load %arg9[%563, %c0_118] : memref<8x128xf32, #tpu.memory_space<vmem>>, vector<1x128xf32>
    tpu.vector_store %arg9[%563, %c0_118], %560 {strides = array<i32>} : memref<8x128xf32, #tpu.memory_space<vmem>>, vector<1x128xf32>,
    %c8_i32 = arith.constant 8 : i32
    %c0_119 = arith.constant 0 : index
    %c0_120 = arith.constant 0 : index
    %565 = vector.load %arg6[%c0_119, %c0_120] : memref<8x128xf32, #tpu.memory_space<vmem>>, vector<8x128xf32>
    %c0_121 = arith.constant 0 : index
    %c0_122 = arith.constant 0 : index
    %566 = vector.load %arg9[%c0_121, %c0_122] : memref<8x128xf32, #tpu.memory_space<vmem>>, vector<8x128xf32>
    %567 = arith.addf %565, %566 : vector<8x128xf32>
    %c0_123 = arith.constant 0 : index
    %c0_124 = arith.constant 0 : index
    %568 = vector.load %arg6[%c0_123, %c0_124] : memref<8x128xf32, #tpu.memory_space<vmem>>, vector<8x128xf32>
    tpu.vector_store %arg6[%c0_123, %c0_124], %567 {strides = array<i32>} : memref<8x128xf32, #tpu.memory_space<vmem>>, vector<8x128xf32>,
    %c0_125 = arith.constant 0 : index
    %c0_126 = arith.constant 0 : index
    %569 = vector.load %arg7[%c0_125, %c0_126] : memref<2x128xf32, #tpu.memory_space<vmem>>, vector<1x128xf32>
    tpu.vector_store %arg7[%c0_125, %c0_126], %534 {strides = array<i32>} : memref<2x128xf32, #tpu.memory_space<vmem>>, vector<1x128xf32>,
    %c1_127 = arith.constant 1 : index
    %c0_128 = arith.constant 0 : index
    %570 = vector.load %arg7[%c1_127, %c0_128] : memref<2x128xf32, #tpu.memory_space<vmem>>, vector<1x128xf32>
    tpu.vector_store %arg7[%c1_127, %c0_128], %560 {strides = array<i32>} : memref<2x128xf32, #tpu.memory_space<vmem>>, vector<1x128xf32>,
    return
  }
}

</mosaic_0001>

<llo_original>
// kernel: encoder_forward.1
$region0: #{encoder_forward.1}
  #allocation0 [shape = 'u32[]', space=smem, size = 0x4, offset = 0x4, fixed_abs, tag = 'smem constant byte address 0x4 - core index']
  #allocation1 [shape = 'u32[144,128]{1,0:T(1,128)}', space=vmem, size = 0x12000, scoped, tag = 'internal scratch']
  #allocation2 [shape = 'f32[8,768]{1,0:T(8,128)}', space=vmem, size = 0x6000, scoped, tag = 'scratch operand']
  #allocation3 [shape = 'f32[8,128]{1,0:T(8,128)}', space=vmem, size = 0x1000, scoped, tag = 'scratch operand']
  %s0 = inlined_call_operand.vmem [shape: f32[8,128], index: 0, kind: input, shape index: {}]
  %s1 = inlined_call_operand.vmem [shape: bf16[128,768], index: 1, kind: input, shape index: {}]
  %s2 = inlined_call_operand.vmem [shape: bf16[128,384], index: 2, kind: input, shape index: {}]
  %s3 = inlined_call_operand.vmem [shape: bf16[128,384], index: 3, kind: input, shape index: {}]
  %s4 = inlined_call_operand.vmem [shape: f32[1,768], index: 4, kind: input, shape index: {}]
  %s5 = inlined_call_operand.vmem [shape: f32[2,384], index: 5, kind: input, shape index: {}]
  %s6 = inlined_call_operand.vmem [shape: f32[8,128], index: 6, kind: output, shape index: {0}]
  %s7 = inlined_call_operand.hbm [shape: f32[2,128], index: 7, kind: output, shape index: {1}]
  %8 = xla_tuple %s6, %s7
  %s9 = sld [smem:[#allocation0]]
  $region42: #{encoder_forward.1} parent=0
    _
  %s11 = ssub.s32 1, %s9
  %s12 = scalar_select 0, %s11, %s9
  $region1: #{encoder_forward.1} parent=0
    #allocation4 [shape = 'u8[1024]{0}', space=vmem, size = 0x400, scoped, tag = 'output window, operand 1, single buffered']
    #allocation5 [shape = 's32[1]{0}', space=sflag, size = 0x4, scoped, tag = 'scoped memory for encoder_forward.1']
    %13 = vsyncpa [#allocation5], 0
    // Predicated region
    $region2: #{encoder_forward.1} parent=1 // pred_check
      _
    $region3: #{encoder_forward.1} parent=1 // pred_check_branch
      %15 = sbr.rel (0) target = $region5
    $region4: #{encoder_forward.1} parent=1 // pred_region
      _
    $region5: #{encoder_forward.1} parent=1 // pred_fallthru
      _
    // Predicated region
    $region6: #{encoder_forward.1} parent=1 // pred_check
      _
    $region7: #{encoder_forward.1} parent=1 // pred_check_branch
      %17 = sbr.rel (0) target = $region9
    $region8: #{encoder_forward.1} parent=1 // pred_region
      _
    $region9: #{encoder_forward.1} parent=1 // pred_fallthru
      _
    // Predicated region
    $region10: #{encoder_forward.1} parent=1 // pred_check
      _
    $region11: #{encoder_forward.1} parent=1 // pred_check_branch
      %19 = sbr.rel (0) target = $region13
    $region12: #{encoder_forward.1} parent=1 // pred_region
      _
    $region13: #{encoder_forward.1} parent=1 // pred_fallthru
      _
    // Predicated region
    $region14: #{encoder_forward.1} parent=1 // pred_check
      _
    $region15: #{encoder_forward.1} parent=1 // pred_check_branch
      %21 = sbr.rel (0) target = $region17
    $region16: #{encoder_forward.1} parent=1 // pred_region
      _
    $region17: #{encoder_forward.1} parent=1 // pred_fallthru
      _
    // Predicated region
    $region18: #{encoder_forward.1} parent=1 // pred_check
      _
    $region19: #{encoder_forward.1} parent=1 // pred_check_branch
      %23 = sbr.rel (0) target = $region21
    $region20: #{encoder_forward.1} parent=1 // pred_region
      _
    $region21: #{encoder_forward.1} parent=1 // pred_fallthru
      _
    // Predicated region
    $region22: #{encoder_forward.1} parent=1 // pred_check
      _
    $region23: #{encoder_forward.1} parent=1 // pred_check_branch
      %25 = sbr.rel (0) target = $region25
    $region24: #{encoder_forward.1} parent=1 // pred_region
      _
    $region25: #{encoder_forward.1} parent=1 // pred_fallthru
      _
    %v27 = vld [vmem:[%s0] sm:$0xff]
    %v28 = vpack.c.bf16 %v27, %v27
    %v29 = vld [vmem:[%s1] sm:$0xff]
    %v30 = vld [vmem:[%s1 + $0x8] sm:$0xff]
    %v31 = vld [vmem:[%s1 + $0x10] sm:$0xff]
    %v32 = vld [vmem:[%s1 + $0x18] sm:$0xff]
    %v33 = vld [vmem:[%s1 + $0x20] sm:$0xff]
    %v34 = vld [vmem:[%s1 + $0x28] sm:$0xff]
    %v35 = vld [vmem:[%s1 + $0x30] sm:$0xff]
    %v36 = vld [vmem:[%s1 + $0x38] sm:$0xff]
    %v37 = vld [vmem:[%s1 + $0x40] sm:$0xff]
    %v38 = vld [vmem:[%s1 + $0x48] sm:$0xff]
    %v39 = vld [vmem:[%s1 + $0x50] sm:$0xff]
    %v40 = vld [vmem:[%s1 + $0x58] sm:$0xff]
    %v41 = vld [vmem:[%s1 + $0x60] sm:$0xff]
    %v42 = vld [vmem:[%s1 + $0x68] sm:$0xff]
    %v43 = vld [vmem:[%s1 + $0x70] sm:$0xff]
    %v44 = vld [vmem:[%s1 + $0x78] sm:$0xff]
    %v45 = vld [vmem:[%s1 + $0x80] sm:$0xff]
    %v46 = vld [vmem:[%s1 + $0x88] sm:$0xff]
    %v47 = vld [vmem:[%s1 + $0x90] sm:$0xff]
    %v48 = vld [vmem:[%s1 + $0x98] sm:$0xff]
    %v49 = vld [vmem:[%s1 + $0xa0] sm:$0xff]
    %v50 = vld [vmem:[%s1 + $0xa8] sm:$0xff]
    %v51 = vld [vmem:[%s1 + $0xb0] sm:$0xff]
    %v52 = vld [vmem:[%s1 + $0xb8] sm:$0xff]
    %v53 = vld [vmem:[%s1 + $0xc0] sm:$0xff]
    %v54 = vld [vmem:[%s1 + $0xc8] sm:$0xff]
    %v55 = vld [vmem:[%s1 + $0xd0] sm:$0xff]
    %v56 = vld [vmem:[%s1 + $0xd8] sm:$0xff]
    %v57 = vld [vmem:[%s1 + $0xe0] sm:$0xff]
    %v58 = vld [vmem:[%s1 + $0xe8] sm:$0xff]
    %v59 = vld [vmem:[%s1 + $0xf0] sm:$0xff]
    %v60 = vld [vmem:[%s1 + $0xf8] sm:$0xff]
    %v61 = vld [vmem:[%s1 + $0x100] sm:$0xff]
    %v62 = vld [vmem:[%s1 + $0x108] sm:$0xff]
    %v63 = vld [vmem:[%s1 + $0x110] sm:$0xff]
    %v64 = vld [vmem:[%s1 + $0x118] sm:$0xff]
    %v65 = vld [vmem:[%s1 + $0x120] sm:$0xff]
    %v66 = vld [vmem:[%s1 + $0x128] sm:$0xff]
    %v67 = vld [vmem:[%s1 + $0x130] sm:$0xff]
    %v68 = vld [vmem:[%s1 + $0x138] sm:$0xff]
    %v69 = vld [vmem:[%s1 + $0x140] sm:$0xff]
    %v70 = vld [vmem:[%s1 + $0x148] sm:$0xff]
    %v71 = vld [vmem:[%s1 + $0x150] sm:$0xff]
    %v72 = vld [vmem:[%s1 + $0x158] sm:$0xff]
    %v73 = vld [vmem:[%s1 + $0x160] sm:$0xff]
    %v74 = vld [vmem:[%s1 + $0x168] sm:$0xff]
    %v75 = vld [vmem:[%s1 + $0x170] sm:$0xff]
    %v76 = vld [vmem:[%s1 + $0x178] sm:$0xff]
    %v77 = vld [vmem:[%s4] sm:$0x3f]
    %v79 = vlaneseq
    %v80 = vshrl.u32 %v79, 7
    %v81 = vsub.s32 0, %v80
    %v82 = vrot.slane %v77, %v81
    %v83 = vlaneseq
    %v84 = vshrl.u32 %v83, 7
    %v85 = vsub.s32 1, %v84
    %v86 = vrot.slane %v77, %v85
    %v87 = vlaneseq
    %v88 = vshrl.u32 %v87, 7
    %v89 = vsub.s32 2, %v88
    %v90 = vrot.slane %v77, %v89
    %v91 = vlaneseq
    %v92 = vshrl.u32 %v91, 7
    %v93 = vsub.s32 3, %v92
    %v94 = vrot.slane %v77, %v93
    %v95 = vlaneseq
    %v96 = vshrl.u32 %v95, 7
    %v97 = vsub.s32 4, %v96
    %v98 = vrot.slane %v77, %v97
    %v99 = vlaneseq
    %v100 = vshrl.u32 %v99, 7
    %v101 = vsub.s32 5, %v100
    %v102 = vrot.slane %v77, %v101
    %v157 = vunpack.c.l.b16 %v29
    %v158 = vunpack.c.h.b16 %v29
    %v159 = vunpack.c.l.b16 %v30
    %v160 = vunpack.c.h.b16 %v30
    %v161 = vunpack.c.l.b16 %v31
    %v162 = vunpack.c.h.b16 %v31
    %v163 = vunpack.c.l.b16 %v32
    %v164 = vunpack.c.h.b16 %v32
    %v165 = vunpack.c.l.b16 %v33
    %v166 = vunpack.c.h.b16 %v33
    %v167 = vunpack.c.l.b16 %v34
    %v168 = vunpack.c.h.b16 %v34
    %v169 = vunpack.c.l.b16 %v35
    %v170 = vunpack.c.h.b16 %v35
    %v171 = vunpack.c.l.b16 %v36
    %v172 = vunpack.c.h.b16 %v36
    %v173 = vunpack.c.l.b16 %v37
    %v174 = vunpack.c.h.b16 %v37
    %v175 = vunpack.c.l.b16 %v38
    %v176 = vunpack.c.h.b16 %v38
    %v177 = vunpack.c.l.b16 %v39
    %v178 = vunpack.c.h.b16 %v39
    %v179 = vunpack.c.l.b16 %v40
    %v180 = vunpack.c.h.b16 %v40
    %v181 = vunpack.c.l.b16 %v41
    %v182 = vunpack.c.h.b16 %v41
    %v183 = vunpack.c.l.b16 %v42
    %v184 = vunpack.c.h.b16 %v42
    %v185 = vunpack.c.l.b16 %v43
    %v186 = vunpack.c.h.b16 %v43
    %v187 = vunpack.c.l.b16 %v44
    %v188 = vunpack.c.h.b16 %v44
    %v189 = vunpack.c.l.b16 %v45
    %v190 = vunpack.c.h.b16 %v45
    %v191 = vunpack.c.l.b16 %v46
    %v192 = vunpack.c.h.b16 %v46
    %v193 = vunpack.c.l.b16 %v47
    %v194 = vunpack.c.h.b16 %v47
    %v195 = vunpack.c.l.b16 %v48
    %v196 = vunpack.c.h.b16 %v48
    %v197 = vunpack.c.l.b16 %v49
    %v198 = vunpack.c.h.b16 %v49
    %v199 = vunpack.c.l.b16 %v50
    %v200 = vunpack.c.h.b16 %v50
    %v201 = vunpack.c.l.b16 %v51
    %v202 = vunpack.c.h.b16 %v51
    %v203 = vunpack.c.l.b16 %v52
    %v204 = vunpack.c.h.b16 %v52
    %v205 = vunpack.c.l.b16 %v53
    %v206 = vunpack.c.h.b16 %v53
    %v207 = vunpack.c.l.b16 %v54
    %v208 = vunpack.c.h.b16 %v54
    %v209 = vunpack.c.l.b16 %v55
    %v210 = vunpack.c.h.b16 %v55
    %v211 = vunpack.c.l.b16 %v56
    %v212 = vunpack.c.h.b16 %v56
    %v213 = vunpack.c.l.b16 %v57
    %v214 = vunpack.c.h.b16 %v57
    %v215 = vunpack.c.l.b16 %v58
    %v216 = vunpack.c.h.b16 %v58
    %v217 = vunpack.c.l.b16 %v59
    %v218 = vunpack.c.h.b16 %v59
    %v219 = vunpack.c.l.b16 %v60
    %v220 = vunpack.c.h.b16 %v60
    %v221 = vunpack.c.l.b16 %v61
    %v222 = vunpack.c.h.b16 %v61
    %v223 = vunpack.c.l.b16 %v62
    %v224 = vunpack.c.h.b16 %v62
    %v225 = vunpack.c.l.b16 %v63
    %v226 = vunpack.c.h.b16 %v63
    %v227 = vunpack.c.l.b16 %v64
    %v228 = vunpack.c.h.b16 %v64
    %v229 = vunpack.c.l.b16 %v65
    %v230 = vunpack.c.h.b16 %v65
    %v231 = vunpack.c.l.b16 %v66
    %v232 = vunpack.c.h.b16 %v66
    %v233 = vunpack.c.l.b16 %v67
    %v234 = vunpack.c.h.b16 %v67
    %v235 = vunpack.c.l.b16 %v68
    %v236 = vunpack.c.h.b16 %v68
    %v237 = vunpack.c.l.b16 %v69
    %v238 = vunpack.c.h.b16 %v69
    %v239 = vunpack.c.l.b16 %v70
    %v240 = vunpack.c.h.b16 %v70
    %v241 = vunpack.c.l.b16 %v71
    %v242 = vunpack.c.h.b16 %v71
    %v243 = vunpack.c.l.b16 %v72
    %v244 = vunpack.c.h.b16 %v72
    %v245 = vunpack.c.l.b16 %v73
    %v246 = vunpack.c.h.b16 %v73
    %v247 = vunpack.c.l.b16 %v74
    %v248 = vunpack.c.h.b16 %v74
    %v249 = vunpack.c.l.b16 %v75
    %v250 = vunpack.c.h.b16 %v75
    %v251 = vunpack.c.l.b16 %v76
    %v252 = vunpack.c.h.b16 %v76
    %v253 = vpack.c.b16 %v163, %v157
    %v254 = vpack.c.b16 %v164, %v158
    %v255 = vpack.c.b16 %v165, %v159
    %v256 = vpack.c.b16 %v166, %v160
    %v257 = vpack.c.b16 %v167, %v161
    %v258 = vpack.c.b16 %v168, %v162
    %v259 = vpack.c.b16 %v175, %v169
    %v260 = vpack.c.b16 %v176, %v170
    %v261 = vpack.c.b16 %v177, %v171
    %v262 = vpack.c.b16 %v178, %v172
    %v263 = vpack.c.b16 %v179, %v173
    %v264 = vpack.c.b16 %v180, %v174
    %v265 = vpack.c.b16 %v187, %v181
    %v266 = vpack.c.b16 %v188, %v182
    %v267 = vpack.c.b16 %v189, %v183
    %v268 = vpack.c.b16 %v190, %v184
    %v269 = vpack.c.b16 %v191, %v185
    %v270 = vpack.c.b16 %v192, %v186
    %v271 = vpack.c.b16 %v199, %v193
    %v272 = vpack.c.b16 %v200, %v194
    %v273 = vpack.c.b16 %v201, %v195
    %v274 = vpack.c.b16 %v202, %v196
    %v275 = vpack.c.b16 %v203, %v197
    %v276 = vpack.c.b16 %v204, %v198
    %v277 = vpack.c.b16 %v211, %v205
    %v278 = vpack.c.b16 %v212, %v206
    %v279 = vpack.c.b16 %v213, %v207
    %v280 = vpack.c.b16 %v214, %v208
    %v281 = vpack.c.b16 %v215, %v209
    %v282 = vpack.c.b16 %v216, %v210
    %v283 = vpack.c.b16 %v223, %v217
    %v284 = vpack.c.b16 %v224, %v218
    %v285 = vpack.c.b16 %v225, %v219
    %v286 = vpack.c.b16 %v226, %v220
    %v287 = vpack.c.b16 %v227, %v221
    %v288 = vpack.c.b16 %v228, %v222
    %v289 = vpack.c.b16 %v235, %v229
    %v290 = vpack.c.b16 %v236, %v230
    %v291 = vpack.c.b16 %v237, %v231
    %v292 = vpack.c.b16 %v238, %v232
    %v293 = vpack.c.b16 %v239, %v233
    %v294 = vpack.c.b16 %v240, %v234
    %v295 = vpack.c.b16 %v247, %v241
    %v296 = vpack.c.b16 %v248, %v242
    %v297 = vpack.c.b16 %v249, %v243
    %v298 = vpack.c.b16 %v250, %v244
    %v299 = vpack.c.b16 %v251, %v245
    %v300 = vpack.c.b16 %v252, %v246
    %349 = vmatprep.subr.bf16.mxu0 %v296
    %350 = vmatpush1.bf16.msra.mxu0 %v295
    %351 = vmatprep.subr.bf16.mxu0 %v290
    %352 = vmatpush1.bf16.msra.mxu0 %v289
    %353 = vmatprep.subr.bf16.mxu0 %v284
    %354 = vmatpush1.bf16.msra.mxu0 %v283
    %355 = vmatprep.subr.bf16.mxu0 %v278
    %356 = vmatpush1.bf16.msra.mxu0 %v277
    %357 = vmatprep.subr.bf16.mxu0 %v272
    %358 = vmatpush1.bf16.msra.mxu0 %v271
    %359 = vmatprep.subr.bf16.mxu0 %v266
    %360 = vmatpush1.bf16.msra.mxu0 %v265
    %361 = vmatprep.subr.bf16.mxu0 %v260
    %362 = vmatpush1.bf16.msra.mxu0 %v259
    %363 = vmatprep.subr.bf16.mxu0 %v254
    %364 = vmatpush1.bf16.msra.mxu0 %v253
    %365 = vmatprep.subr.bf16.mxu0 0
    %366 = vmatpush2.bf16.msra.mxu0 0
    %367 = vmatprep.subr.bf16.mxu0 0
    %368 = vmatpush2.bf16.msra.mxu0 0
    %369 = vmatprep.subr.bf16.mxu0 0
    %370 = vmatpush2.bf16.msra.mxu0 0
    %371 = vmatprep.subr.bf16.mxu0 0
    %372 = vmatpush2.bf16.msra.mxu0 0
    %373 = vmatprep.subr.bf16.mxu0 0
    %374 = vmatpush2.bf16.msra.mxu0 0
    %375 = vmatprep.subr.bf16.mxu0 0
    %376 = vmatpush2.bf16.msra.mxu0 0
    %377 = vmatprep.subr.bf16.mxu0 0
    %378 = vmatpush2.bf16.msra.mxu0 0
    %379 = vmatprep.subr.bf16.mxu0 0
    %380 = vmatpush2.bf16.msra.mxu0 0
    %381 = vmatprep.mubr.bf16.mxu0 0
    %382 = vmatmul.mubr.bf16.gmra.mxu0 %v28
    %v383 = vpop.f32.mrf.mxu0
    %v384 = vadd.f32 %v82, %v383
    %v385 = vpop.f32.mrf.mxu0
    %v386 = vadd.f32 %v86, %v385
    %v387 = vpop.f32.mrf.mxu0
    %v388 = vpop.f32.mrf.mxu0
    %389 = vdwg.mxu0
    %390 = vmatprep.subr.bf16.mxu0 %v298
    %391 = vmatpush1.bf16.msra.mxu0 %v297
    %392 = vmatprep.subr.bf16.mxu0 %v292
    %393 = vmatpush1.bf16.msra.mxu0 %v291
    %394 = vmatprep.subr.bf16.mxu0 %v286
    %395 = vmatpush1.bf16.msra.mxu0 %v285
    %396 = vmatprep.subr.bf16.mxu0 %v280
    %397 = vmatpush1.bf16.msra.mxu0 %v279
    %398 = vmatprep.subr.bf16.mxu0 %v274
    %399 = vmatpush1.bf16.msra.mxu0 %v273
    %400 = vmatprep.subr.bf16.mxu0 %v268
    %401 = vmatpush1.bf16.msra.mxu0 %v267
    %402 = vmatprep.subr.bf16.mxu0 %v262
    %403 = vmatpush1.bf16.msra.mxu0 %v261
    %404 = vmatprep.subr.bf16.mxu0 %v256
    %405 = vmatpush1.bf16.msra.mxu0 %v255
    %406 = vmatprep.subr.bf16.mxu0 0
    %407 = vmatpush2.bf16.msra.mxu0 0
    %408 = vmatprep.subr.bf16.mxu0 0
    %409 = vmatpush2.bf16.msra.mxu0 0
    %410 = vmatprep.subr.bf16.mxu0 0
    %411 = vmatpush2.bf16.msra.mxu0 0
    %412 = vmatprep.subr.bf16.mxu0 0
    %413 = vmatpush2.bf16.msra.mxu0 0
    %414 = vmatprep.subr.bf16.mxu0 0
    %415 = vmatpush2.bf16.msra.mxu0 0
    %416 = vmatprep.subr.bf16.mxu0 0
    %417 = vmatpush2.bf16.msra.mxu0 0
    %418 = vmatprep.subr.bf16.mxu0 0
    %419 = vmatpush2.bf16.msra.mxu0 0
    %420 = vmatprep.subr.bf16.mxu0 0
    %421 = vmatpush2.bf16.msra.mxu0 0
    %422 = vmatprep.mubr.bf16.mxu0 0
    %423 = vmatmul.mubr.bf16.gmra.mxu0 %v28
    %v424 = vpop.f32.mrf.mxu0
    %v425 = vadd.f32 %v90, %v424
    %v426 = vpop.f32.mrf.mxu0
    %v427 = vadd.f32 %v94, %v426
    %v428 = vpop.f32.mrf.mxu0
    %v429 = vpop.f32.mrf.mxu0
    %430 = vdwg.mxu0
    %431 = vmatprep.subr.bf16.mxu0 %v300
    %432 = vmatpush1.bf16.msra.mxu0 %v299
    %433 = vmatprep.subr.bf16.mxu0 %v294
    %434 = vmatpush1.bf16.msra.mxu0 %v293
    %435 = vmatprep.subr.bf16.mxu0 %v288
    %436 = vmatpush1.bf16.msra.mxu0 %v287
    %437 = vmatprep.subr.bf16.mxu0 %v282
    %438 = vmatpush1.bf16.msra.mxu0 %v281
    %439 = vmatprep.subr.bf16.mxu0 %v276
    %440 = vmatpush1.bf16.msra.mxu0 %v275
    %441 = vmatprep.subr.bf16.mxu0 %v270
    %442 = vmatpush1.bf16.msra.mxu0 %v269
    %443 = vmatprep.subr.bf16.mxu0 %v264
    %444 = vmatpush1.bf16.msra.mxu0 %v263
    %445 = vmatprep.subr.bf16.mxu0 %v258
    %446 = vmatpush1.bf16.msra.mxu0 %v257
    %447 = vmatprep.subr.bf16.mxu0 0
    %448 = vmatpush2.bf16.msra.mxu0 0
    %449 = vmatprep.subr.bf16.mxu0 0
    %450 = vmatpush2.bf16.msra.mxu0 0
    %451 = vmatprep.subr.bf16.mxu0 0
    %452 = vmatpush2.bf16.msra.mxu0 0
    %453 = vmatprep.subr.bf16.mxu0 0
    %454 = vmatpush2.bf16.msra.mxu0 0
    %455 = vmatprep.subr.bf16.mxu0 0
    %456 = vmatpush2.bf16.msra.mxu0 0
    %457 = vmatprep.subr.bf16.mxu0 0
    %458 = vmatpush2.bf16.msra.mxu0 0
    %459 = vmatprep.subr.bf16.mxu0 0
    %460 = vmatpush2.bf16.msra.mxu0 0
    %461 = vmatprep.subr.bf16.mxu0 0
    %462 = vmatpush2.bf16.msra.mxu0 0
    %463 = vmatprep.mubr.bf16.mxu0 0
    %464 = vmatmul.mubr.bf16.gmra.mxu0 %v28
    %v465 = vpop.f32.mrf.mxu0
    %v466 = vadd.f32 %v98, %v465
    %v467 = vpop.f32.mrf.mxu0
    %v468 = vadd.f32 %v102, %v467
    %v469 = vpop.f32.mrf.mxu0
    %v470 = vpop.f32.mrf.mxu0
    %471 = vdwg.mxu0
    %472 = vst [vmem:[#allocation2] sm:$0xff] %v384
    %473 = vst [vmem:[#allocation2 + $0x8] sm:$0xff] %v386
    %474 = vst [vmem:[#allocation2 + $0x10] sm:$0xff] %v425
    %475 = vst [vmem:[#allocation2 + $0x18] sm:$0xff] %v427
    %476 = vst [vmem:[#allocation2 + $0x20] sm:$0xff] %v466
    %477 = vst [vmem:[#allocation2 + $0x28] sm:$0xff] %v468
    %v478 = vld [vmem:[%s2] sm:$0xff]
    %v479 = vld [vmem:[%s2 + $0x8] sm:$0xf]
    %v480 = vld [vmem:[%s2 + $0xc] sm:$0xff]
    %v481 = vld [vmem:[%s2 + $0x14] sm:$0xf]
    %v482 = vld [vmem:[%s2 + $0x18] sm:$0xff]
    %v483 = vld [vmem:[%s2 + $0x20] sm:$0xf]
    %v484 = vld [vmem:[%s2 + $0x24] sm:$0xff]
    %v485 = vld [vmem:[%s2 + $0x2c] sm:$0xf]
    %v486 = vld [vmem:[%s2 + $0x30] sm:$0xff]
    %v487 = vld [vmem:[%s2 + $0x38] sm:$0xf]
    %v488 = vld [vmem:[%s2 + $0x3c] sm:$0xff]
    %v489 = vld [vmem:[%s2 + $0x44] sm:$0xf]
    %v490 = vld [vmem:[%s2 + $0x48] sm:$0xff]
    %v491 = vld [vmem:[%s2 + $0x50] sm:$0xf]
    %v492 = vld [vmem:[%s2 + $0x54] sm:$0xff]
    %v493 = vld [vmem:[%s2 + $0x5c] sm:$0xf]
    %v494 = vld [vmem:[%s2 + $0x60] sm:$0xff]
    %v495 = vld [vmem:[%s2 + $0x68] sm:$0xf]
    %v496 = vld [vmem:[%s2 + $0x6c] sm:$0xff]
    %v497 = vld [vmem:[%s2 + $0x74] sm:$0xf]
    %v498 = vld [vmem:[%s2 + $0x78] sm:$0xff]
    %v499 = vld [vmem:[%s2 + $0x80] sm:$0xf]
    %v500 = vld [vmem:[%s2 + $0x84] sm:$0xff]
    %v501 = vld [vmem:[%s2 + $0x8c] sm:$0xf]
    %v502 = vld [vmem:[%s2 + $0x90] sm:$0xff]
    %v503 = vld [vmem:[%s2 + $0x98] sm:$0xf]
    %v504 = vld [vmem:[%s2 + $0x9c] sm:$0xff]
    %v505 = vld [vmem:[%s2 + $0xa4] sm:$0xf]
    %v506 = vld [vmem:[%s2 + $0xa8] sm:$0xff]
    %v507 = vld [vmem:[%s2 + $0xb0] sm:$0xf]
    %v508 = vld [vmem:[%s2 + $0xb4] sm:$0xff]
    %v509 = vld [vmem:[%s2 + $0xbc] sm:$0xf]
    %v510 = vld [vmem:[%s3] sm:$0xff]
    %v511 = vld [vmem:[%s3 + $0x8] sm:$0xf]
    %v512 = vld [vmem:[%s3 + $0xc] sm:$0xff]
    %v513 = vld [vmem:[%s3 + $0x14] sm:$0xf]
    %v514 = vld [vmem:[%s3 + $0x18] sm:$0xff]
    %v515 = vld [vmem:[%s3 + $0x20] sm:$0xf]
    %v516 = vld [vmem:[%s3 + $0x24] sm:$0xff]
    %v517 = vld [vmem:[%s3 + $0x2c] sm:$0xf]
    %v518 = vld [vmem:[%s3 + $0x30] sm:$0xff]
    %v519 = vld [vmem:[%s3 + $0x38] sm:$0xf]
    %v520 = vld [vmem:[%s3 + $0x3c] sm:$0xff]
    %v521 = vld [vmem:[%s3 + $0x44] sm:$0xf]
    %v522 = vld [vmem:[%s3 + $0x48] sm:$0xff]
    %v523 = vld [vmem:[%s3 + $0x50] sm:$0xf]
    %v524 = vld [vmem:[%s3 + $0x54] sm:$0xff]
    %v525 = vld [vmem:[%s3 + $0x5c] sm:$0xf]
    %v526 = vld [vmem:[%s3 + $0x60] sm:$0xff]
    %v527 = vld [vmem:[%s3 + $0x68] sm:$0xf]
    %v528 = vld [vmem:[%s3 + $0x6c] sm:$0xff]
    %v529 = vld [vmem:[%s3 + $0x74] sm:$0xf]
    %v530 = vld [vmem:[%s3 + $0x78] sm:$0xff]
    %v531 = vld [vmem:[%s3 + $0x80] sm:$0xf]
    %v532 = vld [vmem:[%s3 + $0x84] sm:$0xff]
    %v533 = vld [vmem:[%s3 + $0x8c] sm:$0xf]
    %v534 = vld [vmem:[%s3 + $0x90] sm:$0xff]
    %v535 = vld [vmem:[%s3 + $0x98] sm:$0xf]
    %v536 = vld [vmem:[%s3 + $0x9c] sm:$0xff]
    %v537 = vld [vmem:[%s3 + $0xa4] sm:$0xf]
    %v538 = vld [vmem:[%s3 + $0xa8] sm:$0xff]
    %v539 = vld [vmem:[%s3 + $0xb0] sm:$0xf]
    %v540 = vld [vmem:[%s3 + $0xb4] sm:$0xff]
    %v541 = vld [vmem:[%s3 + $0xbc] sm:$0xf]
    %v542 = vld [vmem:[%s5] ss:$2 sm:$0x7]
    %s543 = scalar_lea.vmem %s5, 1
    %v544 = vld [vmem:[%s543] ss:$2 sm:$0x7]
    %v545 = vld [vmem:[#allocation2] ss:$8 sm:$0xf]
    %v546 = vld [vmem:[#allocation2] ss:$8 sm:$0x30]
    %v547 = vor.u32 %v545, %v546
    %s548 = scalar_lea.vmem [#allocation2], 7
    %v549 = vld [vmem:[%s548] ss:$8 sm:$0xf]
    %v550 = vld [vmem:[%s548] ss:$8 sm:$0x30]
    %v551 = vor.u32 %v549, %v550
    %v584 = vunpack.c.l.b16 %v478
    %v585 = vunpack.c.h.b16 %v478
    %v586 = vunpack.c.l.b16 %v479
    %v587 = vunpack.c.l.b16 %v480
    %v588 = vunpack.c.h.b16 %v480
    %v589 = vunpack.c.l.b16 %v481
    %v590 = vunpack.c.l.b16 %v482
    %v591 = vunpack.c.h.b16 %v482
    %v592 = vunpack.c.l.b16 %v483
    %v593 = vunpack.c.l.b16 %v484
    %v594 = vunpack.c.h.b16 %v484
    %v595 = vunpack.c.l.b16 %v485
    %v596 = vunpack.c.l.b16 %v486
    %v597 = vunpack.c.h.b16 %v486
    %v598 = vunpack.c.l.b16 %v487
    %v599 = vunpack.c.l.b16 %v488
    %v600 = vunpack.c.h.b16 %v488
    %v601 = vunpack.c.l.b16 %v489
    %v602 = vunpack.c.l.b16 %v490
    %v603 = vunpack.c.h.b16 %v490
    %v604 = vunpack.c.l.b16 %v491
    %v605 = vunpack.c.l.b16 %v492
    %v606 = vunpack.c.h.b16 %v492
    %v607 = vunpack.c.l.b16 %v493
    %v608 = vunpack.c.l.b16 %v494
    %v609 = vunpack.c.h.b16 %v494
    %v610 = vunpack.c.l.b16 %v495
    %v611 = vunpack.c.l.b16 %v496
    %v612 = vunpack.c.h.b16 %v496
    %v613 = vunpack.c.l.b16 %v497
    %v614 = vunpack.c.l.b16 %v498
    %v615 = vunpack.c.h.b16 %v498
    %v616 = vunpack.c.l.b16 %v499
    %v617 = vunpack.c.l.b16 %v500
    %v618 = vunpack.c.h.b16 %v500
    %v619 = vunpack.c.l.b16 %v501
    %v620 = vunpack.c.l.b16 %v502
    %v621 = vunpack.c.h.b16 %v502
    %v622 = vunpack.c.l.b16 %v503
    %v623 = vunpack.c.l.b16 %v504
    %v624 = vunpack.c.h.b16 %v504
    %v625 = vunpack.c.l.b16 %v505
    %v626 = vunpack.c.l.b16 %v506
    %v627 = vunpack.c.h.b16 %v506
    %v628 = vunpack.c.l.b16 %v507
    %v629 = vunpack.c.l.b16 %v508
    %v630 = vunpack.c.h.b16 %v508
    %v631 = vunpack.c.l.b16 %v509
    %v632 = vpack.c.b16 %v587, %v584
    %v633 = vpack.c.b16 %v588, %v585
    %v634 = vpack.c.b16 %v589, %v586
    %v635 = vpack.c.b16 %v593, %v590
    %v636 = vpack.c.b16 %v594, %v591
    %v637 = vpack.c.b16 %v595, %v592
    %v638 = vpack.c.b16 %v599, %v596
    %v639 = vpack.c.b16 %v600, %v597
    %v640 = vpack.c.b16 %v601, %v598
    %v641 = vpack.c.b16 %v605, %v602
    %v642 = vpack.c.b16 %v606, %v603
    %v643 = vpack.c.b16 %v607, %v604
    %v644 = vpack.c.b16 %v611, %v608
    %v645 = vpack.c.b16 %v612, %v609
    %v646 = vpack.c.b16 %v613, %v610
    %v647 = vpack.c.b16 %v617, %v614
    %v648 = vpack.c.b16 %v618, %v615
    %v649 = vpack.c.b16 %v619, %v616
    %v650 = vpack.c.b16 %v623, %v620
    %v651 = vpack.c.b16 %v624, %v621
    %v652 = vpack.c.b16 %v625, %v622
    %v653 = vpack.c.b16 %v629, %v626
    %v654 = vpack.c.b16 %v630, %v627
    %v655 = vpack.c.b16 %v631, %v628
    %v681 = vlaneseq
    %v682 = vshrl.u32 %v681, 7
    %v683 = vsub.s32 0, %v682
    %v684 = vrot.slane %v542, %v683
    %v685 = vlaneseq
    %v686 = vshrl.u32 %v685, 7
    %v687 = vsub.s32 1, %v686
    %v688 = vrot.slane %v542, %v687
    %v689 = vlaneseq
    %v690 = vshrl.u32 %v689, 7
    %v691 = vsub.s32 2, %v690
    %v692 = vrot.slane %v542, %v691
    %696 = vmatprep.subr.bf16.mxu0 %v654
    %697 = vmatpush1.bf16.msra.mxu0 %v653
    %698 = vmatprep.subr.bf16.mxu0 %v651
    %699 = vmatpush1.bf16.msra.mxu0 %v650
    %700 = vmatprep.subr.bf16.mxu0 %v648
    %701 = vmatpush1.bf16.msra.mxu0 %v647
    %702 = vmatprep.subr.bf16.mxu0 %v645
    %703 = vmatpush1.bf16.msra.mxu0 %v644
    %704 = vmatprep.subr.bf16.mxu0 %v642
    %705 = vmatpush1.bf16.msra.mxu0 %v641
    %706 = vmatprep.subr.bf16.mxu0 %v639
    %707 = vmatpush1.bf16.msra.mxu0 %v638
    %708 = vmatprep.subr.bf16.mxu0 %v636
    %709 = vmatpush1.bf16.msra.mxu0 %v635
    %710 = vmatprep.subr.bf16.mxu0 %v633
    %711 = vmatpush1.bf16.msra.mxu0 %v632
    %712 = vmatprep.subr.bf16.mxu0 0
    %713 = vmatpush2.bf16.msra.mxu0 0
    %714 = vmatprep.subr.bf16.mxu0 0
    %715 = vmatpush2.bf16.msra.mxu0 0
    %716 = vmatprep.subr.bf16.mxu0 0
    %717 = vmatpush2.bf16.msra.mxu0 0
    %718 = vmatprep.subr.bf16.mxu0 0
    %719 = vmatpush2.bf16.msra.mxu0 0
    %720 = vmatprep.subr.bf16.mxu0 0
    %721 = vmatpush2.bf16.msra.mxu0 0
    %722 = vmatprep.subr.bf16.mxu0 0
    %723 = vmatpush2.bf16.msra.mxu0 0
    %724 = vmatprep.subr.bf16.mxu0 0
    %725 = vmatpush2.bf16.msra.mxu0 0
    %726 = vmatprep.subr.bf16.mxu0 0
    %727 = vmatpush2.bf16.msra.mxu0 0
    %728 = vmatprep.mubr.bf16.mxu0 0
    %729 = vmatmul.mubr.bf16.gmra.mxu0 0
    %v730 = vpop.f32.mrf.mxu0
    %v731 = vadd.f32 %v684, %v730
    %v732 = vpop.f32.mrf.mxu0
    %v733 = vadd.f32 %v688, %v732
    %v734 = vpop.f32.mrf.mxu0
    %v735 = vpop.f32.mrf.mxu0
    %736 = vdwg.mxu0
    %737 = vmatprep.subr.bf16.mxu0 0
    %738 = vmatpush1.bf16.msra.mxu0 %v655
    %739 = vmatprep.subr.bf16.mxu0 0
    %740 = vmatpush1.bf16.msra.mxu0 %v652
    %741 = vmatprep.subr.bf16.mxu0 0
    %742 = vmatpush1.bf16.msra.mxu0 %v649
    %743 = vmatprep.subr.bf16.mxu0 0
    %744 = vmatpush1.bf16.msra.mxu0 %v646
    %745 = vmatprep.subr.bf16.mxu0 0
    %746 = vmatpush1.bf16.msra.mxu0 %v643
    %747 = vmatprep.subr.bf16.mxu0 0
    %748 = vmatpush1.bf16.msra.mxu0 %v640
    %749 = vmatprep.subr.bf16.mxu0 0
    %750 = vmatpush1.bf16.msra.mxu0 %v637
    %751 = vmatprep.subr.bf16.mxu0 0
    %752 = vmatpush1.bf16.msra.mxu0 %v634
    %753 = vmatprep.subr.bf16.mxu0 0
    %754 = vmatpush2.bf16.msra.mxu0 0
    %755 = vmatprep.subr.bf16.mxu0 0
    %756 = vmatpush2.bf16.msra.mxu0 0
    %757 = vmatprep.subr.bf16.mxu0 0
    %758 = vmatpush2.bf16.msra.mxu0 0
    %759 = vmatprep.subr.bf16.mxu0 0
    %760 = vmatpush2.bf16.msra.mxu0 0
    %761 = vmatprep.subr.bf16.mxu0 0
    %762 = vmatpush2.bf16.msra.mxu0 0
    %763 = vmatprep.subr.bf16.mxu0 0
    %764 = vmatpush2.bf16.msra.mxu0 0
    %765 = vmatprep.subr.bf16.mxu0 0
    %766 = vmatpush2.bf16.msra.mxu0 0
    %767 = vmatprep.subr.bf16.mxu0 0
    %768 = vmatpush2.bf16.msra.mxu0 0
    %769 = vmatprep.mubr.bf16.mxu0 0
    %770 = vmatmul.mubr.bf16.gmra.mxu0 0
    %v771 = vpop.f32.mrf.mxu0
    %v772 = vadd.f32 %v692, %v771
    %v773 = vpop.f32.mrf.mxu0
    %v774 = vpop.f32.mrf.mxu0
    %v775 = vpop.f32.mrf.mxu0
    %776 = vdwg.mxu0
    %v809 = vunpack.c.l.b16 %v510
    %v810 = vunpack.c.h.b16 %v510
    %v811 = vunpack.c.l.b16 %v511
    %v812 = vunpack.c.l.b16 %v512
    %v813 = vunpack.c.h.b16 %v512
    %v814 = vunpack.c.l.b16 %v513
    %v815 = vunpack.c.l.b16 %v514
    %v816 = vunpack.c.h.b16 %v514
    %v817 = vunpack.c.l.b16 %v515
    %v818 = vunpack.c.l.b16 %v516
    %v819 = vunpack.c.h.b16 %v516
    %v820 = vunpack.c.l.b16 %v517
    %v821 = vunpack.c.l.b16 %v518
    %v822 = vunpack.c.h.b16 %v518
    %v823 = vunpack.c.l.b16 %v519
    %v824 = vunpack.c.l.b16 %v520
    %v825 = vunpack.c.h.b16 %v520
    %v826 = vunpack.c.l.b16 %v521
    %v827 = vunpack.c.l.b16 %v522
    %v828 = vunpack.c.h.b16 %v522
    %v829 = vunpack.c.l.b16 %v523
    %v830 = vunpack.c.l.b16 %v524
    %v831 = vunpack.c.h.b16 %v524
    %v832 = vunpack.c.l.b16 %v525
    %v833 = vunpack.c.l.b16 %v526
    %v834 = vunpack.c.h.b16 %v526
    %v835 = vunpack.c.l.b16 %v527
    %v836 = vunpack.c.l.b16 %v528
    %v837 = vunpack.c.h.b16 %v528
    %v838 = vunpack.c.l.b16 %v529
    %v839 = vunpack.c.l.b16 %v530
    %v840 = vunpack.c.h.b16 %v530
    %v841 = vunpack.c.l.b16 %v531
    %v842 = vunpack.c.l.b16 %v532
    %v843 = vunpack.c.h.b16 %v532
    %v844 = vunpack.c.l.b16 %v533
    %v845 = vunpack.c.l.b16 %v534
    %v846 = vunpack.c.h.b16 %v534
    %v847 = vunpack.c.l.b16 %v535
    %v848 = vunpack.c.l.b16 %v536
    %v849 = vunpack.c.h.b16 %v536
    %v850 = vunpack.c.l.b16 %v537
    %v851 = vunpack.c.l.b16 %v538
    %v852 = vunpack.c.h.b16 %v538
    %v853 = vunpack.c.l.b16 %v539
    %v854 = vunpack.c.l.b16 %v540
    %v855 = vunpack.c.h.b16 %v540
    %v856 = vunpack.c.l.b16 %v541
    %v857 = vpack.c.b16 %v812, %v809
    %v858 = vpack.c.b16 %v813, %v810
    %v859 = vpack.c.b16 %v814, %v811
    %v860 = vpack.c.b16 %v818, %v815
    %v861 = vpack.c.b16 %v819, %v816
    %v862 = vpack.c.b16 %v820, %v817
    %v863 = vpack.c.b16 %v824, %v821
    %v864 = vpack.c.b16 %v825, %v822
    %v865 = vpack.c.b16 %v826, %v823
    %v866 = vpack.c.b16 %v830, %v827
    %v867 = vpack.c.b16 %v831, %v828
    %v868 = vpack.c.b16 %v832, %v829
    %v869 = vpack.c.b16 %v836, %v833
    %v870 = vpack.c.b16 %v837, %v834
    %v871 = vpack.c.b16 %v838, %v835
    %v872 = vpack.c.b16 %v842, %v839
    %v873 = vpack.c.b16 %v843, %v840
    %v874 = vpack.c.b16 %v844, %v841
    %v875 = vpack.c.b16 %v848, %v845
    %v876 = vpack.c.b16 %v849, %v846
    %v877 = vpack.c.b16 %v850, %v847
    %v878 = vpack.c.b16 %v854, %v851
    %v879 = vpack.c.b16 %v855, %v852
    %v880 = vpack.c.b16 %v856, %v853
    %v906 = vlaneseq
    %v907 = vshrl.u32 %v906, 7
    %v908 = vsub.s32 0, %v907
    %v909 = vrot.slane %v544, %v908
    %v910 = vlaneseq
    %v911 = vshrl.u32 %v910, 7
    %v912 = vsub.s32 1, %v911
    %v913 = vrot.slane %v544, %v912
    %v914 = vlaneseq
    %v915 = vshrl.u32 %v914, 7
    %v916 = vsub.s32 2, %v915
    %v917 = vrot.slane %v544, %v916
    %921 = vmatprep.subr.bf16.mxu0 %v879
    %922 = vmatpush1.bf16.msra.mxu0 %v878
    %923 = vmatprep.subr.bf16.mxu0 %v876
    %924 = vmatpush1.bf16.msra.mxu0 %v875
    %925 = vmatprep.subr.bf16.mxu0 %v873
    %926 = vmatpush1.bf16.msra.mxu0 %v872
    %927 = vmatprep.subr.bf16.mxu0 %v870
    %928 = vmatpush1.bf16.msra.mxu0 %v869
    %929 = vmatprep.subr.bf16.mxu0 %v867
    %930 = vmatpush1.bf16.msra.mxu0 %v866
    %931 = vmatprep.subr.bf16.mxu0 %v864
    %932 = vmatpush1.bf16.msra.mxu0 %v863
    %933 = vmatprep.subr.bf16.mxu0 %v861
    %934 = vmatpush1.bf16.msra.mxu0 %v860
    %935 = vmatprep.subr.bf16.mxu0 %v858
    %936 = vmatpush1.bf16.msra.mxu0 %v857
    %937 = vmatprep.subr.bf16.mxu0 0
    %938 = vmatpush2.bf16.msra.mxu0 0
    %939 = vmatprep.subr.bf16.mxu0 0
    %940 = vmatpush2.bf16.msra.mxu0 0
    %941 = vmatprep.subr.bf16.mxu0 0
    %942 = vmatpush2.bf16.msra.mxu0 0
    %943 = vmatprep.subr.bf16.mxu0 0
    %944 = vmatpush2.bf16.msra.mxu0 0
    %945 = vmatprep.subr.bf16.mxu0 0
    %946 = vmatpush2.bf16.msra.mxu0 0
    %947 = vmatprep.subr.bf16.mxu0 0
    %948 = vmatpush2.bf16.msra.mxu0 0
    %949 = vmatprep.subr.bf16.mxu0 0
    %950 = vmatpush2.bf16.msra.mxu0 0
    %951 = vmatprep.subr.bf16.mxu0 0
    %952 = vmatpush2.bf16.msra.mxu0 0
    %953 = vmatprep.mubr.bf16.mxu0 0
    %954 = vmatmul.mubr.bf16.gmra.mxu0 0
    %v955 = vpop.f32.mrf.mxu0
    %v956 = vadd.f32 %v909, %v955
    %v957 = vpop.f32.mrf.mxu0
    %v958 = vadd.f32 %v913, %v957
    %v959 = vpop.f32.mrf.mxu0
    %v960 = vpop.f32.mrf.mxu0
    %961 = vdwg.mxu0
    %962 = vmatprep.subr.bf16.mxu0 0
    %963 = vmatpush1.bf16.msra.mxu0 %v880
    %964 = vmatprep.subr.bf16.mxu0 0
    %965 = vmatpush1.bf16.msra.mxu0 %v877
    %966 = vmatprep.subr.bf16.mxu0 0
    %967 = vmatpush1.bf16.msra.mxu0 %v874
    %968 = vmatprep.subr.bf16.mxu0 0
    %969 = vmatpush1.bf16.msra.mxu0 %v871
    %970 = vmatprep.subr.bf16.mxu0 0
    %971 = vmatpush1.bf16.msra.mxu0 %v868
    %972 = vmatprep.subr.bf16.mxu0 0
    %973 = vmatpush1.bf16.msra.mxu0 %v865
    %974 = vmatprep.subr.bf16.mxu0 0
    %975 = vmatpush1.bf16.msra.mxu0 %v862
    %976 = vmatprep.subr.bf16.mxu0 0
    %977 = vmatpush1.bf16.msra.mxu0 %v859
    %978 = vmatprep.subr.bf16.mxu0 0
    %979 = vmatpush2.bf16.msra.mxu0 0
    %980 = vmatprep.subr.bf16.mxu0 0
    %981 = vmatpush2.bf16.msra.mxu0 0
    %982 = vmatprep.subr.bf16.mxu0 0
    %983 = vmatpush2.bf16.msra.mxu0 0
    %984 = vmatprep.subr.bf16.mxu0 0
    %985 = vmatpush2.bf16.msra.mxu0 0
    %986 = vmatprep.subr.bf16.mxu0 0
    %987 = vmatpush2.bf16.msra.mxu0 0
    %988 = vmatprep.subr.bf16.mxu0 0
    %989 = vmatpush2.bf16.msra.mxu0 0
    %990 = vmatprep.subr.bf16.mxu0 0
    %991 = vmatpush2.bf16.msra.mxu0 0
    %992 = vmatprep.subr.bf16.mxu0 0
    %993 = vmatpush2.bf16.msra.mxu0 0
    %994 = vmatprep.mubr.bf16.mxu0 0
    %995 = vmatmul.mubr.bf16.gmra.mxu0 0
    %v996 = vpop.f32.mrf.mxu0
    %v997 = vadd.f32 %v917, %v996
    %v998 = vpop.f32.mrf.mxu0
    %v999 = vpop.f32.mrf.mxu0
    %v1000 = vpop.f32.mrf.mxu0
    %1001 = vdwg.mxu0
    %v1002 = vadd.f32 %v547, %v731
    %v1003 = vxor.u32 %v1002, 2147483648
    %v1004 = vmul.f32 %v1003, 1.442695
    %v1005 = vpow.pop %v1004
    %v1006 = vadd.f32 %v1005, 1.0
    %v1007 = vrcp.pop %v1006
    %v1008 = vmul.f32 1.0, %v1007
    %v1010 = vrot.slane %v547, 1
    %v1012 = vadd.f32 %v1010, %v733
    %v1013 = vxor.u32 %v1012, 2147483648
    %v1014 = vmul.f32 %v1013, 1.442695
    %v1015 = vpow.pop %v1014
    %v1016 = vadd.f32 %v1015, 1.0
    %v1017 = vrcp.pop %v1016
    %v1018 = vmul.f32 1.0, %v1017
    %v1019 = vmul.f32 %v1008, %v772
    %v1020 = vrot.slane %v547, 2
    %v1022 = vadd.f32 %v1020, %v1019
    %v1023 = vtanh.pop %v1022
    %v1024 = vsub.f32 1.0, %v1018
    %v1025 = vmul.f32 %v1024, %v1023
    %v1026 = vmul.f32 %v1018, 0.0
    %v1027 = vadd.f32 %v1025, %v1026
    %v1029 = vrot.slane %v551, 3
    %v1031 = vadd.f32 %v1029, %v956
    %v1032 = vxor.u32 %v1031, 2147483648
    %v1033 = vmul.f32 %v1032, 1.442695
    %v1034 = vpow.pop %v1033
    %v1035 = vadd.f32 %v1034, 1.0
    %v1036 = vrcp.pop %v1035
    %v1037 = vmul.f32 1.0, %v1036
    %v1038 = vrot.slane %v551, 4
    %v1040 = vadd.f32 %v1038, %v958
    %v1041 = vxor.u32 %v1040, 2147483648
    %v1042 = vmul.f32 %v1041, 1.442695
    %v1043 = vpow.pop %v1042
    %v1044 = vadd.f32 %v1043, 1.0
    %v1045 = vrcp.pop %v1044
    %v1046 = vmul.f32 1.0, %v1045
    %v1047 = vmul.f32 %v1037, %v997
    %v1048 = vrot.slane %v551, 5
    %v1050 = vadd.f32 %v1048, %v1047
    %v1051 = vtanh.pop %v1050
    %v1052 = vsub.f32 1.0, %v1046
    %v1053 = vmul.f32 %v1052, %v1051
    %v1054 = vmul.f32 %v1046, 0.0
    %v1055 = vadd.f32 %v1053, %v1054
    %1056 = vst [vmem:[%s6] sm:$0x1] %v1027
    %1057 = vst [vmem:[#allocation3 + $0x7] sm:$0x1] %v1055
    %s1058 = scalar_lea.vmem [#allocation2], 1
    %v1059 = vld [vmem:[%s1058] ss:$8 sm:$0xf]
    %v1060 = vld [vmem:[%s1058] ss:$8 sm:$0x30]
    %v1061 = vor.u32 %v1059, %v1060
    %s1062 = scalar_lea.vmem [#allocation2], 6
    %v1063 = vld [vmem:[%s1062] ss:$8 sm:$0xf]
    %v1064 = vld [vmem:[%s1062] ss:$8 sm:$0x30]
    %v1065 = vor.u32 %v1063, %v1064
    %v1066 = vpack.c.bf16 %v1027, %v1027
    %1067 = vmatprep.subr.bf16.mxu0 %v654
    %1068 = vmatpush1.bf16.msra.mxu0 %v653
    %1069 = vmatprep.subr.bf16.mxu0 %v651
    %1070 = vmatpush1.bf16.msra.mxu0 %v650
    %1071 = vmatprep.subr.bf16.mxu0 %v648
    %1072 = vmatpush1.bf16.msra.mxu0 %v647
    %1073 = vmatprep.subr.bf16.mxu0 %v645
    %1074 = vmatpush1.bf16.msra.mxu0 %v644
    %1075 = vmatprep.subr.bf16.mxu0 %v642
    %1076 = vmatpush1.bf16.msra.mxu0 %v641
    %1077 = vmatprep.subr.bf16.mxu0 %v639
    %1078 = vmatpush1.bf16.msra.mxu0 %v638
    %1079 = vmatprep.subr.bf16.mxu0 %v636
    %1080 = vmatpush1.bf16.msra.mxu0 %v635
    %1081 = vmatprep.subr.bf16.mxu0 %v633
    %1082 = vmatpush1.bf16.msra.mxu0 %v632
    %1083 = vmatprep.subr.bf16.mxu0 0
    %1084 = vmatpush2.bf16.msra.mxu0 0
    %1085 = vmatprep.subr.bf16.mxu0 0
    %1086 = vmatpush2.bf16.msra.mxu0 0
    %1087 = vmatprep.subr.bf16.mxu0 0
    %1088 = vmatpush2.bf16.msra.mxu0 0
    %1089 = vmatprep.subr.bf16.mxu0 0
    %1090 = vmatpush2.bf16.msra.mxu0 0
    %1091 = vmatprep.subr.bf16.mxu0 0
    %1092 = vmatpush2.bf16.msra.mxu0 0
    %1093 = vmatprep.subr.bf16.mxu0 0
    %1094 = vmatpush2.bf16.msra.mxu0 0
    %1095 = vmatprep.subr.bf16.mxu0 0
    %1096 = vmatpush2.bf16.msra.mxu0 0
    %1097 = vmatprep.subr.bf16.mxu0 0
    %1098 = vmatpush2.bf16.msra.mxu0 0
    %1099 = vmatprep.mubr.bf16.mxu0 0
    %1100 = vmatmul.mubr.bf16.gmra.mxu0 %v1066
    %v1101 = vpop.f32.mrf.mxu0
    %v1102 = vadd.f32 %v684, %v1101
    %v1103 = vpop.f32.mrf.mxu0
    %v1104 = vadd.f32 %v688, %v1103
    %v1105 = vpop.f32.mrf.mxu0
    %v1106 = vpop.f32.mrf.mxu0
    %1107 = vdwg.mxu0
    %1108 = vmatprep.subr.bf16.mxu0 0
    %1109 = vmatpush1.bf16.msra.mxu0 %v655
    %1110 = vmatprep.subr.bf16.mxu0 0
    %1111 = vmatpush1.bf16.msra.mxu0 %v652
    %1112 = vmatprep.subr.bf16.mxu0 0
    %1113 = vmatpush1.bf16.msra.mxu0 %v649
    %1114 = vmatprep.subr.bf16.mxu0 0
    %1115 = vmatpush1.bf16.msra.mxu0 %v646
    %1116 = vmatprep.subr.bf16.mxu0 0
    %1117 = vmatpush1.bf16.msra.mxu0 %v643
    %1118 = vmatprep.subr.bf16.mxu0 0
    %1119 = vmatpush1.bf16.msra.mxu0 %v640
    %1120 = vmatprep.subr.bf16.mxu0 0
    %1121 = vmatpush1.bf16.msra.mxu0 %v637
    %1122 = vmatprep.subr.bf16.mxu0 0
    %1123 = vmatpush1.bf16.msra.mxu0 %v634
    %1124 = vmatprep.subr.bf16.mxu0 0
    %1125 = vmatpush2.bf16.msra.mxu0 0
    %1126 = vmatprep.subr.bf16.mxu0 0
    %1127 = vmatpush2.bf16.msra.mxu0 0
    %1128 = vmatprep.subr.bf16.mxu0 0
    %1129 = vmatpush2.bf16.msra.mxu0 0
    %1130 = vmatprep.subr.bf16.mxu0 0
    %1131 = vmatpush2.bf16.msra.mxu0 0
    %1132 = vmatprep.subr.bf16.mxu0 0
    %1133 = vmatpush2.bf16.msra.mxu0 0
    %1134 = vmatprep.subr.bf16.mxu0 0
    %1135 = vmatpush2.bf16.msra.mxu0 0
    %1136 = vmatprep.subr.bf16.mxu0 0
    %1137 = vmatpush2.bf16.msra.mxu0 0
    %1138 = vmatprep.subr.bf16.mxu0 0
    %1139 = vmatpush2.bf16.msra.mxu0 0
    %1140 = vmatprep.mubr.bf16.mxu0 0
    %1141 = vmatmul.mubr.bf16.gmra.mxu0 %v1066
    %v1142 = vpop.f32.mrf.mxu0
    %v1143 = vadd.f32 %v692, %v1142
    %v1144 = vpop.f32.mrf.mxu0
    %v1145 = vpop.f32.mrf.mxu0
    %v1146 = vpop.f32.mrf.mxu0
    %1147 = vdwg.mxu0
    %v1148 = vpack.c.bf16 %v1055, %v1055
    %1149 = vmatprep.subr.bf16.mxu0 %v879
    %1150 = vmatpush1.bf16.msra.mxu0 %v878
    %1151 = vmatprep.subr.bf16.mxu0 %v876
    %1152 = vmatpush1.bf16.msra.mxu0 %v875
    %1153 = vmatprep.subr.bf16.mxu0 %v873
    %1154 = vmatpush1.bf16.msra.mxu0 %v872
    %1155 = vmatprep.subr.bf16.mxu0 %v870
    %1156 = vmatpush1.bf16.msra.mxu0 %v869
    %1157 = vmatprep.subr.bf16.mxu0 %v867
    %1158 = vmatpush1.bf16.msra.mxu0 %v866
    %1159 = vmatprep.subr.bf16.mxu0 %v864
    %1160 = vmatpush1.bf16.msra.mxu0 %v863
    %1161 = vmatprep.subr.bf16.mxu0 %v861
    %1162 = vmatpush1.bf16.msra.mxu0 %v860
    %1163 = vmatprep.subr.bf16.mxu0 %v858
    %1164 = vmatpush1.bf16.msra.mxu0 %v857
    %1165 = vmatprep.subr.bf16.mxu0 0
    %1166 = vmatpush2.bf16.msra.mxu0 0
    %1167 = vmatprep.subr.bf16.mxu0 0
    %1168 = vmatpush2.bf16.msra.mxu0 0
    %1169 = vmatprep.subr.bf16.mxu0 0
    %1170 = vmatpush2.bf16.msra.mxu0 0
    %1171 = vmatprep.subr.bf16.mxu0 0
    %1172 = vmatpush2.bf16.msra.mxu0 0
    %1173 = vmatprep.subr.bf16.mxu0 0
    %1174 = vmatpush2.bf16.msra.mxu0 0
    %1175 = vmatprep.subr.bf16.mxu0 0
    %1176 = vmatpush2.bf16.msra.mxu0 0
    %1177 = vmatprep.subr.bf16.mxu0 0
    %1178 = vmatpush2.bf16.msra.mxu0 0
    %1179 = vmatprep.subr.bf16.mxu0 0
    %1180 = vmatpush2.bf16.msra.mxu0 0
    %1181 = vmatprep.mubr.bf16.mxu0 0
    %1182 = vmatmul.mubr.bf16.gmra.mxu0 %v1148
    %v1183 = vpop.f32.mrf.mxu0
    %v1184 = vadd.f32 %v909, %v1183
    %v1185 = vpop.f32.mrf.mxu0
    %v1186 = vadd.f32 %v913, %v1185
    %v1187 = vpop.f32.mrf.mxu0
    %v1188 = vpop.f32.mrf.mxu0
    %1189 = vdwg.mxu0
    %1190 = vmatprep.subr.bf16.mxu0 0
    %1191 = vmatpush1.bf16.msra.mxu0 %v880
    %1192 = vmatprep.subr.bf16.mxu0 0
    %1193 = vmatpush1.bf16.msra.mxu0 %v877
    %1194 = vmatprep.subr.bf16.mxu0 0
    %1195 = vmatpush1.bf16.msra.mxu0 %v874
    %1196 = vmatprep.subr.bf16.mxu0 0
    %1197 = vmatpush1.bf16.msra.mxu0 %v871
    %1198 = vmatprep.subr.bf16.mxu0 0
    %1199 = vmatpush1.bf16.msra.mxu0 %v868
    %1200 = vmatprep.subr.bf16.mxu0 0
    %1201 = vmatpush1.bf16.msra.mxu0 %v865
    %1202 = vmatprep.subr.bf16.mxu0 0
    %1203 = vmatpush1.bf16.msra.mxu0 %v862
    %1204 = vmatprep.subr.bf16.mxu0 0
    %1205 = vmatpush1.bf16.msra.mxu0 %v859
    %1206 = vmatprep.subr.bf16.mxu0 0
    %1207 = vmatpush2.bf16.msra.mxu0 0
    %1208 = vmatprep.subr.bf16.mxu0 0
    %1209 = vmatpush2.bf16.msra.mxu0 0
    %1210 = vmatprep.subr.bf16.mxu0 0
    %1211 = vmatpush2.bf16.msra.mxu0 0
    %1212 = vmatprep.subr.bf16.mxu0 0
    %1213 = vmatpush2.bf16.msra.mxu0 0
    %1214 = vmatprep.subr.bf16.mxu0 0
    %1215 = vmatpush2.bf16.msra.mxu0 0
    %1216 = vmatprep.subr.bf16.mxu0 0
    %1217 = vmatpush2.bf16.msra.mxu0 0
    %1218 = vmatprep.subr.bf16.mxu0 0
    %1219 = vmatpush2.bf16.msra.mxu0 0
    %1220 = vmatprep.subr.bf16.mxu0 0
    %1221 = vmatpush2.bf16.msra.mxu0 0
    %1222 = vmatprep.mubr.bf16.mxu0 0
    %1223 = vmatmul.mubr.bf16.gmra.mxu0 %v1148
    %v1224 = vpop.f32.mrf.mxu0
    %v1225 = vadd.f32 %v917, %v1224
    %v1226 = vpop.f32.mrf.mxu0
    %v1227 = vpop.f32.mrf.mxu0
    %v1228 = vpop.f32.mrf.mxu0
    %1229 = vdwg.mxu0
    %v1230 = vadd.f32 %v1061, %v1102
    %v1231 = vxor.u32 %v1230, 2147483648
    %v1232 = vmul.f32 %v1231, 1.442695
    %v1233 = vpow.pop %v1232
    %v1234 = vadd.f32 %v1233, 1.0
    %v1235 = vrcp.pop %v1234
    %v1236 = vmul.f32 1.0, %v1235
    %v1238 = vrot.slane %v1061, 1
    %v1240 = vadd.f32 %v1238, %v1104
    %v1241 = vxor.u32 %v1240, 2147483648
    %v1242 = vmul.f32 %v1241, 1.442695
    %v1243 = vpow.pop %v1242
    %v1244 = vadd.f32 %v1243, 1.0
    %v1245 = vrcp.pop %v1244
    %v1246 = vmul.f32 1.0, %v1245
    %v1247 = vmul.f32 %v1236, %v1143
    %v1248 = vrot.slane %v1061, 2
    %v1250 = vadd.f32 %v1248, %v1247
    %v1251 = vtanh.pop %v1250
    %v1252 = vsub.f32 1.0, %v1246
    %v1253 = vmul.f32 %v1252, %v1251
    %v1254 = vmul.f32 %v1246, %v1027
    %v1255 = vadd.f32 %v1253, %v1254
    %v1257 = vrot.slane %v1065, 3
    %v1259 = vadd.f32 %v1257, %v1184
    %v1260 = vxor.u32 %v1259, 2147483648
    %v1261 = vmul.f32 %v1260, 1.442695
    %v1262 = vpow.pop %v1261
    %v1263 = vadd.f32 %v1262, 1.0
    %v1264 = vrcp.pop %v1263
    %v1265 = vmul.f32 1.0, %v1264
    %v1266 = vrot.slane %v1065, 4
    %v1268 = vadd.f32 %v1266, %v1186
    %v1269 = vxor.u32 %v1268, 2147483648
    %v1270 = vmul.f32 %v1269, 1.442695
    %v1271 = vpow.pop %v1270
    %v1272 = vadd.f32 %v1271, 1.0
    %v1273 = vrcp.pop %v1272
    %v1274 = vmul.f32 1.0, %v1273
    %v1275 = vmul.f32 %v1265, %v1225
    %v1276 = vrot.slane %v1065, 5
    %v1278 = vadd.f32 %v1276, %v1275
    %v1279 = vtanh.pop %v1278
    %v1280 = vsub.f32 1.0, %v1274
    %v1281 = vmul.f32 %v1280, %v1279
    %v1282 = vmul.f32 %v1274, %v1055
    %v1283 = vadd.f32 %v1281, %v1282
    %1284 = vst [vmem:[%s6 + $0x1] sm:$0x1] %v1255
    %1285 = vst [vmem:[#allocation3 + $0x6] sm:$0x1] %v1283
    %s1286 = scalar_lea.vmem [#allocation2], 2
    %v1287 = vld [vmem:[%s1286] ss:$8 sm:$0xf]
    %v1288 = vld [vmem:[%s1286] ss:$8 sm:$0x30]
    %v1289 = vor.u32 %v1287, %v1288
    %s1290 = scalar_lea.vmem [#allocation2], 5
    %v1291 = vld [vmem:[%s1290] ss:$8 sm:$0xf]
    %v1292 = vld [vmem:[%s1290] ss:$8 sm:$0x30]
    %v1293 = vor.u32 %v1291, %v1292
    %v1294 = vpack.c.bf16 %v1255, %v1255
    %1295 = vmatprep.subr.bf16.mxu0 %v654
    %1296 = vmatpush1.bf16.msra.mxu0 %v653
    %1297 = vmatprep.subr.bf16.mxu0 %v651
    %1298 = vmatpush1.bf16.msra.mxu0 %v650
    %1299 = vmatprep.subr.bf16.mxu0 %v648
    %1300 = vmatpush1.bf16.msra.mxu0 %v647
    %1301 = vmatprep.subr.bf16.mxu0 %v645
    %1302 = vmatpush1.bf16.msra.mxu0 %v644
    %1303 = vmatprep.subr.bf16.mxu0 %v642
    %1304 = vmatpush1.bf16.msra.mxu0 %v641
    %1305 = vmatprep.subr.bf16.mxu0 %v639
    %1306 = vmatpush1.bf16.msra.mxu0 %v638
    %1307 = vmatprep.subr.bf16.mxu0 %v636
    %1308 = vmatpush1.bf16.msra.mxu0 %v635
    %1309 = vmatprep.subr.bf16.mxu0 %v633
    %1310 = vmatpush1.bf16.msra.mxu0 %v632
    %1311 = vmatprep.subr.bf16.mxu0 0
    %1312 = vmatpush2.bf16.msra.mxu0 0
    %1313 = vmatprep.subr.bf16.mxu0 0
    %1314 = vmatpush2.bf16.msra.mxu0 0
    %1315 = vmatprep.subr.bf16.mxu0 0
    %1316 = vmatpush2.bf16.msra.mxu0 0
    %1317 = vmatprep.subr.bf16.mxu0 0
    %1318 = vmatpush2.bf16.msra.mxu0 0
    %1319 = vmatprep.subr.bf16.mxu0 0
    %1320 = vmatpush2.bf16.msra.mxu0 0
    %1321 = vmatprep.subr.bf16.mxu0 0
    %1322 = vmatpush2.bf16.msra.mxu0 0
    %1323 = vmatprep.subr.bf16.mxu0 0
    %1324 = vmatpush2.bf16.msra.mxu0 0
    %1325 = vmatprep.subr.bf16.mxu0 0
    %1326 = vmatpush2.bf16.msra.mxu0 0
    %1327 = vmatprep.mubr.bf16.mxu0 0
    %1328 = vmatmul.mubr.bf16.gmra.mxu0 %v1294
    %v1329 = vpop.f32.mrf.mxu0
    %v1330 = vadd.f32 %v684, %v1329
    %v1331 = vpop.f32.mrf.mxu0
    %v1332 = vadd.f32 %v688, %v1331
    %v1333 = vpop.f32.mrf.mxu0
    %v1334 = vpop.f32.mrf.mxu0
    %1335 = vdwg.mxu0
    %1336 = vmatprep.subr.bf16.mxu0 0
    %1337 = vmatpush1.bf16.msra.mxu0 %v655
    %1338 = vmatprep.subr.bf16.mxu0 0
    %1339 = vmatpush1.bf16.msra.mxu0 %v652
    %1340 = vmatprep.subr.bf16.mxu0 0
    %1341 = vmatpush1.bf16.msra.mxu0 %v649
    %1342 = vmatprep.subr.bf16.mxu0 0
    %1343 = vmatpush1.bf16.msra.mxu0 %v646
    %1344 = vmatprep.subr.bf16.mxu0 0
    %1345 = vmatpush1.bf16.msra.mxu0 %v643
    %1346 = vmatprep.subr.bf16.mxu0 0
    %1347 = vmatpush1.bf16.msra.mxu0 %v640
    %1348 = vmatprep.subr.bf16.mxu0 0
    %1349 = vmatpush1.bf16.msra.mxu0 %v637
    %1350 = vmatprep.subr.bf16.mxu0 0
    %1351 = vmatpush1.bf16.msra.mxu0 %v634
    %1352 = vmatprep.subr.bf16.mxu0 0
    %1353 = vmatpush2.bf16.msra.mxu0 0
    %1354 = vmatprep.subr.bf16.mxu0 0
    %1355 = vmatpush2.bf16.msra.mxu0 0
    %1356 = vmatprep.subr.bf16.mxu0 0
    %1357 = vmatpush2.bf16.msra.mxu0 0
    %1358 = vmatprep.subr.bf16.mxu0 0
    %1359 = vmatpush2.bf16.msra.mxu0 0
    %1360 = vmatprep.subr.bf16.mxu0 0
    %1361 = vmatpush2.bf16.msra.mxu0 0
    %1362 = vmatprep.subr.bf16.mxu0 0
    %1363 = vmatpush2.bf16.msra.mxu0 0
    %1364 = vmatprep.subr.bf16.mxu0 0
    %1365 = vmatpush2.bf16.msra.mxu0 0
    %1366 = vmatprep.subr.bf16.mxu0 0
    %1367 = vmatpush2.bf16.msra.mxu0 0
    %1368 = vmatprep.mubr.bf16.mxu0 0
    %1369 = vmatmul.mubr.bf16.gmra.mxu0 %v1294
    %v1370 = vpop.f32.mrf.mxu0
    %v1371 = vadd.f32 %v692, %v1370
    %v1372 = vpop.f32.mrf.mxu0
    %v1373 = vpop.f32.mrf.mxu0
    %v1374 = vpop.f32.mrf.mxu0
    %1375 = vdwg.mxu0
    %v1376 = vpack.c.bf16 %v1283, %v1283
    %1377 = vmatprep.subr.bf16.mxu0 %v879
    %1378 = vmatpush1.bf16.msra.mxu0 %v878
    %1379 = vmatprep.subr.bf16.mxu0 %v876
    %1380 = vmatpush1.bf16.msra.mxu0 %v875
    %1381 = vmatprep.subr.bf16.mxu0 %v873
    %1382 = vmatpush1.bf16.msra.mxu0 %v872
    %1383 = vmatprep.subr.bf16.mxu0 %v870
    %1384 = vmatpush1.bf16.msra.mxu0 %v869
    %1385 = vmatprep.subr.bf16.mxu0 %v867
    %1386 = vmatpush1.bf16.msra.mxu0 %v866
    %1387 = vmatprep.subr.bf16.mxu0 %v864
    %1388 = vmatpush1.bf16.msra.mxu0 %v863
    %1389 = vmatprep.subr.bf16.mxu0 %v861
    %1390 = vmatpush1.bf16.msra.mxu0 %v860
    %1391 = vmatprep.subr.bf16.mxu0 %v858
    %1392 = vmatpush1.bf16.msra.mxu0 %v857
    %1393 = vmatprep.subr.bf16.mxu0 0
    %1394 = vmatpush2.bf16.msra.mxu0 0
    %1395 = vmatprep.subr.bf16.mxu0 0
    %1396 = vmatpush2.bf16.msra.mxu0 0
    %1397 = vmatprep.subr.bf16.mxu0 0
    %1398 = vmatpush2.bf16.msra.mxu0 0
    %1399 = vmatprep.subr.bf16.mxu0 0
    %1400 = vmatpush2.bf16.msra.mxu0 0
    %1401 = vmatprep.subr.bf16.mxu0 0
    %1402 = vmatpush2.bf16.msra.mxu0 0
    %1403 = vmatprep.subr.bf16.mxu0 0
    %1404 = vmatpush2.bf16.msra.mxu0 0
    %1405 = vmatprep.subr.bf16.mxu0 0
    %1406 = vmatpush2.bf16.msra.mxu0 0
    %1407 = vmatprep.subr.bf16.mxu0 0
    %1408 = vmatpush2.bf16.msra.mxu0 0
    %1409 = vmatprep.mubr.bf16.mxu0 0
    %1410 = vmatmul.mubr.bf16.gmra.mxu0 %v1376
    %v1411 = vpop.f32.mrf.mxu0
    %v1412 = vadd.f32 %v909, %v1411
    %v1413 = vpop.f32.mrf.mxu0
    %v1414 = vadd.f32 %v913, %v1413
    %v1415 = vpop.f32.mrf.mxu0
    %v1416 = vpop.f32.mrf.mxu0
    %1417 = vdwg.mxu0
    %1418 = vmatprep.subr.bf16.mxu0 0
    %1419 = vmatpush1.bf16.msra.mxu0 %v880
    %1420 = vmatprep.subr.bf16.mxu0 0
    %1421 = vmatpush1.bf16.msra.mxu0 %v877
    %1422 = vmatprep.subr.bf16.mxu0 0
    %1423 = vmatpush1.bf16.msra.mxu0 %v874
    %1424 = vmatprep.subr.bf16.mxu0 0
    %1425 = vmatpush1.bf16.msra.mxu0 %v871
    %1426 = vmatprep.subr.bf16.mxu0 0
    %1427 = vmatpush1.bf16.msra.mxu0 %v868
    %1428 = vmatprep.subr.bf16.mxu0 0
    %1429 = vmatpush1.bf16.msra.mxu0 %v865
    %1430 = vmatprep.subr.bf16.mxu0 0
    %1431 = vmatpush1.bf16.msra.mxu0 %v862
    %1432 = vmatprep.subr.bf16.mxu0 0
    %1433 = vmatpush1.bf16.msra.mxu0 %v859
    %1434 = vmatprep.subr.bf16.mxu0 0
    %1435 = vmatpush2.bf16.msra.mxu0 0
    %1436 = vmatprep.subr.bf16.mxu0 0
    %1437 = vmatpush2.bf16.msra.mxu0 0
    %1438 = vmatprep.subr.bf16.mxu0 0
    %1439 = vmatpush2.bf16.msra.mxu0 0
    %1440 = vmatprep.subr.bf16.mxu0 0
    %1441 = vmatpush2.bf16.msra.mxu0 0
    %1442 = vmatprep.subr.bf16.mxu0 0
    %1443 = vmatpush2.bf16.msra.mxu0 0
    %1444 = vmatprep.subr.bf16.mxu0 0
    %1445 = vmatpush2.bf16.msra.mxu0 0
    %1446 = vmatprep.subr.bf16.mxu0 0
    %1447 = vmatpush2.bf16.msra.mxu0 0
    %1448 = vmatprep.subr.bf16.mxu0 0
    %1449 = vmatpush2.bf16.msra.mxu0 0
    %1450 = vmatprep.mubr.bf16.mxu0 0
    %1451 = vmatmul.mubr.bf16.gmra.mxu0 %v1376
    %v1452 = vpop.f32.mrf.mxu0
    %v1453 = vadd.f32 %v917, %v1452
    %v1454 = vpop.f32.mrf.mxu0
    %v1455 = vpop.f32.mrf.mxu0
    %v1456 = vpop.f32.mrf.mxu0
    %1457 = vdwg.mxu0
    %v1458 = vadd.f32 %v1289, %v1330
    %v1459 = vxor.u32 %v1458, 2147483648
    %v1460 = vmul.f32 %v1459, 1.442695
    %v1461 = vpow.pop %v1460
    %v1462 = vadd.f32 %v1461, 1.0
    %v1463 = vrcp.pop %v1462
    %v1464 = vmul.f32 1.0, %v1463
    %v1466 = vrot.slane %v1289, 1
    %v1468 = vadd.f32 %v1466, %v1332
    %v1469 = vxor.u32 %v1468, 2147483648
    %v1470 = vmul.f32 %v1469, 1.442695
    %v1471 = vpow.pop %v1470
    %v1472 = vadd.f32 %v1471, 1.0
    %v1473 = vrcp.pop %v1472
    %v1474 = vmul.f32 1.0, %v1473
    %v1475 = vmul.f32 %v1464, %v1371
    %v1476 = vrot.slane %v1289, 2
    %v1478 = vadd.f32 %v1476, %v1475
    %v1479 = vtanh.pop %v1478
    %v1480 = vsub.f32 1.0, %v1474
    %v1481 = vmul.f32 %v1480, %v1479
    %v1482 = vmul.f32 %v1474, %v1255
    %v1483 = vadd.f32 %v1481, %v1482
    %v1485 = vrot.slane %v1293, 3
    %v1487 = vadd.f32 %v1485, %v1412
    %v1488 = vxor.u32 %v1487, 2147483648
    %v1489 = vmul.f32 %v1488, 1.442695
    %v1490 = vpow.pop %v1489
    %v1491 = vadd.f32 %v1490, 1.0
    %v1492 = vrcp.pop %v1491
    %v1493 = vmul.f32 1.0, %v1492
    %v1494 = vrot.slane %v1293, 4
    %v1496 = vadd.f32 %v1494, %v1414
    %v1497 = vxor.u32 %v1496, 2147483648
    %v1498 = vmul.f32 %v1497, 1.442695
    %v1499 = vpow.pop %v1498
    %v1500 = vadd.f32 %v1499, 1.0
    %v1501 = vrcp.pop %v1500
    %v1502 = vmul.f32 1.0, %v1501
    %v1503 = vmul.f32 %v1493, %v1453
    %v1504 = vrot.slane %v1293, 5
    %v1506 = vadd.f32 %v1504, %v1503
    %v1507 = vtanh.pop %v1506
    %v1508 = vsub.f32 1.0, %v1502
    %v1509 = vmul.f32 %v1508, %v1507
    %v1510 = vmul.f32 %v1502, %v1283
    %v1511 = vadd.f32 %v1509, %v1510
    %1512 = vst [vmem:[%s6 + $0x2] sm:$0x1] %v1483
    %1513 = vst [vmem:[#allocation3 + $0x5] sm:$0x1] %v1511
    %s1514 = scalar_lea.vmem [#allocation2], 3
    %v1515 = vld [vmem:[%s1514] ss:$8 sm:$0xf]
    %v1516 = vld [vmem:[%s1514] ss:$8 sm:$0x30]
    %v1517 = vor.u32 %v1515, %v1516
    %s1518 = scalar_lea.vmem [#allocation2], 4
    %v1519 = vld [vmem:[%s1518] ss:$8 sm:$0xf]
    %v1520 = vld [vmem:[%s1518] ss:$8 sm:$0x30]
    %v1521 = vor.u32 %v1519, %v1520
    %v1522 = vpack.c.bf16 %v1483, %v1483
    %1523 = vmatprep.subr.bf16.mxu0 %v654
    %1524 = vmatpush1.bf16.msra.mxu0 %v653
    %1525 = vmatprep.subr.bf16.mxu0 %v651
    %1526 = vmatpush1.bf16.msra.mxu0 %v650
    %1527 = vmatprep.subr.bf16.mxu0 %v648
    %1528 = vmatpush1.bf16.msra.mxu0 %v647
    %1529 = vmatprep.subr.bf16.mxu0 %v645
    %1530 = vmatpush1.bf16.msra.mxu0 %v644
    %1531 = vmatprep.subr.bf16.mxu0 %v642
    %1532 = vmatpush1.bf16.msra.mxu0 %v641
    %1533 = vmatprep.subr.bf16.mxu0 %v639
    %1534 = vmatpush1.bf16.msra.mxu0 %v638
    %1535 = vmatprep.subr.bf16.mxu0 %v636
    %1536 = vmatpush1.bf16.msra.mxu0 %v635
    %1537 = vmatprep.subr.bf16.mxu0 %v633
    %1538 = vmatpush1.bf16.msra.mxu0 %v632
    %1539 = vmatprep.subr.bf16.mxu0 0
    %1540 = vmatpush2.bf16.msra.mxu0 0
    %1541 = vmatprep.subr.bf16.mxu0 0
    %1542 = vmatpush2.bf16.msra.mxu0 0
    %1543 = vmatprep.subr.bf16.mxu0 0
    %1544 = vmatpush2.bf16.msra.mxu0 0
    %1545 = vmatprep.subr.bf16.mxu0 0
    %1546 = vmatpush2.bf16.msra.mxu0 0
    %1547 = vmatprep.subr.bf16.mxu0 0
    %1548 = vmatpush2.bf16.msra.mxu0 0
    %1549 = vmatprep.subr.bf16.mxu0 0
    %1550 = vmatpush2.bf16.msra.mxu0 0
    %1551 = vmatprep.subr.bf16.mxu0 0
    %1552 = vmatpush2.bf16.msra.mxu0 0
    %1553 = vmatprep.subr.bf16.mxu0 0
    %1554 = vmatpush2.bf16.msra.mxu0 0
    %1555 = vmatprep.mubr.bf16.mxu0 0
    %1556 = vmatmul.mubr.bf16.gmra.mxu0 %v1522
    %v1557 = vpop.f32.mrf.mxu0
    %v1558 = vadd.f32 %v684, %v1557
    %v1559 = vpop.f32.mrf.mxu0
    %v1560 = vadd.f32 %v688, %v1559
    %v1561 = vpop.f32.mrf.mxu0
    %v1562 = vpop.f32.mrf.mxu0
    %1563 = vdwg.mxu0
    %1564 = vmatprep.subr.bf16.mxu0 0
    %1565 = vmatpush1.bf16.msra.mxu0 %v655
    %1566 = vmatprep.subr.bf16.mxu0 0
    %1567 = vmatpush1.bf16.msra.mxu0 %v652
    %1568 = vmatprep.subr.bf16.mxu0 0
    %1569 = vmatpush1.bf16.msra.mxu0 %v649
    %1570 = vmatprep.subr.bf16.mxu0 0
    %1571 = vmatpush1.bf16.msra.mxu0 %v646
    %1572 = vmatprep.subr.bf16.mxu0 0
    %1573 = vmatpush1.bf16.msra.mxu0 %v643
    %1574 = vmatprep.subr.bf16.mxu0 0
    %1575 = vmatpush1.bf16.msra.mxu0 %v640
    %1576 = vmatprep.subr.bf16.mxu0 0
    %1577 = vmatpush1.bf16.msra.mxu0 %v637
    %1578 = vmatprep.subr.bf16.mxu0 0
    %1579 = vmatpush1.bf16.msra.mxu0 %v634
    %1580 = vmatprep.subr.bf16.mxu0 0
    %1581 = vmatpush2.bf16.msra.mxu0 0
    %1582 = vmatprep.subr.bf16.mxu0 0
    %1583 = vmatpush2.bf16.msra.mxu0 0
    %1584 = vmatprep.subr.bf16.mxu0 0
    %1585 = vmatpush2.bf16.msra.mxu0 0
    %1586 = vmatprep.subr.bf16.mxu0 0
    %1587 = vmatpush2.bf16.msra.mxu0 0
    %1588 = vmatprep.subr.bf16.mxu0 0
    %1589 = vmatpush2.bf16.msra.mxu0 0
    %1590 = vmatprep.subr.bf16.mxu0 0
    %1591 = vmatpush2.bf16.msra.mxu0 0
    %1592 = vmatprep.subr.bf16.mxu0 0
    %1593 = vmatpush2.bf16.msra.mxu0 0
    %1594 = vmatprep.subr.bf16.mxu0 0
    %1595 = vmatpush2.bf16.msra.mxu0 0
    %1596 = vmatprep.mubr.bf16.mxu0 0
    %1597 = vmatmul.mubr.bf16.gmra.mxu0 %v1522
    %v1598 = vpop.f32.mrf.mxu0
    %v1599 = vadd.f32 %v692, %v1598
    %v1600 = vpop.f32.mrf.mxu0
    %v1601 = vpop.f32.mrf.mxu0
    %v1602 = vpop.f32.mrf.mxu0
    %1603 = vdwg.mxu0
    %v1604 = vpack.c.bf16 %v1511, %v1511
    %1605 = vmatprep.subr.bf16.mxu0 %v879
    %1606 = vmatpush1.bf16.msra.mxu0 %v878
    %1607 = vmatprep.subr.bf16.mxu0 %v876
    %1608 = vmatpush1.bf16.msra.mxu0 %v875
    %1609 = vmatprep.subr.bf16.mxu0 %v873
    %1610 = vmatpush1.bf16.msra.mxu0 %v872
    %1611 = vmatprep.subr.bf16.mxu0 %v870
    %1612 = vmatpush1.bf16.msra.mxu0 %v869
    %1613 = vmatprep.subr.bf16.mxu0 %v867
    %1614 = vmatpush1.bf16.msra.mxu0 %v866
    %1615 = vmatprep.subr.bf16.mxu0 %v864
    %1616 = vmatpush1.bf16.msra.mxu0 %v863
    %1617 = vmatprep.subr.bf16.mxu0 %v861
    %1618 = vmatpush1.bf16.msra.mxu0 %v860
    %1619 = vmatprep.subr.bf16.mxu0 %v858
    %1620 = vmatpush1.bf16.msra.mxu0 %v857
    %1621 = vmatprep.subr.bf16.mxu0 0
    %1622 = vmatpush2.bf16.msra.mxu0 0
    %1623 = vmatprep.subr.bf16.mxu0 0
    %1624 = vmatpush2.bf16.msra.mxu0 0
    %1625 = vmatprep.subr.bf16.mxu0 0
    %1626 = vmatpush2.bf16.msra.mxu0 0
    %1627 = vmatprep.subr.bf16.mxu0 0
    %1628 = vmatpush2.bf16.msra.mxu0 0
    %1629 = vmatprep.subr.bf16.mxu0 0
    %1630 = vmatpush2.bf16.msra.mxu0 0
    %1631 = vmatprep.subr.bf16.mxu0 0
    %1632 = vmatpush2.bf16.msra.mxu0 0
    %1633 = vmatprep.subr.bf16.mxu0 0
    %1634 = vmatpush2.bf16.msra.mxu0 0
    %1635 = vmatprep.subr.bf16.mxu0 0
    %1636 = vmatpush2.bf16.msra.mxu0 0
    %1637 = vmatprep.mubr.bf16.mxu0 0
    %1638 = vmatmul.mubr.bf16.gmra.mxu0 %v1604
    %v1639 = vpop.f32.mrf.mxu0
    %v1640 = vadd.f32 %v909, %v1639
    %v1641 = vpop.f32.mrf.mxu0
    %v1642 = vadd.f32 %v913, %v1641
    %v1643 = vpop.f32.mrf.mxu0
    %v1644 = vpop.f32.mrf.mxu0
    %1645 = vdwg.mxu0
    %1646 = vmatprep.subr.bf16.mxu0 0
    %1647 = vmatpush1.bf16.msra.mxu0 %v880
    %1648 = vmatprep.subr.bf16.mxu0 0
    %1649 = vmatpush1.bf16.msra.mxu0 %v877
    %1650 = vmatprep.subr.bf16.mxu0 0
    %1651 = vmatpush1.bf16.msra.mxu0 %v874
    %1652 = vmatprep.subr.bf16.mxu0 0
    %1653 = vmatpush1.bf16.msra.mxu0 %v871
    %1654 = vmatprep.subr.bf16.mxu0 0
    %1655 = vmatpush1.bf16.msra.mxu0 %v868
    %1656 = vmatprep.subr.bf16.mxu0 0
    %1657 = vmatpush1.bf16.msra.mxu0 %v865
    %1658 = vmatprep.subr.bf16.mxu0 0
    %1659 = vmatpush1.bf16.msra.mxu0 %v862
    %1660 = vmatprep.subr.bf16.mxu0 0
    %1661 = vmatpush1.bf16.msra.mxu0 %v859
    %1662 = vmatprep.subr.bf16.mxu0 0
    %1663 = vmatpush2.bf16.msra.mxu0 0
    %1664 = vmatprep.subr.bf16.mxu0 0
    %1665 = vmatpush2.bf16.msra.mxu0 0
    %1666 = vmatprep.subr.bf16.mxu0 0
    %1667 = vmatpush2.bf16.msra.mxu0 0
    %1668 = vmatprep.subr.bf16.mxu0 0
    %1669 = vmatpush2.bf16.msra.mxu0 0
    %1670 = vmatprep.subr.bf16.mxu0 0
    %1671 = vmatpush2.bf16.msra.mxu0 0
    %1672 = vmatprep.subr.bf16.mxu0 0
    %1673 = vmatpush2.bf16.msra.mxu0 0
    %1674 = vmatprep.subr.bf16.mxu0 0
    %1675 = vmatpush2.bf16.msra.mxu0 0
    %1676 = vmatprep.subr.bf16.mxu0 0
    %1677 = vmatpush2.bf16.msra.mxu0 0
    %1678 = vmatprep.mubr.bf16.mxu0 0
    %1679 = vmatmul.mubr.bf16.gmra.mxu0 %v1604
    %v1680 = vpop.f32.mrf.mxu0
    %v1681 = vadd.f32 %v917, %v1680
    %v1682 = vpop.f32.mrf.mxu0
    %v1683 = vpop.f32.mrf.mxu0
    %v1684 = vpop.f32.mrf.mxu0
    %1685 = vdwg.mxu0
    %v1686 = vadd.f32 %v1517, %v1558
    %v1687 = vxor.u32 %v1686, 2147483648
    %v1688 = vmul.f32 %v1687, 1.442695
    %v1689 = vpow.pop %v1688
    %v1690 = vadd.f32 %v1689, 1.0
    %v1691 = vrcp.pop %v1690
    %v1692 = vmul.f32 1.0, %v1691
    %v1694 = vrot.slane %v1517, 1
    %v1696 = vadd.f32 %v1694, %v1560
    %v1697 = vxor.u32 %v1696, 2147483648
    %v1698 = vmul.f32 %v1697, 1.442695
    %v1699 = vpow.pop %v1698
    %v1700 = vadd.f32 %v1699, 1.0
    %v1701 = vrcp.pop %v1700
    %v1702 = vmul.f32 1.0, %v1701
    %v1703 = vmul.f32 %v1692, %v1599
    %v1704 = vrot.slane %v1517, 2
    %v1706 = vadd.f32 %v1704, %v1703
    %v1707 = vtanh.pop %v1706
    %v1708 = vsub.f32 1.0, %v1702
    %v1709 = vmul.f32 %v1708, %v1707
    %v1710 = vmul.f32 %v1702, %v1483
    %v1711 = vadd.f32 %v1709, %v1710
    %v1713 = vrot.slane %v1521, 3
    %v1715 = vadd.f32 %v1713, %v1640
    %v1716 = vxor.u32 %v1715, 2147483648
    %v1717 = vmul.f32 %v1716, 1.442695
    %v1718 = vpow.pop %v1717
    %v1719 = vadd.f32 %v1718, 1.0
    %v1720 = vrcp.pop %v1719
    %v1721 = vmul.f32 1.0, %v1720
    %v1722 = vrot.slane %v1521, 4
    %v1724 = vadd.f32 %v1722, %v1642
    %v1725 = vxor.u32 %v1724, 2147483648
    %v1726 = vmul.f32 %v1725, 1.442695
    %v1727 = vpow.pop %v1726
    %v1728 = vadd.f32 %v1727, 1.0
    %v1729 = vrcp.pop %v1728
    %v1730 = vmul.f32 1.0, %v1729
    %v1731 = vmul.f32 %v1721, %v1681
    %v1732 = vrot.slane %v1521, 5
    %v1734 = vadd.f32 %v1732, %v1731
    %v1735 = vtanh.pop %v1734
    %v1736 = vsub.f32 1.0, %v1730
    %v1737 = vmul.f32 %v1736, %v1735
    %v1738 = vmul.f32 %v1730, %v1511
    %v1739 = vadd.f32 %v1737, %v1738
    %1740 = vst [vmem:[%s6 + $0x3] sm:$0x1] %v1711
    %1741 = vst [vmem:[#allocation3 + $0x4] sm:$0x1] %v1739
    %v1742 = vld [vmem:[%s1518] ss:$8 sm:$0xf]
    %v1743 = vld [vmem:[%s1518] ss:$8 sm:$0x30]
    %v1744 = vor.u32 %v1742, %v1743
    %v1745 = vld [vmem:[%s1514] ss:$8 sm:$0xf]
    %v1746 = vld [vmem:[%s1514] ss:$8 sm:$0x30]
    %v1747 = vor.u32 %v1745, %v1746
    %v1748 = vpack.c.bf16 %v1711, %v1711
    %1749 = vmatprep.subr.bf16.mxu0 %v654
    %1750 = vmatpush1.bf16.msra.mxu0 %v653
    %1751 = vmatprep.subr.bf16.mxu0 %v651
    %1752 = vmatpush1.bf16.msra.mxu0 %v650
    %1753 = vmatprep.subr.bf16.mxu0 %v648
    %1754 = vmatpush1.bf16.msra.mxu0 %v647
    %1755 = vmatprep.subr.bf16.mxu0 %v645
    %1756 = vmatpush1.bf16.msra.mxu0 %v644
    %1757 = vmatprep.subr.bf16.mxu0 %v642
    %1758 = vmatpush1.bf16.msra.mxu0 %v641
    %1759 = vmatprep.subr.bf16.mxu0 %v639
    %1760 = vmatpush1.bf16.msra.mxu0 %v638
    %1761 = vmatprep.subr.bf16.mxu0 %v636
    %1762 = vmatpush1.bf16.msra.mxu0 %v635
    %1763 = vmatprep.subr.bf16.mxu0 %v633
    %1764 = vmatpush1.bf16.msra.mxu0 %v632
    %1765 = vmatprep.subr.bf16.mxu0 0
    %1766 = vmatpush2.bf16.msra.mxu0 0
    %1767 = vmatprep.subr.bf16.mxu0 0
    %1768 = vmatpush2.bf16.msra.mxu0 0
    %1769 = vmatprep.subr.bf16.mxu0 0
    %1770 = vmatpush2.bf16.msra.mxu0 0
    %1771 = vmatprep.subr.bf16.mxu0 0
    %1772 = vmatpush2.bf16.msra.mxu0 0
    %1773 = vmatprep.subr.bf16.mxu0 0
    %1774 = vmatpush2.bf16.msra.mxu0 0
    %1775 = vmatprep.subr.bf16.mxu0 0
    %1776 = vmatpush2.bf16.msra.mxu0 0
    %1777 = vmatprep.subr.bf16.mxu0 0
    %1778 = vmatpush2.bf16.msra.mxu0 0
    %1779 = vmatprep.subr.bf16.mxu0 0
    %1780 = vmatpush2.bf16.msra.mxu0 0
    %1781 = vmatprep.mubr.bf16.mxu0 0
    %1782 = vmatmul.mubr.bf16.gmra.mxu0 %v1748
    %v1783 = vpop.f32.mrf.mxu0
    %v1784 = vadd.f32 %v684, %v1783
    %v1785 = vpop.f32.mrf.mxu0
    %v1786 = vadd.f32 %v688, %v1785
    %v1787 = vpop.f32.mrf.mxu0
    %v1788 = vpop.f32.mrf.mxu0
    %1789 = vdwg.mxu0
    %1790 = vmatprep.subr.bf16.mxu0 0
    %1791 = vmatpush1.bf16.msra.mxu0 %v655
    %1792 = vmatprep.subr.bf16.mxu0 0
    %1793 = vmatpush1.bf16.msra.mxu0 %v652
    %1794 = vmatprep.subr.bf16.mxu0 0
    %1795 = vmatpush1.bf16.msra.mxu0 %v649
    %1796 = vmatprep.subr.bf16.mxu0 0
    %1797 = vmatpush1.bf16.msra.mxu0 %v646
    %1798 = vmatprep.subr.bf16.mxu0 0
    %1799 = vmatpush1.bf16.msra.mxu0 %v643
    %1800 = vmatprep.subr.bf16.mxu0 0
    %1801 = vmatpush1.bf16.msra.mxu0 %v640
    %1802 = vmatprep.subr.bf16.mxu0 0
    %1803 = vmatpush1.bf16.msra.mxu0 %v637
    %1804 = vmatprep.subr.bf16.mxu0 0
    %1805 = vmatpush1.bf16.msra.mxu0 %v634
    %1806 = vmatprep.subr.bf16.mxu0 0
    %1807 = vmatpush2.bf16.msra.mxu0 0
    %1808 = vmatprep.subr.bf16.mxu0 0
    %1809 = vmatpush2.bf16.msra.mxu0 0
    %1810 = vmatprep.subr.bf16.mxu0 0
    %1811 = vmatpush2.bf16.msra.mxu0 0
    %1812 = vmatprep.subr.bf16.mxu0 0
    %1813 = vmatpush2.bf16.msra.mxu0 0
    %1814 = vmatprep.subr.bf16.mxu0 0
    %1815 = vmatpush2.bf16.msra.mxu0 0
    %1816 = vmatprep.subr.bf16.mxu0 0
    %1817 = vmatpush2.bf16.msra.mxu0 0
    %1818 = vmatprep.subr.bf16.mxu0 0
    %1819 = vmatpush2.bf16.msra.mxu0 0
    %1820 = vmatprep.subr.bf16.mxu0 0
    %1821 = vmatpush2.bf16.msra.mxu0 0
    %1822 = vmatprep.mubr.bf16.mxu0 0
    %1823 = vmatmul.mubr.bf16.gmra.mxu0 %v1748
    %v1824 = vpop.f32.mrf.mxu0
    %v1825 = vadd.f32 %v692, %v1824
    %v1826 = vpop.f32.mrf.mxu0
    %v1827 = vpop.f32.mrf.mxu0
    %v1828 = vpop.f32.mrf.mxu0
    %1829 = vdwg.mxu0
    %v1830 = vpack.c.bf16 %v1739, %v1739
    %1831 = vmatprep.subr.bf16.mxu0 %v879
    %1832 = vmatpush1.bf16.msra.mxu0 %v878
    %1833 = vmatprep.subr.bf16.mxu0 %v876
    %1834 = vmatpush1.bf16.msra.mxu0 %v875
    %1835 = vmatprep.subr.bf16.mxu0 %v873
    %1836 = vmatpush1.bf16.msra.mxu0 %v872
    %1837 = vmatprep.subr.bf16.mxu0 %v870
    %1838 = vmatpush1.bf16.msra.mxu0 %v869
    %1839 = vmatprep.subr.bf16.mxu0 %v867
    %1840 = vmatpush1.bf16.msra.mxu0 %v866
    %1841 = vmatprep.subr.bf16.mxu0 %v864
    %1842 = vmatpush1.bf16.msra.mxu0 %v863
    %1843 = vmatprep.subr.bf16.mxu0 %v861
    %1844 = vmatpush1.bf16.msra.mxu0 %v860
    %1845 = vmatprep.subr.bf16.mxu0 %v858
    %1846 = vmatpush1.bf16.msra.mxu0 %v857
    %1847 = vmatprep.subr.bf16.mxu0 0
    %1848 = vmatpush2.bf16.msra.mxu0 0
    %1849 = vmatprep.subr.bf16.mxu0 0
    %1850 = vmatpush2.bf16.msra.mxu0 0
    %1851 = vmatprep.subr.bf16.mxu0 0
    %1852 = vmatpush2.bf16.msra.mxu0 0
    %1853 = vmatprep.subr.bf16.mxu0 0
    %1854 = vmatpush2.bf16.msra.mxu0 0
    %1855 = vmatprep.subr.bf16.mxu0 0
    %1856 = vmatpush2.bf16.msra.mxu0 0
    %1857 = vmatprep.subr.bf16.mxu0 0
    %1858 = vmatpush2.bf16.msra.mxu0 0
    %1859 = vmatprep.subr.bf16.mxu0 0
    %1860 = vmatpush2.bf16.msra.mxu0 0
    %1861 = vmatprep.subr.bf16.mxu0 0
    %1862 = vmatpush2.bf16.msra.mxu0 0
    %1863 = vmatprep.mubr.bf16.mxu0 0
    %1864 = vmatmul.mubr.bf16.gmra.mxu0 %v1830
    %v1865 = vpop.f32.mrf.mxu0
    %v1866 = vadd.f32 %v909, %v1865
    %v1867 = vpop.f32.mrf.mxu0
    %v1868 = vadd.f32 %v913, %v1867
    %v1869 = vpop.f32.mrf.mxu0
    %v1870 = vpop.f32.mrf.mxu0
    %1871 = vdwg.mxu0
    %1872 = vmatprep.subr.bf16.mxu0 0
    %1873 = vmatpush1.bf16.msra.mxu0 %v880
    %1874 = vmatprep.subr.bf16.mxu0 0
    %1875 = vmatpush1.bf16.msra.mxu0 %v877
    %1876 = vmatprep.subr.bf16.mxu0 0
    %1877 = vmatpush1.bf16.msra.mxu0 %v874
    %1878 = vmatprep.subr.bf16.mxu0 0
    %1879 = vmatpush1.bf16.msra.mxu0 %v871
    %1880 = vmatprep.subr.bf16.mxu0 0
    %1881 = vmatpush1.bf16.msra.mxu0 %v868
    %1882 = vmatprep.subr.bf16.mxu0 0
    %1883 = vmatpush1.bf16.msra.mxu0 %v865
    %1884 = vmatprep.subr.bf16.mxu0 0
    %1885 = vmatpush1.bf16.msra.mxu0 %v862
    %1886 = vmatprep.subr.bf16.mxu0 0
    %1887 = vmatpush1.bf16.msra.mxu0 %v859
    %1888 = vmatprep.subr.bf16.mxu0 0
    %1889 = vmatpush2.bf16.msra.mxu0 0
    %1890 = vmatprep.subr.bf16.mxu0 0
    %1891 = vmatpush2.bf16.msra.mxu0 0
    %1892 = vmatprep.subr.bf16.mxu0 0
    %1893 = vmatpush2.bf16.msra.mxu0 0
    %1894 = vmatprep.subr.bf16.mxu0 0
    %1895 = vmatpush2.bf16.msra.mxu0 0
    %1896 = vmatprep.subr.bf16.mxu0 0
    %1897 = vmatpush2.bf16.msra.mxu0 0
    %1898 = vmatprep.subr.bf16.mxu0 0
    %1899 = vmatpush2.bf16.msra.mxu0 0
    %1900 = vmatprep.subr.bf16.mxu0 0
    %1901 = vmatpush2.bf16.msra.mxu0 0
    %1902 = vmatprep.subr.bf16.mxu0 0
    %1903 = vmatpush2.bf16.msra.mxu0 0
    %1904 = vmatprep.mubr.bf16.mxu0 0
    %1905 = vmatmul.mubr.bf16.gmra.mxu0 %v1830
    %v1906 = vpop.f32.mrf.mxu0
    %v1907 = vadd.f32 %v917, %v1906
    %v1908 = vpop.f32.mrf.mxu0
    %v1909 = vpop.f32.mrf.mxu0
    %v1910 = vpop.f32.mrf.mxu0
    %1911 = vdwg.mxu0
    %v1912 = vadd.f32 %v1744, %v1784
    %v1913 = vxor.u32 %v1912, 2147483648
    %v1914 = vmul.f32 %v1913, 1.442695
    %v1915 = vpow.pop %v1914
    %v1916 = vadd.f32 %v1915, 1.0
    %v1917 = vrcp.pop %v1916
    %v1918 = vmul.f32 1.0, %v1917
    %v1920 = vrot.slane %v1744, 1
    %v1922 = vadd.f32 %v1920, %v1786
    %v1923 = vxor.u32 %v1922, 2147483648
    %v1924 = vmul.f32 %v1923, 1.442695
    %v1925 = vpow.pop %v1924
    %v1926 = vadd.f32 %v1925, 1.0
    %v1927 = vrcp.pop %v1926
    %v1928 = vmul.f32 1.0, %v1927
    %v1929 = vmul.f32 %v1918, %v1825
    %v1930 = vrot.slane %v1744, 2
    %v1932 = vadd.f32 %v1930, %v1929
    %v1933 = vtanh.pop %v1932
    %v1934 = vsub.f32 1.0, %v1928
    %v1935 = vmul.f32 %v1934, %v1933
    %v1936 = vmul.f32 %v1928, %v1711
    %v1937 = vadd.f32 %v1935, %v1936
    %v1939 = vrot.slane %v1747, 3
    %v1941 = vadd.f32 %v1939, %v1866
    %v1942 = vxor.u32 %v1941, 2147483648
    %v1943 = vmul.f32 %v1942, 1.442695
    %v1944 = vpow.pop %v1943
    %v1945 = vadd.f32 %v1944, 1.0
    %v1946 = vrcp.pop %v1945
    %v1947 = vmul.f32 1.0, %v1946
    %v1948 = vrot.slane %v1747, 4
    %v1950 = vadd.f32 %v1948, %v1868
    %v1951 = vxor.u32 %v1950, 2147483648
    %v1952 = vmul.f32 %v1951, 1.442695
    %v1953 = vpow.pop %v1952
    %v1954 = vadd.f32 %v1953, 1.0
    %v1955 = vrcp.pop %v1954
    %v1956 = vmul.f32 1.0, %v1955
    %v1957 = vmul.f32 %v1947, %v1907
    %v1958 = vrot.slane %v1747, 5
    %v1960 = vadd.f32 %v1958, %v1957
    %v1961 = vtanh.pop %v1960
    %v1962 = vsub.f32 1.0, %v1956
    %v1963 = vmul.f32 %v1962, %v1961
    %v1964 = vmul.f32 %v1956, %v1739
    %v1965 = vadd.f32 %v1963, %v1964
    %1966 = vst [vmem:[%s6 + $0x4] sm:$0x1] %v1937
    %1967 = vst [vmem:[#allocation3 + $0x3] sm:$0x1] %v1965
    %v1968 = vld [vmem:[%s1290] ss:$8 sm:$0xf]
    %v1969 = vld [vmem:[%s1290] ss:$8 sm:$0x30]
    %v1970 = vor.u32 %v1968, %v1969
    %v1971 = vld [vmem:[%s1286] ss:$8 sm:$0xf]
    %v1972 = vld [vmem:[%s1286] ss:$8 sm:$0x30]
    %v1973 = vor.u32 %v1971, %v1972
    %v1974 = vpack.c.bf16 %v1937, %v1937
    %1975 = vmatprep.subr.bf16.mxu0 %v654
    %1976 = vmatpush1.bf16.msra.mxu0 %v653
    %1977 = vmatprep.subr.bf16.mxu0 %v651
    %1978 = vmatpush1.bf16.msra.mxu0 %v650
    %1979 = vmatprep.subr.bf16.mxu0 %v648
    %1980 = vmatpush1.bf16.msra.mxu0 %v647
    %1981 = vmatprep.subr.bf16.mxu0 %v645
    %1982 = vmatpush1.bf16.msra.mxu0 %v644
    %1983 = vmatprep.subr.bf16.mxu0 %v642
    %1984 = vmatpush1.bf16.msra.mxu0 %v641
    %1985 = vmatprep.subr.bf16.mxu0 %v639
    %1986 = vmatpush1.bf16.msra.mxu0 %v638
    %1987 = vmatprep.subr.bf16.mxu0 %v636
    %1988 = vmatpush1.bf16.msra.mxu0 %v635
    %1989 = vmatprep.subr.bf16.mxu0 %v633
    %1990 = vmatpush1.bf16.msra.mxu0 %v632
    %1991 = vmatprep.subr.bf16.mxu0 0
    %1992 = vmatpush2.bf16.msra.mxu0 0
    %1993 = vmatprep.subr.bf16.mxu0 0
    %1994 = vmatpush2.bf16.msra.mxu0 0
    %1995 = vmatprep.subr.bf16.mxu0 0
    %1996 = vmatpush2.bf16.msra.mxu0 0
    %1997 = vmatprep.subr.bf16.mxu0 0
    %1998 = vmatpush2.bf16.msra.mxu0 0
    %1999 = vmatprep.subr.bf16.mxu0 0
    %2000 = vmatpush2.bf16.msra.mxu0 0
    %2001 = vmatprep.subr.bf16.mxu0 0
    %2002 = vmatpush2.bf16.msra.mxu0 0
    %2003 = vmatprep.subr.bf16.mxu0 0
    %2004 = vmatpush2.bf16.msra.mxu0 0
    %2005 = vmatprep.subr.bf16.mxu0 0
    %2006 = vmatpush2.bf16.msra.mxu0 0
    %2007 = vmatprep.mubr.bf16.mxu0 0
    %2008 = vmatmul.mubr.bf16.gmra.mxu0 %v1974
    %v2009 = vpop.f32.mrf.mxu0
    %v2010 = vadd.f32 %v684, %v2009
    %v2011 = vpop.f32.mrf.mxu0
    %v2012 = vadd.f32 %v688, %v2011
    %v2013 = vpop.f32.mrf.mxu0
    %v2014 = vpop.f32.mrf.mxu0
    %2015 = vdwg.mxu0
    %2016 = vmatprep.subr.bf16.mxu0 0
    %2017 = vmatpush1.bf16.msra.mxu0 %v655
    %2018 = vmatprep.subr.bf16.mxu0 0
    %2019 = vmatpush1.bf16.msra.mxu0 %v652
    %2020 = vmatprep.subr.bf16.mxu0 0
    %2021 = vmatpush1.bf16.msra.mxu0 %v649
    %2022 = vmatprep.subr.bf16.mxu0 0
    %2023 = vmatpush1.bf16.msra.mxu0 %v646
    %2024 = vmatprep.subr.bf16.mxu0 0
    %2025 = vmatpush1.bf16.msra.mxu0 %v643
    %2026 = vmatprep.subr.bf16.mxu0 0
    %2027 = vmatpush1.bf16.msra.mxu0 %v640
    %2028 = vmatprep.subr.bf16.mxu0 0
    %2029 = vmatpush1.bf16.msra.mxu0 %v637
    %2030 = vmatprep.subr.bf16.mxu0 0
    %2031 = vmatpush1.bf16.msra.mxu0 %v634
    %2032 = vmatprep.subr.bf16.mxu0 0
    %2033 = vmatpush2.bf16.msra.mxu0 0
    %2034 = vmatprep.subr.bf16.mxu0 0
    %2035 = vmatpush2.bf16.msra.mxu0 0
    %2036 = vmatprep.subr.bf16.mxu0 0
    %2037 = vmatpush2.bf16.msra.mxu0 0
    %2038 = vmatprep.subr.bf16.mxu0 0
    %2039 = vmatpush2.bf16.msra.mxu0 0
    %2040 = vmatprep.subr.bf16.mxu0 0
    %2041 = vmatpush2.bf16.msra.mxu0 0
    %2042 = vmatprep.subr.bf16.mxu0 0
    %2043 = vmatpush2.bf16.msra.mxu0 0
    %2044 = vmatprep.subr.bf16.mxu0 0
    %2045 = vmatpush2.bf16.msra.mxu0 0
    %2046 = vmatprep.subr.bf16.mxu0 0
    %2047 = vmatpush2.bf16.msra.mxu0 0
    %2048 = vmatprep.mubr.bf16.mxu0 0
    %2049 = vmatmul.mubr.bf16.gmra.mxu0 %v1974
    %v2050 = vpop.f32.mrf.mxu0
    %v2051 = vadd.f32 %v692, %v2050
    %v2052 = vpop.f32.mrf.mxu0
    %v2053 = vpop.f32.mrf.mxu0
    %v2054 = vpop.f32.mrf.mxu0
    %2055 = vdwg.mxu0
    %v2056 = vpack.c.bf16 %v1965, %v1965
    %2057 = vmatprep.subr.bf16.mxu0 %v879
    %2058 = vmatpush1.bf16.msra.mxu0 %v878
    %2059 = vmatprep.subr.bf16.mxu0 %v876
    %2060 = vmatpush1.bf16.msra.mxu0 %v875
    %2061 = vmatprep.subr.bf16.mxu0 %v873
    %2062 = vmatpush1.bf16.msra.mxu0 %v872
    %2063 = vmatprep.subr.bf16.mxu0 %v870
    %2064 = vmatpush1.bf16.msra.mxu0 %v869
    %2065 = vmatprep.subr.bf16.mxu0 %v867
    %2066 = vmatpush1.bf16.msra.mxu0 %v866
    %2067 = vmatprep.subr.bf16.mxu0 %v864
    %2068 = vmatpush1.bf16.msra.mxu0 %v863
    %2069 = vmatprep.subr.bf16.mxu0 %v861
    %2070 = vmatpush1.bf16.msra.mxu0 %v860
    %2071 = vmatprep.subr.bf16.mxu0 %v858
    %2072 = vmatpush1.bf16.msra.mxu0 %v857
    %2073 = vmatprep.subr.bf16.mxu0 0
    %2074 = vmatpush2.bf16.msra.mxu0 0
    %2075 = vmatprep.subr.bf16.mxu0 0
    %2076 = vmatpush2.bf16.msra.mxu0 0
    %2077 = vmatprep.subr.bf16.mxu0 0
    %2078 = vmatpush2.bf16.msra.mxu0 0
    %2079 = vmatprep.subr.bf16.mxu0 0
    %2080 = vmatpush2.bf16.msra.mxu0 0
    %2081 = vmatprep.subr.bf16.mxu0 0
    %2082 = vmatpush2.bf16.msra.mxu0 0
    %2083 = vmatprep.subr.bf16.mxu0 0
    %2084 = vmatpush2.bf16.msra.mxu0 0
    %2085 = vmatprep.subr.bf16.mxu0 0
    %2086 = vmatpush2.bf16.msra.mxu0 0
    %2087 = vmatprep.subr.bf16.mxu0 0
    %2088 = vmatpush2.bf16.msra.mxu0 0
    %2089 = vmatprep.mubr.bf16.mxu0 0
    %2090 = vmatmul.mubr.bf16.gmra.mxu0 %v2056
    %v2091 = vpop.f32.mrf.mxu0
    %v2092 = vadd.f32 %v909, %v2091
    %v2093 = vpop.f32.mrf.mxu0
    %v2094 = vadd.f32 %v913, %v2093
    %v2095 = vpop.f32.mrf.mxu0
    %v2096 = vpop.f32.mrf.mxu0
    %2097 = vdwg.mxu0
    %2098 = vmatprep.subr.bf16.mxu0 0
    %2099 = vmatpush1.bf16.msra.mxu0 %v880
    %2100 = vmatprep.subr.bf16.mxu0 0
    %2101 = vmatpush1.bf16.msra.mxu0 %v877
    %2102 = vmatprep.subr.bf16.mxu0 0
    %2103 = vmatpush1.bf16.msra.mxu0 %v874
    %2104 = vmatprep.subr.bf16.mxu0 0
    %2105 = vmatpush1.bf16.msra.mxu0 %v871
    %2106 = vmatprep.subr.bf16.mxu0 0
    %2107 = vmatpush1.bf16.msra.mxu0 %v868
    %2108 = vmatprep.subr.bf16.mxu0 0
    %2109 = vmatpush1.bf16.msra.mxu0 %v865
    %2110 = vmatprep.subr.bf16.mxu0 0
    %2111 = vmatpush1.bf16.msra.mxu0 %v862
    %2112 = vmatprep.subr.bf16.mxu0 0
    %2113 = vmatpush1.bf16.msra.mxu0 %v859
    %2114 = vmatprep.subr.bf16.mxu0 0
    %2115 = vmatpush2.bf16.msra.mxu0 0
    %2116 = vmatprep.subr.bf16.mxu0 0
    %2117 = vmatpush2.bf16.msra.mxu0 0
    %2118 = vmatprep.subr.bf16.mxu0 0
    %2119 = vmatpush2.bf16.msra.mxu0 0
    %2120 = vmatprep.subr.bf16.mxu0 0
    %2121 = vmatpush2.bf16.msra.mxu0 0
    %2122 = vmatprep.subr.bf16.mxu0 0
    %2123 = vmatpush2.bf16.msra.mxu0 0
    %2124 = vmatprep.subr.bf16.mxu0 0
    %2125 = vmatpush2.bf16.msra.mxu0 0
    %2126 = vmatprep.subr.bf16.mxu0 0
    %2127 = vmatpush2.bf16.msra.mxu0 0
    %2128 = vmatprep.subr.bf16.mxu0 0
    %2129 = vmatpush2.bf16.msra.mxu0 0
    %2130 = vmatprep.mubr.bf16.mxu0 0
    %2131 = vmatmul.mubr.bf16.gmra.mxu0 %v2056
    %v2132 = vpop.f32.mrf.mxu0
    %v2133 = vadd.f32 %v917, %v2132
    %v2134 = vpop.f32.mrf.mxu0
    %v2135 = vpop.f32.mrf.mxu0
    %v2136 = vpop.f32.mrf.mxu0
    %2137 = vdwg.mxu0
    %v2138 = vadd.f32 %v1970, %v2010
    %v2139 = vxor.u32 %v2138, 2147483648
    %v2140 = vmul.f32 %v2139, 1.442695
    %v2141 = vpow.pop %v2140
    %v2142 = vadd.f32 %v2141, 1.0
    %v2143 = vrcp.pop %v2142
    %v2144 = vmul.f32 1.0, %v2143
    %v2146 = vrot.slane %v1970, 1
    %v2148 = vadd.f32 %v2146, %v2012
    %v2149 = vxor.u32 %v2148, 2147483648
    %v2150 = vmul.f32 %v2149, 1.442695
    %v2151 = vpow.pop %v2150
    %v2152 = vadd.f32 %v2151, 1.0
    %v2153 = vrcp.pop %v2152
    %v2154 = vmul.f32 1.0, %v2153
    %v2155 = vmul.f32 %v2144, %v2051
    %v2156 = vrot.slane %v1970, 2
    %v2158 = vadd.f32 %v2156, %v2155
    %v2159 = vtanh.pop %v2158
    %v2160 = vsub.f32 1.0, %v2154
    %v2161 = vmul.f32 %v2160, %v2159
    %v2162 = vmul.f32 %v2154, %v1937
    %v2163 = vadd.f32 %v2161, %v2162
    %v2165 = vrot.slane %v1973, 3
    %v2167 = vadd.f32 %v2165, %v2092
    %v2168 = vxor.u32 %v2167, 2147483648
    %v2169 = vmul.f32 %v2168, 1.442695
    %v2170 = vpow.pop %v2169
    %v2171 = vadd.f32 %v2170, 1.0
    %v2172 = vrcp.pop %v2171
    %v2173 = vmul.f32 1.0, %v2172
    %v2174 = vrot.slane %v1973, 4
    %v2176 = vadd.f32 %v2174, %v2094
    %v2177 = vxor.u32 %v2176, 2147483648
    %v2178 = vmul.f32 %v2177, 1.442695
    %v2179 = vpow.pop %v2178
    %v2180 = vadd.f32 %v2179, 1.0
    %v2181 = vrcp.pop %v2180
    %v2182 = vmul.f32 1.0, %v2181
    %v2183 = vmul.f32 %v2173, %v2133
    %v2184 = vrot.slane %v1973, 5
    %v2186 = vadd.f32 %v2184, %v2183
    %v2187 = vtanh.pop %v2186
    %v2188 = vsub.f32 1.0, %v2182
    %v2189 = vmul.f32 %v2188, %v2187
    %v2190 = vmul.f32 %v2182, %v1965
    %v2191 = vadd.f32 %v2189, %v2190
    %2192 = vst [vmem:[%s6 + $0x5] sm:$0x1] %v2163
    %2193 = vst [vmem:[#allocation3 + $0x2] sm:$0x1] %v2191
    %v2194 = vld [vmem:[%s1062] ss:$8 sm:$0xf]
    %v2195 = vld [vmem:[%s1062] ss:$8 sm:$0x30]
    %v2196 = vor.u32 %v2194, %v2195
    %v2197 = vld [vmem:[%s1058] ss:$8 sm:$0xf]
    %v2198 = vld [vmem:[%s1058] ss:$8 sm:$0x30]
    %v2199 = vor.u32 %v2197, %v2198
    %v2200 = vpack.c.bf16 %v2163, %v2163
    %2201 = vmatprep.subr.bf16.mxu0 %v654
    %2202 = vmatpush1.bf16.msra.mxu0 %v653
    %2203 = vmatprep.subr.bf16.mxu0 %v651
    %2204 = vmatpush1.bf16.msra.mxu0 %v650
    %2205 = vmatprep.subr.bf16.mxu0 %v648
    %2206 = vmatpush1.bf16.msra.mxu0 %v647
    %2207 = vmatprep.subr.bf16.mxu0 %v645
    %2208 = vmatpush1.bf16.msra.mxu0 %v644
    %2209 = vmatprep.subr.bf16.mxu0 %v642
    %2210 = vmatpush1.bf16.msra.mxu0 %v641
    %2211 = vmatprep.subr.bf16.mxu0 %v639
    %2212 = vmatpush1.bf16.msra.mxu0 %v638
    %2213 = vmatprep.subr.bf16.mxu0 %v636
    %2214 = vmatpush1.bf16.msra.mxu0 %v635
    %2215 = vmatprep.subr.bf16.mxu0 %v633
    %2216 = vmatpush1.bf16.msra.mxu0 %v632
    %2217 = vmatprep.subr.bf16.mxu0 0
    %2218 = vmatpush2.bf16.msra.mxu0 0
    %2219 = vmatprep.subr.bf16.mxu0 0
    %2220 = vmatpush2.bf16.msra.mxu0 0
    %2221 = vmatprep.subr.bf16.mxu0 0
    %2222 = vmatpush2.bf16.msra.mxu0 0
    %2223 = vmatprep.subr.bf16.mxu0 0
    %2224 = vmatpush2.bf16.msra.mxu0 0
    %2225 = vmatprep.subr.bf16.mxu0 0
    %2226 = vmatpush2.bf16.msra.mxu0 0
    %2227 = vmatprep.subr.bf16.mxu0 0
    %2228 = vmatpush2.bf16.msra.mxu0 0
    %2229 = vmatprep.subr.bf16.mxu0 0
    %2230 = vmatpush2.bf16.msra.mxu0 0
    %2231 = vmatprep.subr.bf16.mxu0 0
    %2232 = vmatpush2.bf16.msra.mxu0 0
    %2233 = vmatprep.mubr.bf16.mxu0 0
    %2234 = vmatmul.mubr.bf16.gmra.mxu0 %v2200
    %v2235 = vpop.f32.mrf.mxu0
    %v2236 = vadd.f32 %v684, %v2235
    %v2237 = vpop.f32.mrf.mxu0
    %v2238 = vadd.f32 %v688, %v2237
    %v2239 = vpop.f32.mrf.mxu0
    %v2240 = vpop.f32.mrf.mxu0
    %2241 = vdwg.mxu0
    %2242 = vmatprep.subr.bf16.mxu0 0
    %2243 = vmatpush1.bf16.msra.mxu0 %v655
    %2244 = vmatprep.subr.bf16.mxu0 0
    %2245 = vmatpush1.bf16.msra.mxu0 %v652
    %2246 = vmatprep.subr.bf16.mxu0 0
    %2247 = vmatpush1.bf16.msra.mxu0 %v649
    %2248 = vmatprep.subr.bf16.mxu0 0
    %2249 = vmatpush1.bf16.msra.mxu0 %v646
    %2250 = vmatprep.subr.bf16.mxu0 0
    %2251 = vmatpush1.bf16.msra.mxu0 %v643
    %2252 = vmatprep.subr.bf16.mxu0 0
    %2253 = vmatpush1.bf16.msra.mxu0 %v640
    %2254 = vmatprep.subr.bf16.mxu0 0
    %2255 = vmatpush1.bf16.msra.mxu0 %v637
    %2256 = vmatprep.subr.bf16.mxu0 0
    %2257 = vmatpush1.bf16.msra.mxu0 %v634
    %2258 = vmatprep.subr.bf16.mxu0 0
    %2259 = vmatpush2.bf16.msra.mxu0 0
    %2260 = vmatprep.subr.bf16.mxu0 0
    %2261 = vmatpush2.bf16.msra.mxu0 0
    %2262 = vmatprep.subr.bf16.mxu0 0
    %2263 = vmatpush2.bf16.msra.mxu0 0
    %2264 = vmatprep.subr.bf16.mxu0 0
    %2265 = vmatpush2.bf16.msra.mxu0 0
    %2266 = vmatprep.subr.bf16.mxu0 0
    %2267 = vmatpush2.bf16.msra.mxu0 0
    %2268 = vmatprep.subr.bf16.mxu0 0
    %2269 = vmatpush2.bf16.msra.mxu0 0
    %2270 = vmatprep.subr.bf16.mxu0 0
    %2271 = vmatpush2.bf16.msra.mxu0 0
    %2272 = vmatprep.subr.bf16.mxu0 0
    %2273 = vmatpush2.bf16.msra.mxu0 0
    %2274 = vmatprep.mubr.bf16.mxu0 0
    %2275 = vmatmul.mubr.bf16.gmra.mxu0 %v2200
    %v2276 = vpop.f32.mrf.mxu0
    %v2277 = vadd.f32 %v692, %v2276
    %v2278 = vpop.f32.mrf.mxu0
    %v2279 = vpop.f32.mrf.mxu0
    %v2280 = vpop.f32.mrf.mxu0
    %2281 = vdwg.mxu0
    %v2282 = vpack.c.bf16 %v2191, %v2191
    %2283 = vmatprep.subr.bf16.mxu0 %v879
    %2284 = vmatpush1.bf16.msra.mxu0 %v878
    %2285 = vmatprep.subr.bf16.mxu0 %v876
    %2286 = vmatpush1.bf16.msra.mxu0 %v875
    %2287 = vmatprep.subr.bf16.mxu0 %v873
    %2288 = vmatpush1.bf16.msra.mxu0 %v872
    %2289 = vmatprep.subr.bf16.mxu0 %v870
    %2290 = vmatpush1.bf16.msra.mxu0 %v869
    %2291 = vmatprep.subr.bf16.mxu0 %v867
    %2292 = vmatpush1.bf16.msra.mxu0 %v866
    %2293 = vmatprep.subr.bf16.mxu0 %v864
    %2294 = vmatpush1.bf16.msra.mxu0 %v863
    %2295 = vmatprep.subr.bf16.mxu0 %v861
    %2296 = vmatpush1.bf16.msra.mxu0 %v860
    %2297 = vmatprep.subr.bf16.mxu0 %v858
    %2298 = vmatpush1.bf16.msra.mxu0 %v857
    %2299 = vmatprep.subr.bf16.mxu0 0
    %2300 = vmatpush2.bf16.msra.mxu0 0
    %2301 = vmatprep.subr.bf16.mxu0 0
    %2302 = vmatpush2.bf16.msra.mxu0 0
    %2303 = vmatprep.subr.bf16.mxu0 0
    %2304 = vmatpush2.bf16.msra.mxu0 0
    %2305 = vmatprep.subr.bf16.mxu0 0
    %2306 = vmatpush2.bf16.msra.mxu0 0
    %2307 = vmatprep.subr.bf16.mxu0 0
    %2308 = vmatpush2.bf16.msra.mxu0 0
    %2309 = vmatprep.subr.bf16.mxu0 0
    %2310 = vmatpush2.bf16.msra.mxu0 0
    %2311 = vmatprep.subr.bf16.mxu0 0
    %2312 = vmatpush2.bf16.msra.mxu0 0
    %2313 = vmatprep.subr.bf16.mxu0 0
    %2314 = vmatpush2.bf16.msra.mxu0 0
    %2315 = vmatprep.mubr.bf16.mxu0 0
    %2316 = vmatmul.mubr.bf16.gmra.mxu0 %v2282
    %v2317 = vpop.f32.mrf.mxu0
    %v2318 = vadd.f32 %v909, %v2317
    %v2319 = vpop.f32.mrf.mxu0
    %v2320 = vadd.f32 %v913, %v2319
    %v2321 = vpop.f32.mrf.mxu0
    %v2322 = vpop.f32.mrf.mxu0
    %2323 = vdwg.mxu0
    %2324 = vmatprep.subr.bf16.mxu0 0
    %2325 = vmatpush1.bf16.msra.mxu0 %v880
    %2326 = vmatprep.subr.bf16.mxu0 0
    %2327 = vmatpush1.bf16.msra.mxu0 %v877
    %2328 = vmatprep.subr.bf16.mxu0 0
    %2329 = vmatpush1.bf16.msra.mxu0 %v874
    %2330 = vmatprep.subr.bf16.mxu0 0
    %2331 = vmatpush1.bf16.msra.mxu0 %v871
    %2332 = vmatprep.subr.bf16.mxu0 0
    %2333 = vmatpush1.bf16.msra.mxu0 %v868
    %2334 = vmatprep.subr.bf16.mxu0 0
    %2335 = vmatpush1.bf16.msra.mxu0 %v865
    %2336 = vmatprep.subr.bf16.mxu0 0
    %2337 = vmatpush1.bf16.msra.mxu0 %v862
    %2338 = vmatprep.subr.bf16.mxu0 0
    %2339 = vmatpush1.bf16.msra.mxu0 %v859
    %2340 = vmatprep.subr.bf16.mxu0 0
    %2341 = vmatpush2.bf16.msra.mxu0 0
    %2342 = vmatprep.subr.bf16.mxu0 0
    %2343 = vmatpush2.bf16.msra.mxu0 0
    %2344 = vmatprep.subr.bf16.mxu0 0
    %2345 = vmatpush2.bf16.msra.mxu0 0
    %2346 = vmatprep.subr.bf16.mxu0 0
    %2347 = vmatpush2.bf16.msra.mxu0 0
    %2348 = vmatprep.subr.bf16.mxu0 0
    %2349 = vmatpush2.bf16.msra.mxu0 0
    %2350 = vmatprep.subr.bf16.mxu0 0
    %2351 = vmatpush2.bf16.msra.mxu0 0
    %2352 = vmatprep.subr.bf16.mxu0 0
    %2353 = vmatpush2.bf16.msra.mxu0 0
    %2354 = vmatprep.subr.bf16.mxu0 0
    %2355 = vmatpush2.bf16.msra.mxu0 0
    %2356 = vmatprep.mubr.bf16.mxu0 0
    %2357 = vmatmul.mubr.bf16.gmra.mxu0 %v2282
    %v2358 = vpop.f32.mrf.mxu0
    %v2359 = vadd.f32 %v917, %v2358
    %v2360 = vpop.f32.mrf.mxu0
    %v2361 = vpop.f32.mrf.mxu0
    %v2362 = vpop.f32.mrf.mxu0
    %2363 = vdwg.mxu0
    %v2364 = vadd.f32 %v2196, %v2236
    %v2365 = vxor.u32 %v2364, 2147483648
    %v2366 = vmul.f32 %v2365, 1.442695
    %v2367 = vpow.pop %v2366
    %v2368 = vadd.f32 %v2367, 1.0
    %v2369 = vrcp.pop %v2368
    %v2370 = vmul.f32 1.0, %v2369
    %v2372 = vrot.slane %v2196, 1
    %v2374 = vadd.f32 %v2372, %v2238
    %v2375 = vxor.u32 %v2374, 2147483648
    %v2376 = vmul.f32 %v2375, 1.442695
    %v2377 = vpow.pop %v2376
    %v2378 = vadd.f32 %v2377, 1.0
    %v2379 = vrcp.pop %v2378
    %v2380 = vmul.f32 1.0, %v2379
    %v2381 = vmul.f32 %v2370, %v2277
    %v2382 = vrot.slane %v2196, 2
    %v2384 = vadd.f32 %v2382, %v2381
    %v2385 = vtanh.pop %v2384
    %v2386 = vsub.f32 1.0, %v2380
    %v2387 = vmul.f32 %v2386, %v2385
    %v2388 = vmul.f32 %v2380, %v2163
    %v2389 = vadd.f32 %v2387, %v2388
    %v2391 = vrot.slane %v2199, 3
    %v2393 = vadd.f32 %v2391, %v2318
    %v2394 = vxor.u32 %v2393, 2147483648
    %v2395 = vmul.f32 %v2394, 1.442695
    %v2396 = vpow.pop %v2395
    %v2397 = vadd.f32 %v2396, 1.0
    %v2398 = vrcp.pop %v2397
    %v2399 = vmul.f32 1.0, %v2398
    %v2400 = vrot.slane %v2199, 4
    %v2402 = vadd.f32 %v2400, %v2320
    %v2403 = vxor.u32 %v2402, 2147483648
    %v2404 = vmul.f32 %v2403, 1.442695
    %v2405 = vpow.pop %v2404
    %v2406 = vadd.f32 %v2405, 1.0
    %v2407 = vrcp.pop %v2406
    %v2408 = vmul.f32 1.0, %v2407
    %v2409 = vmul.f32 %v2399, %v2359
    %v2410 = vrot.slane %v2199, 5
    %v2412 = vadd.f32 %v2410, %v2409
    %v2413 = vtanh.pop %v2412
    %v2414 = vsub.f32 1.0, %v2408
    %v2415 = vmul.f32 %v2414, %v2413
    %v2416 = vmul.f32 %v2408, %v2191
    %v2417 = vadd.f32 %v2415, %v2416
    %2418 = vst [vmem:[%s6 + $0x6] sm:$0x1] %v2389
    %2419 = vst [vmem:[#allocation3 + $0x1] sm:$0x1] %v2417
    %v2420 = vld [vmem:[%s548] ss:$8 sm:$0xf]
    %v2421 = vld [vmem:[%s548] ss:$8 sm:$0x30]
    %v2422 = vor.u32 %v2420, %v2421
    %v2423 = vld [vmem:[#allocation2] ss:$8 sm:$0xf]
    %v2424 = vld [vmem:[#allocation2] ss:$8 sm:$0x30]
    %v2425 = vor.u32 %v2423, %v2424
    %v2426 = vpack.c.bf16 %v2389, %v2389
    %2427 = vmatprep.subr.bf16.mxu0 %v654
    %2428 = vmatpush1.bf16.msra.mxu0 %v653
    %2429 = vmatprep.subr.bf16.mxu0 %v651
    %2430 = vmatpush1.bf16.msra.mxu0 %v650
    %2431 = vmatprep.subr.bf16.mxu0 %v648
    %2432 = vmatpush1.bf16.msra.mxu0 %v647
    %2433 = vmatprep.subr.bf16.mxu0 %v645
    %2434 = vmatpush1.bf16.msra.mxu0 %v644
    %2435 = vmatprep.subr.bf16.mxu0 %v642
    %2436 = vmatpush1.bf16.msra.mxu0 %v641
    %2437 = vmatprep.subr.bf16.mxu0 %v639
    %2438 = vmatpush1.bf16.msra.mxu0 %v638
    %2439 = vmatprep.subr.bf16.mxu0 %v636
    %2440 = vmatpush1.bf16.msra.mxu0 %v635
    %2441 = vmatprep.subr.bf16.mxu0 %v633
    %2442 = vmatpush1.bf16.msra.mxu0 %v632
    %2443 = vmatprep.subr.bf16.mxu0 0
    %2444 = vmatpush2.bf16.msra.mxu0 0
    %2445 = vmatprep.subr.bf16.mxu0 0
    %2446 = vmatpush2.bf16.msra.mxu0 0
    %2447 = vmatprep.subr.bf16.mxu0 0
    %2448 = vmatpush2.bf16.msra.mxu0 0
    %2449 = vmatprep.subr.bf16.mxu0 0
    %2450 = vmatpush2.bf16.msra.mxu0 0
    %2451 = vmatprep.subr.bf16.mxu0 0
    %2452 = vmatpush2.bf16.msra.mxu0 0
    %2453 = vmatprep.subr.bf16.mxu0 0
    %2454 = vmatpush2.bf16.msra.mxu0 0
    %2455 = vmatprep.subr.bf16.mxu0 0
    %2456 = vmatpush2.bf16.msra.mxu0 0
    %2457 = vmatprep.subr.bf16.mxu0 0
    %2458 = vmatpush2.bf16.msra.mxu0 0
    %2459 = vmatprep.mubr.bf16.mxu0 0
    %2460 = vmatmul.mubr.bf16.gmra.mxu0 %v2426
    %v2461 = vpop.f32.mrf.mxu0
    %v2462 = vadd.f32 %v684, %v2461
    %v2463 = vpop.f32.mrf.mxu0
    %v2464 = vadd.f32 %v688, %v2463
    %v2465 = vpop.f32.mrf.mxu0
    %v2466 = vpop.f32.mrf.mxu0
    %2467 = vdwg.mxu0
    %2468 = vmatprep.subr.bf16.mxu0 0
    %2469 = vmatpush1.bf16.msra.mxu0 %v655
    %2470 = vmatprep.subr.bf16.mxu0 0
    %2471 = vmatpush1.bf16.msra.mxu0 %v652
    %2472 = vmatprep.subr.bf16.mxu0 0
    %2473 = vmatpush1.bf16.msra.mxu0 %v649
    %2474 = vmatprep.subr.bf16.mxu0 0
    %2475 = vmatpush1.bf16.msra.mxu0 %v646
    %2476 = vmatprep.subr.bf16.mxu0 0
    %2477 = vmatpush1.bf16.msra.mxu0 %v643
    %2478 = vmatprep.subr.bf16.mxu0 0
    %2479 = vmatpush1.bf16.msra.mxu0 %v640
    %2480 = vmatprep.subr.bf16.mxu0 0
    %2481 = vmatpush1.bf16.msra.mxu0 %v637
    %2482 = vmatprep.subr.bf16.mxu0 0
    %2483 = vmatpush1.bf16.msra.mxu0 %v634
    %2484 = vmatprep.subr.bf16.mxu0 0
    %2485 = vmatpush2.bf16.msra.mxu0 0
    %2486 = vmatprep.subr.bf16.mxu0 0
    %2487 = vmatpush2.bf16.msra.mxu0 0
    %2488 = vmatprep.subr.bf16.mxu0 0
    %2489 = vmatpush2.bf16.msra.mxu0 0
    %2490 = vmatprep.subr.bf16.mxu0 0
    %2491 = vmatpush2.bf16.msra.mxu0 0
    %2492 = vmatprep.subr.bf16.mxu0 0
    %2493 = vmatpush2.bf16.msra.mxu0 0
    %2494 = vmatprep.subr.bf16.mxu0 0
    %2495 = vmatpush2.bf16.msra.mxu0 0
    %2496 = vmatprep.subr.bf16.mxu0 0
    %2497 = vmatpush2.bf16.msra.mxu0 0
    %2498 = vmatprep.subr.bf16.mxu0 0
    %2499 = vmatpush2.bf16.msra.mxu0 0
    %2500 = vmatprep.mubr.bf16.mxu0 0
    %2501 = vmatmul.mubr.bf16.gmra.mxu0 %v2426
    %v2502 = vpop.f32.mrf.mxu0
    %v2503 = vadd.f32 %v692, %v2502
    %v2504 = vpop.f32.mrf.mxu0
    %v2505 = vpop.f32.mrf.mxu0
    %v2506 = vpop.f32.mrf.mxu0
    %2507 = vdwg.mxu0
    %v2508 = vpack.c.bf16 %v2417, %v2417
    %2509 = vmatprep.subr.bf16.mxu0 %v879
    %2510 = vmatpush1.bf16.msra.mxu0 %v878
    %2511 = vmatprep.subr.bf16.mxu0 %v876
    %2512 = vmatpush1.bf16.msra.mxu0 %v875
    %2513 = vmatprep.subr.bf16.mxu0 %v873
    %2514 = vmatpush1.bf16.msra.mxu0 %v872
    %2515 = vmatprep.subr.bf16.mxu0 %v870
    %2516 = vmatpush1.bf16.msra.mxu0 %v869
    %2517 = vmatprep.subr.bf16.mxu0 %v867
    %2518 = vmatpush1.bf16.msra.mxu0 %v866
    %2519 = vmatprep.subr.bf16.mxu0 %v864
    %2520 = vmatpush1.bf16.msra.mxu0 %v863
    %2521 = vmatprep.subr.bf16.mxu0 %v861
    %2522 = vmatpush1.bf16.msra.mxu0 %v860
    %2523 = vmatprep.subr.bf16.mxu0 %v858
    %2524 = vmatpush1.bf16.msra.mxu0 %v857
    %2525 = vmatprep.subr.bf16.mxu0 0
    %2526 = vmatpush2.bf16.msra.mxu0 0
    %2527 = vmatprep.subr.bf16.mxu0 0
    %2528 = vmatpush2.bf16.msra.mxu0 0
    %2529 = vmatprep.subr.bf16.mxu0 0
    %2530 = vmatpush2.bf16.msra.mxu0 0
    %2531 = vmatprep.subr.bf16.mxu0 0
    %2532 = vmatpush2.bf16.msra.mxu0 0
    %2533 = vmatprep.subr.bf16.mxu0 0
    %2534 = vmatpush2.bf16.msra.mxu0 0
    %2535 = vmatprep.subr.bf16.mxu0 0
    %2536 = vmatpush2.bf16.msra.mxu0 0
    %2537 = vmatprep.subr.bf16.mxu0 0
    %2538 = vmatpush2.bf16.msra.mxu0 0
    %2539 = vmatprep.subr.bf16.mxu0 0
    %2540 = vmatpush2.bf16.msra.mxu0 0
    %2541 = vmatprep.mubr.bf16.mxu0 0
    %2542 = vmatmul.mubr.bf16.gmra.mxu0 %v2508
    %v2543 = vpop.f32.mrf.mxu0
    %v2544 = vadd.f32 %v909, %v2543
    %v2545 = vpop.f32.mrf.mxu0
    %v2546 = vadd.f32 %v913, %v2545
    %v2547 = vpop.f32.mrf.mxu0
    %v2548 = vpop.f32.mrf.mxu0
    %2549 = vdwg.mxu0
    %2550 = vmatprep.subr.bf16.mxu0 0
    %2551 = vmatpush1.bf16.msra.mxu0 %v880
    %2552 = vmatprep.subr.bf16.mxu0 0
    %2553 = vmatpush1.bf16.msra.mxu0 %v877
    %2554 = vmatprep.subr.bf16.mxu0 0
    %2555 = vmatpush1.bf16.msra.mxu0 %v874
    %2556 = vmatprep.subr.bf16.mxu0 0
    %2557 = vmatpush1.bf16.msra.mxu0 %v871
    %2558 = vmatprep.subr.bf16.mxu0 0
    %2559 = vmatpush1.bf16.msra.mxu0 %v868
    %2560 = vmatprep.subr.bf16.mxu0 0
    %2561 = vmatpush1.bf16.msra.mxu0 %v865
    %2562 = vmatprep.subr.bf16.mxu0 0
    %2563 = vmatpush1.bf16.msra.mxu0 %v862
    %2564 = vmatprep.subr.bf16.mxu0 0
    %2565 = vmatpush1.bf16.msra.mxu0 %v859
    %2566 = vmatprep.subr.bf16.mxu0 0
    %2567 = vmatpush2.bf16.msra.mxu0 0
    %2568 = vmatprep.subr.bf16.mxu0 0
    %2569 = vmatpush2.bf16.msra.mxu0 0
    %2570 = vmatprep.subr.bf16.mxu0 0
    %2571 = vmatpush2.bf16.msra.mxu0 0
    %2572 = vmatprep.subr.bf16.mxu0 0
    %2573 = vmatpush2.bf16.msra.mxu0 0
    %2574 = vmatprep.subr.bf16.mxu0 0
    %2575 = vmatpush2.bf16.msra.mxu0 0
    %2576 = vmatprep.subr.bf16.mxu0 0
    %2577 = vmatpush2.bf16.msra.mxu0 0
    %2578 = vmatprep.subr.bf16.mxu0 0
    %2579 = vmatpush2.bf16.msra.mxu0 0
    %2580 = vmatprep.subr.bf16.mxu0 0
    %2581 = vmatpush2.bf16.msra.mxu0 0
    %2582 = vmatprep.mubr.bf16.mxu0 0
    %2583 = vmatmul.mubr.bf16.gmra.mxu0 %v2508
    %v2584 = vpop.f32.mrf.mxu0
    %v2585 = vadd.f32 %v917, %v2584
    %v2586 = vpop.f32.mrf.mxu0
    %v2587 = vpop.f32.mrf.mxu0
    %v2588 = vpop.f32.mrf.mxu0
    %2589 = vdwg.mxu0
    %v2590 = vadd.f32 %v2422, %v2462
    %v2591 = vxor.u32 %v2590, 2147483648
    %v2592 = vmul.f32 %v2591, 1.442695
    %v2593 = vpow.pop %v2592
    %v2594 = vadd.f32 %v2593, 1.0
    %v2595 = vrcp.pop %v2594
    %v2596 = vmul.f32 1.0, %v2595
    %v2598 = vrot.slane %v2422, 1
    %v2600 = vadd.f32 %v2598, %v2464
    %v2601 = vxor.u32 %v2600, 2147483648
    %v2602 = vmul.f32 %v2601, 1.442695
    %v2603 = vpow.pop %v2602
    %v2604 = vadd.f32 %v2603, 1.0
    %v2605 = vrcp.pop %v2604
    %v2606 = vmul.f32 1.0, %v2605
    %v2607 = vmul.f32 %v2596, %v2503
    %v2608 = vrot.slane %v2422, 2
    %v2610 = vadd.f32 %v2608, %v2607
    %v2611 = vtanh.pop %v2610
    %v2612 = vsub.f32 1.0, %v2606
    %v2613 = vmul.f32 %v2612, %v2611
    %v2614 = vmul.f32 %v2606, %v2389
    %v2615 = vadd.f32 %v2613, %v2614
    %v2617 = vrot.slane %v2425, 3
    %v2619 = vadd.f32 %v2617, %v2544
    %v2620 = vxor.u32 %v2619, 2147483648
    %v2621 = vmul.f32 %v2620, 1.442695
    %v2622 = vpow.pop %v2621
    %v2623 = vadd.f32 %v2622, 1.0
    %v2624 = vrcp.pop %v2623
    %v2625 = vmul.f32 1.0, %v2624
    %v2626 = vrot.slane %v2425, 4
    %v2628 = vadd.f32 %v2626, %v2546
    %v2629 = vxor.u32 %v2628, 2147483648
    %v2630 = vmul.f32 %v2629, 1.442695
    %v2631 = vpow.pop %v2630
    %v2632 = vadd.f32 %v2631, 1.0
    %v2633 = vrcp.pop %v2632
    %v2634 = vmul.f32 1.0, %v2633
    %v2635 = vmul.f32 %v2625, %v2585
    %v2636 = vrot.slane %v2425, 5
    %v2638 = vadd.f32 %v2636, %v2635
    %v2639 = vtanh.pop %v2638
    %v2640 = vsub.f32 1.0, %v2634
    %v2641 = vmul.f32 %v2640, %v2639
    %v2642 = vmul.f32 %v2634, %v2417
    %v2643 = vadd.f32 %v2641, %v2642
    %2644 = vst [vmem:[%s6 + $0x7] sm:$0x1] %v2615
    %2645 = vst [vmem:[#allocation3] sm:$0x1] %v2643
    %v2646 = vld [vmem:[%s6] sm:$0xff]
    %v2647 = vld [vmem:[#allocation3] sm:$0xff]
    %v2648 = vadd.f32 %v2646, %v2647
    %2649 = vst [vmem:[%s6] sm:$0xff] %v2648
    %2650 = vst [vmem:[#allocation4] sm:$0x1] %v2615
    %2651 = vst [vmem:[#allocation4 + $0x1] sm:$0x1] %v2643
    // Predicated region
    $region26: #{encoder_forward.1} parent=1 // pred_check
      _
    $region27: #{encoder_forward.1} parent=1 // pred_check_branch
      %2653 = sbr.rel (0) target = $region29
    $region28: #{encoder_forward.1} parent=1 // pred_region
      _
    $region29: #{encoder_forward.1} parent=1 // pred_fallthru
      _
    // Predicated region
    $region30: #{encoder_forward.1} parent=1 // pred_check
      _
    $region31: #{encoder_forward.1} parent=1 // pred_check_branch
      %2655 = sbr.rel (0) target = $region33
    $region32: #{encoder_forward.1} parent=1 // pred_region
      %s2657 = ssub.s32 32, 32
      %2658 = vsyncadd [#allocation5], %s2657
      %s2660 = sshll.u32 [#allocation4], 4
      %s2661 = int_to_ptr.vmem [resolvable:$true] %s2660
      %2663 = dma.vmem_to_hbm [thread:$0]  %s2661, 32, %s7, [#allocation5]
    $region33: #{encoder_forward.1} parent=1 // pred_fallthru
      _
    // Predicated region
    $region34: #{encoder_forward.1} parent=1 // pred_check
      _
    $region35: #{encoder_forward.1} parent=1 // pred_check_branch
      %2665 = sbr.rel (0) target = $region37
    $region36: #{encoder_forward.1} parent=1 // pred_region
      _
    $region37: #{encoder_forward.1} parent=1 // pred_fallthru
      _
    // Predicated region
    $region38: #{encoder_forward.1} parent=1 // pred_check
      _
    $region39: #{encoder_forward.1} parent=1 // pred_check_branch
      %2667 = sbr.rel (0) target = $region41
    $region40: #{encoder_forward.1} parent=1 // pred_region
      %2668 = dma.done [#allocation5], 32
    $region41: #{encoder_forward.1} parent=1 // pred_fallthru
      _
    %2669 = vsyncpa [#allocation5], 1

</llo_original>
